<compile_context>
chip_gen: v7x
topology: tpu7x:2x2x1
jax: 0.10.0
libtpu: 0.0.40
codegen_flags: <defaults>
</compile_context>

<pallas_src>
import math
from functools import partial

import jax
import jax.numpy as jnp
from jax.experimental import pallas as pl
from jax.experimental.pallas import tpu as pltpu


def mha_kernel(xq_ref, xk_ref, xv_ref,
               wq_ref, bq_ref, wk_ref, bk_ref, wv_ref, bv_ref,
               wp_ref, bp_ref,
               o_ref,
               *, n_heads, d_feature):
    bt, l, d_model = xq_ref.shape
    rows = bt * l

    # Flatten (Bt, l, d_model) -> (Bt*l, d_model) and cast to bf16 so the three
    # fused QKV projections are fat-M bf16 MXU matmuls with f32 accumulation.
    x_q = xq_ref[...].reshape(rows, d_model).astype(jnp.bfloat16)
    x_k = xk_ref[...].reshape(rows, d_model).astype(jnp.bfloat16)
    x_v = xv_ref[...].reshape(rows, d_model).astype(jnp.bfloat16)

    q_all = jnp.dot(x_q, wq_ref[...], preferred_element_type=jnp.float32) + bq_ref[...]
    k_all = jnp.dot(x_k, wk_ref[...], preferred_element_type=jnp.float32) + bk_ref[...]
    v_all = jnp.dot(x_v, wv_ref[...], preferred_element_type=jnp.float32) + bv_ref[...]

    # Per-(batch, head) attention; bf16 operands for the score and attn@v
    # matmuls, f32 accumulation.
    q3 = q_all.reshape(bt, l, d_model).astype(jnp.bfloat16)
    k3 = k_all.reshape(bt, l, d_model).astype(jnp.bfloat16)
    v3 = v_all.reshape(bt, l, d_model).astype(jnp.bfloat16)

    inv_sqrt_d = 1.0 / math.sqrt(d_feature)

    heads = []
    for h in range(n_heads):  # small static H -> unrolled, static slices
        lo = h * d_feature
        qh = q3[:, :, lo:lo + d_feature]   # (Bt, l, d_feature)
        kh = k3[:, :, lo:lo + d_feature]
        vh = v3[:, :, lo:lo + d_feature]

        # q @ k^T per batch, contracting last axes (no in-kernel transpose).
        s = jnp.einsum("bqd,bkd->bqk", qh, kh,
                       preferred_element_type=jnp.float32) * inv_sqrt_d

        # exp / sum normalization exactly like the torch code (row-max shift
        # added for f32 robustness); reciprocal runs on the EUP slot.
        m = jnp.max(s, axis=-1, keepdims=True)
        e = jnp.exp(s - m)
        denom = jnp.sum(e, axis=-1, keepdims=True)
        attn = (e * pl.reciprocal(denom, approx=True)).astype(jnp.bfloat16)

        heads.append(jnp.einsum("bqk,bkd->bqd", attn, vh,
                                preferred_element_type=jnp.float32))

    # Concatenate heads in registers (no VMEM scratch / masked narrow stores),
    # then one fused (Bt*l, d_model) x (d_model, d_model) output projection.
    concat = jnp.concatenate(heads, axis=-1).reshape(rows, d_model).astype(jnp.bfloat16)
    y = jnp.dot(concat, wp_ref[...], preferred_element_type=jnp.float32) + bp_ref[...]
    o_ref[...] = y.reshape(bt, l, d_model)


def _choose_batch_block(n, l, target_rows=256, min_grid_steps=2):
    """Largest divisor Bt of n with Bt*l <= target_rows, preferring to keep at
    least `min_grid_steps` grid steps so both v7x TensorCores stay occupied.
    (Review guidance: Bt*l ~ 128-512 on v5e/v6e, roughly half on v7x.)"""
    divisors = [d for d in range(1, n + 1) if n % d == 0 and d * l <= target_rows]
    if not divisors:
        return 1
    multi = [d for d in divisors if n // d >= min_grid_steps]
    return max(multi) if multi else max(divisors)


def multi_head_attention(queries, keys, values, params, *, batch_block=None):
    """queries/keys/values: (n, l, d_model) float32."""
    n, l, d_model = queries.shape
    wq, bq, wk, bk, wv, bv, wp, bp = params
    n_heads, d_feature, _ = wq.shape
    assert n_heads * d_feature == d_model

    # Fuse per-head projection weights into (d_model, n_heads*d_feature),
    # already transposed so the kernel computes x @ W directly; bf16 for MXU.
    def fuse(w):                       # (H, df, dm) -> (dm, H*df)
        return (jnp.transpose(w, (2, 0, 1))
                .reshape(d_model, n_heads * d_feature)
                .astype(jnp.bfloat16))

    wq_c, wk_c, wv_c = fuse(wq), fuse(wk), fuse(wv)
    bq_c = bq.reshape(1, n_heads * d_feature).astype(jnp.float32)
    bk_c = bk.reshape(1, n_heads * d_feature).astype(jnp.float32)
    bv_c = bv.reshape(1, n_heads * d_feature).astype(jnp.float32)
    wp_t = wp.T.astype(jnp.bfloat16)   # (d_model_in, d_model_out): concat @ wp_t
    bp_r = bp.reshape(1, d_model).astype(jnp.float32)

    bt = batch_block if batch_block is not None else _choose_batch_block(n, l)
    assert n % bt == 0, "batch block must divide batch size"
    grid = (n // bt,)

    # Batch-blocked sequence tiles; weight/bias index maps are grid-invariant
    # so they are DMA'd into VMEM once and stay resident for all grid steps.
    seq_spec = pl.BlockSpec((bt, l, d_model), lambda b: (b, 0, 0))
    mat_spec = pl.BlockSpec((d_model, d_model), lambda b: (0, 0))
    vec_spec = pl.BlockSpec((1, d_model), lambda b: (0, 0))

    kernel = partial(mha_kernel, n_heads=n_heads, d_feature=d_feature)

    return pl.pallas_call(
        kernel,
        out_shape=jax.ShapeDtypeStruct((n, l, d_model), jnp.float32),
        grid_spec=pltpu.PrefetchScalarGridSpec(
            num_scalar_prefetch=0,
            grid=grid,                                   # batch blocks; heads in-kernel
            in_specs=[seq_spec, seq_spec, seq_spec]
                     + [mat_spec, vec_spec] * 4,         # wq,bq, wk,bk, wv,bv, wp,bp
            out_specs=seq_spec,
        ),
        compiler_params=pltpu.CompilerParams(
            dimension_semantics=("parallel",),
            vmem_limit_bytes=64 * 1024 * 1024),          # raise v5e's 16 MiB default
    )(queries, keys, values, wq_c, bq_c, wk_c, bk_c, wv_c, bv_c, wp_t, bp_r)


def reference_mha(queries, keys, values, params):
    """Pure-JAX f32 reference mirroring the PyTorch forward (eval mode)."""
    wq, bq, wk, bk, wv, bv, wp, bp = params
    n_heads, d_feature, d_model = wq.shape
    heads = []
    for h in range(n_heads):
        q = queries @ wq[h].T + bq[h]
        k = keys @ wk[h].T + bk[h]
        v = values @ wv[h].T + bv[h]
        s = jnp.einsum("bqd,bkd->bqk", q, k) / math.sqrt(d_feature)
        e = jnp.exp(s)
        attn = e / jnp.sum(e, axis=-1, keepdims=True)
        heads.append(jnp.einsum("bqk,bkd->bqd", attn, v))
    x = jnp.concatenate(heads, axis=-1)
    return x @ wp.T + bp


def init_params(key, d_model, d_feature, n_heads):
    """Deterministic init (uniform, roughly like nn.Linear default)."""
    ks = jax.random.split(key, 8)
    lim = 1.0 / math.sqrt(d_model)
    wq = jax.random.uniform(ks[0], (n_heads, d_feature, d_model), jnp.float32, -lim, lim)
    bq = jax.random.uniform(ks[1], (n_heads, d_feature), jnp.float32, -lim, lim)
    wk = jax.random.uniform(ks[2], (n_heads, d_feature, d_model), jnp.float32, -lim, lim)
    bk = jax.random.uniform(ks[3], (n_heads, d_feature), jnp.float32, -lim, lim)
    wv = jax.random.uniform(ks[4], (n_heads, d_feature, d_model), jnp.float32, -lim, lim)
    bv = jax.random.uniform(ks[5], (n_heads, d_feature), jnp.float32, -lim, lim)
    wp = jax.random.uniform(ks[6], (d_model, d_model), jnp.float32, -lim, lim)
    bp = jax.random.uniform(ks[7], (d_model,), jnp.float32, -lim, lim)
    return (wq, bq, wk, bk, wv, bv, wp, bp)


if __name__ == "__main__":
    # Small shapes consistent with the module: d_model = d_feature * n_heads.
    # batch=8 so the batch-blocking path is exercised (Bt=4 -> 2 grid steps).
    n, l = 8, 8
    n_heads, d_feature = 4, 8
    d_model = n_heads * d_feature  # 32

    key = jax.random.PRNGKey(0)
    kq, kk, kv, kp = jax.random.split(key, 4)
    queries = jax.random.normal(kq, (n, l, d_model), jnp.float32)
    keys = jax.random.normal(kk, (n, l, d_model), jnp.float32)
    values = jax.random.normal(kv, (n, l, d_model), jnp.float32)
    params = init_params(kp, d_model, d_feature, n_heads)

    out = multi_head_attention(queries, keys, values, params)
    out = jax.block_until_ready(out)

    ref = reference_mha(queries, keys, values, params)
    assert out.shape == (n, l, d_model)
    # tolerance accounts for bf16 MXU operands (f32 accumulation) and the
    # approximate EUP reciprocal in the softmax
    assert jnp.allclose(out, ref, atol=1e-2, rtol=1e-2), "mismatch vs reference"

    print("KERNEL_OK")
</pallas_src>

<mosaic_0001>
module attributes {stable_mosaic.version = 11 : i64} {
  func.func @mha_kernel(%arg0: i32, %arg1: memref<4x8x32xf32, #tpu.memory_space<vmem>>, %arg2: memref<4x8x32xf32, #tpu.memory_space<vmem>>, %arg3: memref<4x8x32xf32, #tpu.memory_space<vmem>>, %arg4: memref<32x32xbf16, #tpu.memory_space<vmem>>, %arg5: memref<1x32xf32, #tpu.memory_space<vmem>>, %arg6: memref<32x32xbf16, #tpu.memory_space<vmem>>, %arg7: memref<1x32xf32, #tpu.memory_space<vmem>>, %arg8: memref<32x32xbf16, #tpu.memory_space<vmem>>, %arg9: memref<1x32xf32, #tpu.memory_space<vmem>>, %arg10: memref<32x32xbf16, #tpu.memory_space<vmem>>, %arg11: memref<1x32xf32, #tpu.memory_space<vmem>>, %arg12: memref<4x8x32xf32, #tpu.memory_space<vmem>>) attributes {dimension_semantics = [#tpu.dimension_semantics<parallel>], iteration_bounds = array<i64: 2>, scalar_prefetch = 0 : i64, scratch_operands = 0 : i64, tpu.core_type = #tpu.core_type<tc>, window_params = [{transform_indices = @transform_0, window_bounds = array<i64: 4, 8, 32>}, {transform_indices = @transform_1, window_bounds = array<i64: 4, 8, 32>}, {transform_indices = @transform_2, window_bounds = array<i64: 4, 8, 32>}, {pipeline_mode = #tpu.pipeline_mode<synchronous>, transform_indices = @transform_3, window_bounds = array<i64: 32, 32>}, {pipeline_mode = #tpu.pipeline_mode<synchronous>, transform_indices = @transform_4, window_bounds = array<i64: 1, 32>}, {pipeline_mode = #tpu.pipeline_mode<synchronous>, transform_indices = @transform_5, window_bounds = array<i64: 32, 32>}, {pipeline_mode = #tpu.pipeline_mode<synchronous>, transform_indices = @transform_6, window_bounds = array<i64: 1, 32>}, {pipeline_mode = #tpu.pipeline_mode<synchronous>, transform_indices = @transform_7, window_bounds = array<i64: 32, 32>}, {pipeline_mode = #tpu.pipeline_mode<synchronous>, transform_indices = @transform_8, window_bounds = array<i64: 1, 32>}, {pipeline_mode = #tpu.pipeline_mode<synchronous>, transform_indices = @transform_9, window_bounds = array<i64: 32, 32>}, {pipeline_mode = #tpu.pipeline_mode<synchronous>, transform_indices = @transform_10, window_bounds = array<i64: 1, 32>}, {transform_indices = @transform_11, window_bounds = array<i64: 4, 8, 32>}]} {
    %c0 = arith.constant 0 : index
    %c0_0 = arith.constant 0 : index
    %c0_1 = arith.constant 0 : index
    %0 = vector.load %arg1[%c0, %c0_0, %c0_1] : memref<4x8x32xf32, #tpu.memory_space<vmem>>, vector<4x8x32xf32>
    %1 = vector.shape_cast %0 : vector<4x8x32xf32> to vector<32x32xf32>
    %2 = arith.truncf %1 : vector<32x32xf32> to vector<32x32xbf16>
    %c0_2 = arith.constant 0 : index
    %c0_3 = arith.constant 0 : index
    %c0_4 = arith.constant 0 : index
    %3 = vector.load %arg2[%c0_2, %c0_3, %c0_4] : memref<4x8x32xf32, #tpu.memory_space<vmem>>, vector<4x8x32xf32>
    %4 = vector.shape_cast %3 : vector<4x8x32xf32> to vector<32x32xf32>
    %5 = arith.truncf %4 : vector<32x32xf32> to vector<32x32xbf16>
    %c0_5 = arith.constant 0 : index
    %c0_6 = arith.constant 0 : index
    %c0_7 = arith.constant 0 : index
    %6 = vector.load %arg3[%c0_5, %c0_6, %c0_7] : memref<4x8x32xf32, #tpu.memory_space<vmem>>, vector<4x8x32xf32>
    %7 = vector.shape_cast %6 : vector<4x8x32xf32> to vector<32x32xf32>
    %8 = arith.truncf %7 : vector<32x32xf32> to vector<32x32xbf16>
    %c0_8 = arith.constant 0 : index
    %c0_9 = arith.constant 0 : index
    %9 = vector.load %arg4[%c0_8, %c0_9] : memref<32x32xbf16, #tpu.memory_space<vmem>>, vector<32x32xbf16>
    %cst = arith.constant dense<0.000000e+00> : vector<32x32xf32>
    %10 = tpu.matmul %2, %9, %cst {dimension_numbers = #tpu.dot_dimension_numbers<[1], [0], [0], [1], [0, 0, 1, 1], [], []>} : vector<32x32xbf16>, vector<32x32xbf16>, vector<32x32xf32> -> vector<32x32xf32>
    %c0_10 = arith.constant 0 : index
    %c0_11 = arith.constant 0 : index
    %11 = vector.load %arg5[%c0_10, %c0_11] : memref<1x32xf32, #tpu.memory_space<vmem>>, vector<1x32xf32>
    %12 = vector.broadcast %11 : vector<1x32xf32> to vector<32x32xf32>
    %13 = arith.addf %10, %12 : vector<32x32xf32>
    %c0_12 = arith.constant 0 : index
    %c0_13 = arith.constant 0 : index
    %14 = vector.load %arg6[%c0_12, %c0_13] : memref<32x32xbf16, #tpu.memory_space<vmem>>, vector<32x32xbf16>
    %cst_14 = arith.constant dense<0.000000e+00> : vector<32x32xf32>
    %15 = tpu.matmul %5, %14, %cst_14 {dimension_numbers = #tpu.dot_dimension_numbers<[1], [0], [0], [1], [0, 0, 1, 1], [], []>} : vector<32x32xbf16>, vector<32x32xbf16>, vector<32x32xf32> -> vector<32x32xf32>
    %c0_15 = arith.constant 0 : index
    %c0_16 = arith.constant 0 : index
    %16 = vector.load %arg7[%c0_15, %c0_16] : memref<1x32xf32, #tpu.memory_space<vmem>>, vector<1x32xf32>
    %17 = vector.broadcast %16 : vector<1x32xf32> to vector<32x32xf32>
    %18 = arith.addf %15, %17 : vector<32x32xf32>
    %c0_17 = arith.constant 0 : index
    %c0_18 = arith.constant 0 : index
    %19 = vector.load %arg8[%c0_17, %c0_18] : memref<32x32xbf16, #tpu.memory_space<vmem>>, vector<32x32xbf16>
    %cst_19 = arith.constant dense<0.000000e+00> : vector<32x32xf32>
    %20 = tpu.matmul %8, %19, %cst_19 {dimension_numbers = #tpu.dot_dimension_numbers<[1], [0], [0], [1], [0, 0, 1, 1], [], []>} : vector<32x32xbf16>, vector<32x32xbf16>, vector<32x32xf32> -> vector<32x32xf32>
    %c0_20 = arith.constant 0 : index
    %c0_21 = arith.constant 0 : index
    %21 = vector.load %arg9[%c0_20, %c0_21] : memref<1x32xf32, #tpu.memory_space<vmem>>, vector<1x32xf32>
    %22 = vector.broadcast %21 : vector<1x32xf32> to vector<32x32xf32>
    %23 = arith.addf %20, %22 : vector<32x32xf32>
    %24 = vector.shape_cast %13 : vector<32x32xf32> to vector<4x8x32xf32>
    %25 = arith.truncf %24 : vector<4x8x32xf32> to vector<4x8x32xbf16>
    %26 = vector.shape_cast %18 : vector<32x32xf32> to vector<4x8x32xf32>
    %27 = arith.truncf %26 : vector<4x8x32xf32> to vector<4x8x32xbf16>
    %28 = vector.shape_cast %23 : vector<32x32xf32> to vector<4x8x32xf32>
    %29 = arith.truncf %28 : vector<4x8x32xf32> to vector<4x8x32xbf16>
    %30 = vector.extract_strided_slice %25 {offsets = [0, 0, 0], sizes = [4, 8, 8], strides = [1, 1, 1]} : vector<4x8x32xbf16> to vector<4x8x8xbf16>
    %31 = vector.extract_strided_slice %27 {offsets = [0, 0, 0], sizes = [4, 8, 8], strides = [1, 1, 1]} : vector<4x8x32xbf16> to vector<4x8x8xbf16>
    %32 = vector.extract_strided_slice %29 {offsets = [0, 0, 0], sizes = [4, 8, 8], strides = [1, 1, 1]} : vector<4x8x32xbf16> to vector<4x8x8xbf16>
    "tpu.trace_start"() <{level = 10 : i32, message = "bqd,bkd->bqk"}> : () -> ()
    %cst_22 = arith.constant dense<0.000000e+00> : vector<4x8x8xf32>
    %33 = tpu.matmul %30, %31, %cst_22 {dimension_numbers = #tpu.dot_dimension_numbers<[2], [2], [1], [1], [0, 0, 0, 1, 1, 1], [0], [0]>} : vector<4x8x8xbf16>, vector<4x8x8xbf16>, vector<4x8x8xf32> -> vector<4x8x8xf32>
    "tpu.trace_stop"() : () -> ()
    %cst_23 = arith.constant 0.353553385 : f32
    %34 = vector.broadcast %cst_23 : f32 to vector<4x8x8xf32>
    %35 = arith.mulf %33, %34 : vector<4x8x8xf32>
    %cst_24 = arith.constant dense<0xFF800000> : vector<4x8xf32>
    %36 = vector.multi_reduction <maximumf>, %35, %cst_24 [2] : vector<4x8x8xf32> to vector<4x8xf32>
    %37 = vector.shape_cast %36 : vector<4x8xf32> to vector<4x8x1xf32>
    %38 = vector.broadcast %37 : vector<4x8x1xf32> to vector<4x8x8xf32>
    %39 = arith.subf %35, %38 : vector<4x8x8xf32>
    %40 = math.exp %39 : vector<4x8x8xf32>
    %cst_25 = arith.constant dense<0.000000e+00> : vector<4x8xf32>
    %41 = vector.multi_reduction <add>, %40, %cst_25 [2] : vector<4x8x8xf32> to vector<4x8xf32>
    %42 = vector.shape_cast %41 : vector<4x8xf32> to vector<4x8x1xf32>
    %43 = tpu.reciprocal %42 {approx = true} : vector<4x8x1xf32> -> vector<4x8x1xf32>
    %44 = vector.broadcast %43 : vector<4x8x1xf32> to vector<4x8x8xf32>
    %45 = arith.mulf %40, %44 : vector<4x8x8xf32>
    %46 = arith.truncf %45 : vector<4x8x8xf32> to vector<4x8x8xbf16>
    "tpu.trace_start"() <{level = 10 : i32, message = "bqk,bkd->bqd"}> : () -> ()
    %cst_26 = arith.constant dense<0.000000e+00> : vector<4x8x8xf32>
    %47 = tpu.matmul %46, %32, %cst_26 {dimension_numbers = #tpu.dot_dimension_numbers<[2], [1], [1], [2], [0, 0, 0, 1, 1, 2], [0], [0]>} : vector<4x8x8xbf16>, vector<4x8x8xbf16>, vector<4x8x8xf32> -> vector<4x8x8xf32>
    "tpu.trace_stop"() : () -> ()
    %48 = vector.extract_strided_slice %25 {offsets = [0, 0, 8], sizes = [4, 8, 8], strides = [1, 1, 1]} : vector<4x8x32xbf16> to vector<4x8x8xbf16>
    %49 = vector.extract_strided_slice %27 {offsets = [0, 0, 8], sizes = [4, 8, 8], strides = [1, 1, 1]} : vector<4x8x32xbf16> to vector<4x8x8xbf16>
    %50 = vector.extract_strided_slice %29 {offsets = [0, 0, 8], sizes = [4, 8, 8], strides = [1, 1, 1]} : vector<4x8x32xbf16> to vector<4x8x8xbf16>
    "tpu.trace_start"() <{level = 10 : i32, message = "bqd,bkd->bqk"}> : () -> ()
    %cst_27 = arith.constant dense<0.000000e+00> : vector<4x8x8xf32>
    %51 = tpu.matmul %48, %49, %cst_27 {dimension_numbers = #tpu.dot_dimension_numbers<[2], [2], [1], [1], [0, 0, 0, 1, 1, 1], [0], [0]>} : vector<4x8x8xbf16>, vector<4x8x8xbf16>, vector<4x8x8xf32> -> vector<4x8x8xf32>
    "tpu.trace_stop"() : () -> ()
    %cst_28 = arith.constant 0.353553385 : f32
    %52 = vector.broadcast %cst_28 : f32 to vector<4x8x8xf32>
    %53 = arith.mulf %51, %52 : vector<4x8x8xf32>
    %cst_29 = arith.constant dense<0xFF800000> : vector<4x8xf32>
    %54 = vector.multi_reduction <maximumf>, %53, %cst_29 [2] : vector<4x8x8xf32> to vector<4x8xf32>
    %55 = vector.shape_cast %54 : vector<4x8xf32> to vector<4x8x1xf32>
    %56 = vector.broadcast %55 : vector<4x8x1xf32> to vector<4x8x8xf32>
    %57 = arith.subf %53, %56 : vector<4x8x8xf32>
    %58 = math.exp %57 : vector<4x8x8xf32>
    %cst_30 = arith.constant dense<0.000000e+00> : vector<4x8xf32>
    %59 = vector.multi_reduction <add>, %58, %cst_30 [2] : vector<4x8x8xf32> to vector<4x8xf32>
    %60 = vector.shape_cast %59 : vector<4x8xf32> to vector<4x8x1xf32>
    %61 = tpu.reciprocal %60 {approx = true} : vector<4x8x1xf32> -> vector<4x8x1xf32>
    %62 = vector.broadcast %61 : vector<4x8x1xf32> to vector<4x8x8xf32>
    %63 = arith.mulf %58, %62 : vector<4x8x8xf32>
    %64 = arith.truncf %63 : vector<4x8x8xf32> to vector<4x8x8xbf16>
    "tpu.trace_start"() <{level = 10 : i32, message = "bqk,bkd->bqd"}> : () -> ()
    %cst_31 = arith.constant dense<0.000000e+00> : vector<4x8x8xf32>
    %65 = tpu.matmul %64, %50, %cst_31 {dimension_numbers = #tpu.dot_dimension_numbers<[2], [1], [1], [2], [0, 0, 0, 1, 1, 2], [0], [0]>} : vector<4x8x8xbf16>, vector<4x8x8xbf16>, vector<4x8x8xf32> -> vector<4x8x8xf32>
    "tpu.trace_stop"() : () -> ()
    %66 = vector.extract_strided_slice %25 {offsets = [0, 0, 16], sizes = [4, 8, 8], strides = [1, 1, 1]} : vector<4x8x32xbf16> to vector<4x8x8xbf16>
    %67 = vector.extract_strided_slice %27 {offsets = [0, 0, 16], sizes = [4, 8, 8], strides = [1, 1, 1]} : vector<4x8x32xbf16> to vector<4x8x8xbf16>
    %68 = vector.extract_strided_slice %29 {offsets = [0, 0, 16], sizes = [4, 8, 8], strides = [1, 1, 1]} : vector<4x8x32xbf16> to vector<4x8x8xbf16>
    "tpu.trace_start"() <{level = 10 : i32, message = "bqd,bkd->bqk"}> : () -> ()
    %cst_32 = arith.constant dense<0.000000e+00> : vector<4x8x8xf32>
    %69 = tpu.matmul %66, %67, %cst_32 {dimension_numbers = #tpu.dot_dimension_numbers<[2], [2], [1], [1], [0, 0, 0, 1, 1, 1], [0], [0]>} : vector<4x8x8xbf16>, vector<4x8x8xbf16>, vector<4x8x8xf32> -> vector<4x8x8xf32>
    "tpu.trace_stop"() : () -> ()
    %cst_33 = arith.constant 0.353553385 : f32
    %70 = vector.broadcast %cst_33 : f32 to vector<4x8x8xf32>
    %71 = arith.mulf %69, %70 : vector<4x8x8xf32>
    %cst_34 = arith.constant dense<0xFF800000> : vector<4x8xf32>
    %72 = vector.multi_reduction <maximumf>, %71, %cst_34 [2] : vector<4x8x8xf32> to vector<4x8xf32>
    %73 = vector.shape_cast %72 : vector<4x8xf32> to vector<4x8x1xf32>
    %74 = vector.broadcast %73 : vector<4x8x1xf32> to vector<4x8x8xf32>
    %75 = arith.subf %71, %74 : vector<4x8x8xf32>
    %76 = math.exp %75 : vector<4x8x8xf32>
    %cst_35 = arith.constant dense<0.000000e+00> : vector<4x8xf32>
    %77 = vector.multi_reduction <add>, %76, %cst_35 [2] : vector<4x8x8xf32> to vector<4x8xf32>
    %78 = vector.shape_cast %77 : vector<4x8xf32> to vector<4x8x1xf32>
    %79 = tpu.reciprocal %78 {approx = true} : vector<4x8x1xf32> -> vector<4x8x1xf32>
    %80 = vector.broadcast %79 : vector<4x8x1xf32> to vector<4x8x8xf32>
    %81 = arith.mulf %76, %80 : vector<4x8x8xf32>
    %82 = arith.truncf %81 : vector<4x8x8xf32> to vector<4x8x8xbf16>
    "tpu.trace_start"() <{level = 10 : i32, message = "bqk,bkd->bqd"}> : () -> ()
    %cst_36 = arith.constant dense<0.000000e+00> : vector<4x8x8xf32>
    %83 = tpu.matmul %82, %68, %cst_36 {dimension_numbers = #tpu.dot_dimension_numbers<[2], [1], [1], [2], [0, 0, 0, 1, 1, 2], [0], [0]>} : vector<4x8x8xbf16>, vector<4x8x8xbf16>, vector<4x8x8xf32> -> vector<4x8x8xf32>
    "tpu.trace_stop"() : () -> ()
    %84 = vector.extract_strided_slice %25 {offsets = [0, 0, 24], sizes = [4, 8, 8], strides = [1, 1, 1]} : vector<4x8x32xbf16> to vector<4x8x8xbf16>
    %85 = vector.extract_strided_slice %27 {offsets = [0, 0, 24], sizes = [4, 8, 8], strides = [1, 1, 1]} : vector<4x8x32xbf16> to vector<4x8x8xbf16>
    %86 = vector.extract_strided_slice %29 {offsets = [0, 0, 24], sizes = [4, 8, 8], strides = [1, 1, 1]} : vector<4x8x32xbf16> to vector<4x8x8xbf16>
    "tpu.trace_start"() <{level = 10 : i32, message = "bqd,bkd->bqk"}> : () -> ()
    %cst_37 = arith.constant dense<0.000000e+00> : vector<4x8x8xf32>
    %87 = tpu.matmul %84, %85, %cst_37 {dimension_numbers = #tpu.dot_dimension_numbers<[2], [2], [1], [1], [0, 0, 0, 1, 1, 1], [0], [0]>} : vector<4x8x8xbf16>, vector<4x8x8xbf16>, vector<4x8x8xf32> -> vector<4x8x8xf32>
    "tpu.trace_stop"() : () -> ()
    %cst_38 = arith.constant 0.353553385 : f32
    %88 = vector.broadcast %cst_38 : f32 to vector<4x8x8xf32>
    %89 = arith.mulf %87, %88 : vector<4x8x8xf32>
    %cst_39 = arith.constant dense<0xFF800000> : vector<4x8xf32>
    %90 = vector.multi_reduction <maximumf>, %89, %cst_39 [2] : vector<4x8x8xf32> to vector<4x8xf32>
    %91 = vector.shape_cast %90 : vector<4x8xf32> to vector<4x8x1xf32>
    %92 = vector.broadcast %91 : vector<4x8x1xf32> to vector<4x8x8xf32>
    %93 = arith.subf %89, %92 : vector<4x8x8xf32>
    %94 = math.exp %93 : vector<4x8x8xf32>
    %cst_40 = arith.constant dense<0.000000e+00> : vector<4x8xf32>
    %95 = vector.multi_reduction <add>, %94, %cst_40 [2] : vector<4x8x8xf32> to vector<4x8xf32>
    %96 = vector.shape_cast %95 : vector<4x8xf32> to vector<4x8x1xf32>
    %97 = tpu.reciprocal %96 {approx = true} : vector<4x8x1xf32> -> vector<4x8x1xf32>
    %98 = vector.broadcast %97 : vector<4x8x1xf32> to vector<4x8x8xf32>
    %99 = arith.mulf %94, %98 : vector<4x8x8xf32>
    %100 = arith.truncf %99 : vector<4x8x8xf32> to vector<4x8x8xbf16>
    "tpu.trace_start"() <{level = 10 : i32, message = "bqk,bkd->bqd"}> : () -> ()
    %cst_41 = arith.constant dense<0.000000e+00> : vector<4x8x8xf32>
    %101 = tpu.matmul %100, %86, %cst_41 {dimension_numbers = #tpu.dot_dimension_numbers<[2], [1], [1], [2], [0, 0, 0, 1, 1, 2], [0], [0]>} : vector<4x8x8xbf16>, vector<4x8x8xbf16>, vector<4x8x8xf32> -> vector<4x8x8xf32>
    "tpu.trace_stop"() : () -> ()
    %102 = tpu.concatenate %47, %65, %83, %101 in 2 : vector<4x8x8xf32>, vector<4x8x8xf32>, vector<4x8x8xf32>, vector<4x8x8xf32> -> vector<4x8x32xf32>
    %103 = vector.shape_cast %102 : vector<4x8x32xf32> to vector<32x32xf32>
    %104 = arith.truncf %103 : vector<32x32xf32> to vector<32x32xbf16>
    %c0_42 = arith.constant 0 : index
    %c0_43 = arith.constant 0 : index
    %105 = vector.load %arg10[%c0_42, %c0_43] : memref<32x32xbf16, #tpu.memory_space<vmem>>, vector<32x32xbf16>
    %cst_44 = arith.constant dense<0.000000e+00> : vector<32x32xf32>
    %106 = tpu.matmul %104, %105, %cst_44 {dimension_numbers = #tpu.dot_dimension_numbers<[1], [0], [0], [1], [0, 0, 1, 1], [], []>} : vector<32x32xbf16>, vector<32x32xbf16>, vector<32x32xf32> -> vector<32x32xf32>
    %c0_45 = arith.constant 0 : index
    %c0_46 = arith.constant 0 : index
    %107 = vector.load %arg11[%c0_45, %c0_46] : memref<1x32xf32, #tpu.memory_space<vmem>>, vector<1x32xf32>
    %108 = vector.broadcast %107 : vector<1x32xf32> to vector<32x32xf32>
    %109 = arith.addf %106, %108 : vector<32x32xf32>
    %110 = vector.shape_cast %109 : vector<32x32xf32> to vector<4x8x32xf32>
    %c0_47 = arith.constant 0 : index
    %c0_48 = arith.constant 0 : index
    %c0_49 = arith.constant 0 : index
    %111 = vector.load %arg12[%c0_47, %c0_48, %c0_49] : memref<4x8x32xf32, #tpu.memory_space<vmem>>, vector<4x8x32xf32>
    tpu.vector_store %arg12[%c0_47, %c0_48, %c0_49], %110 {strides = array<i32>} : memref<4x8x32xf32, #tpu.memory_space<vmem>>, vector<4x8x32xf32>,
    return
  }
  func.func @transform_0(%arg0: i32) -> (i32, i32, i32) {
    %c0_i32 = arith.constant 0 : i32
    %c0_i32_0 = arith.constant 0 : i32
    %c0_i32_1 = arith.constant 0 : i32
    return %arg0, %c0_i32, %c0_i32_0 : i32, i32, i32
  }
  func.func @transform_1(%arg0: i32) -> (i32, i32, i32) {
    %c0_i32 = arith.constant 0 : i32
    %c0_i32_0 = arith.constant 0 : i32
    %c0_i32_1 = arith.constant 0 : i32
    return %arg0, %c0_i32, %c0_i32_0 : i32, i32, i32
  }
  func.func @transform_2(%arg0: i32) -> (i32, i32, i32) {
    %c0_i32 = arith.constant 0 : i32
    %c0_i32_0 = arith.constant 0 : i32
    %c0_i32_1 = arith.constant 0 : i32
    return %arg0, %c0_i32, %c0_i32_0 : i32, i32, i32
  }
  func.func @transform_3(%arg0: i32) -> (i32, i32) {
    %c0_i32 = arith.constant 0 : i32
    %c0_i32_0 = arith.constant 0 : i32
    %c0_i32_1 = arith.constant 0 : i32
    return %c0_i32, %c0_i32_0 : i32, i32
  }
  func.func @transform_4(%arg0: i32) -> (i32, i32) {
    %c0_i32 = arith.constant 0 : i32
    %c0_i32_0 = arith.constant 0 : i32
    %c0_i32_1 = arith.constant 0 : i32
    return %c0_i32, %c0_i32_0 : i32, i32
  }
  func.func @transform_5(%arg0: i32) -> (i32, i32) {
    %c0_i32 = arith.constant 0 : i32
    %c0_i32_0 = arith.constant 0 : i32
    %c0_i32_1 = arith.constant 0 : i32
    return %c0_i32, %c0_i32_0 : i32, i32
  }
  func.func @transform_6(%arg0: i32) -> (i32, i32) {
    %c0_i32 = arith.constant 0 : i32
    %c0_i32_0 = arith.constant 0 : i32
    %c0_i32_1 = arith.constant 0 : i32
    return %c0_i32, %c0_i32_0 : i32, i32
  }
  func.func @transform_7(%arg0: i32) -> (i32, i32) {
    %c0_i32 = arith.constant 0 : i32
    %c0_i32_0 = arith.constant 0 : i32
    %c0_i32_1 = arith.constant 0 : i32
    return %c0_i32, %c0_i32_0 : i32, i32
  }
  func.func @transform_8(%arg0: i32) -> (i32, i32) {
    %c0_i32 = arith.constant 0 : i32
    %c0_i32_0 = arith.constant 0 : i32
    %c0_i32_1 = arith.constant 0 : i32
    return %c0_i32, %c0_i32_0 : i32, i32
  }
  func.func @transform_9(%arg0: i32) -> (i32, i32) {
    %c0_i32 = arith.constant 0 : i32
    %c0_i32_0 = arith.constant 0 : i32
    %c0_i32_1 = arith.constant 0 : i32
    return %c0_i32, %c0_i32_0 : i32, i32
  }
  func.func @transform_10(%arg0: i32) -> (i32, i32) {
    %c0_i32 = arith.constant 0 : i32
    %c0_i32_0 = arith.constant 0 : i32
    %c0_i32_1 = arith.constant 0 : i32
    return %c0_i32, %c0_i32_0 : i32, i32
  }
  func.func @transform_11(%arg0: i32) -> (i32, i32, i32) {
    %c0_i32 = arith.constant 0 : i32
    %c0_i32_0 = arith.constant 0 : i32
    %c0_i32_1 = arith.constant 0 : i32
    return %arg0, %c0_i32, %c0_i32_0 : i32, i32, i32
  }
}

</mosaic_0001>

<llo_original>
// kernel: tpu_custom_call.1
$region0: #{tpu_custom_call.1}
  #allocation0 [shape = 'u32[]', space=smem, size = 0x4, offset = 0x4, fixed_abs, tag = 'smem constant byte address 0x4 - core index']
  #allocation1 [shape = 'u32[144,128]{1,0:T(1,128)}', space=vmem, size = 0x12000, scoped, tag = 'internal scratch']
  %s0 = inlined_call_operand.hbm [shape: f32[8,8,32], index: 0, kind: input, shape index: {}]
  %s1 = inlined_call_operand.hbm [shape: f32[8,8,32], index: 1, kind: input, shape index: {}]
  %s2 = inlined_call_operand.hbm [shape: f32[8,8,32], index: 2, kind: input, shape index: {}]
  %s3 = inlined_call_operand.hbm [shape: bf16[32,32], index: 3, kind: input, shape index: {}]
  %s4 = inlined_call_operand.hbm [shape: f32[1,32], index: 4, kind: input, shape index: {}]
  %s5 = inlined_call_operand.hbm [shape: bf16[32,32], index: 5, kind: input, shape index: {}]
  %s6 = inlined_call_operand.hbm [shape: f32[1,32], index: 6, kind: input, shape index: {}]
  %s7 = inlined_call_operand.hbm [shape: bf16[32,32], index: 7, kind: input, shape index: {}]
  %s8 = inlined_call_operand.hbm [shape: f32[1,32], index: 8, kind: input, shape index: {}]
  %s9 = inlined_call_operand.hbm [shape: bf16[32,32], index: 9, kind: input, shape index: {}]
  %s10 = inlined_call_operand.hbm [shape: f32[1,32], index: 10, kind: input, shape index: {}]
  %s11 = inlined_call_operand.hbm [shape: f32[8,8,32], index: 11, kind: output, shape index: {}]
  %s12 = sld [smem:[#allocation0]]
  $region121: #{tpu_custom_call.1} parent=0
    _
  %s14 = ssub.s32 1, %s12
  %s15 = scalar_select 0, %s14, %s12
  $region1: #{tpu_custom_call.1} parent=0
    #allocation2 [shape = 'u8[32768]{0}', space=vmem, size = 0x8000, scoped, tag = 'input window, operand 0']
    #allocation3 [shape = 's32[2]{0}', space=sflag, size = 0x8, scoped, tag = 'scoped memory for tpu_custom_call.1']
    #allocation4 [shape = 's32[2]{0}', space=sflag, size = 0x8, scoped, tag = 'scoped memory for tpu_custom_call.1']
    #allocation5 [shape = 'u8[32768]{0}', space=vmem, size = 0x8000, scoped, tag = 'input window, operand 1']
    #allocation6 [shape = 's32[2]{0}', space=sflag, size = 0x8, scoped, tag = 'scoped memory for tpu_custom_call.1']
    #allocation7 [shape = 'u8[32768]{0}', space=vmem, size = 0x8000, scoped, tag = 'input window, operand 2']
    #allocation8 [shape = 'u8[8192]{0}', space=vmem, size = 0x2000, scoped, tag = 'input window, operand 3, single buffered']
    #allocation9 [shape = 's32[1]{0}', space=sflag, size = 0x4, scoped, tag = 'scoped memory for tpu_custom_call.1']
    #allocation10 [shape = 'u8[512]{0}', space=vmem, size = 0x400, scoped, tag = 'input window, operand 4, single buffered']
    #allocation11 [shape = 'u8[8192]{0}', space=vmem, size = 0x2000, scoped, tag = 'input window, operand 5, single buffered']
    #allocation12 [shape = 's32[1]{0}', space=sflag, size = 0x4, scoped, tag = 'scoped memory for tpu_custom_call.1']
    #allocation13 [shape = 'u8[512]{0}', space=vmem, size = 0x400, scoped, tag = 'input window, operand 6, single buffered']
    #allocation14 [shape = 'u8[8192]{0}', space=vmem, size = 0x2000, scoped, tag = 'input window, operand 7, single buffered']
    #allocation15 [shape = 's32[1]{0}', space=sflag, size = 0x4, scoped, tag = 'scoped memory for tpu_custom_call.1']
    #allocation16 [shape = 'u8[512]{0}', space=vmem, size = 0x400, scoped, tag = 'input window, operand 8, single buffered']
    #allocation17 [shape = 'u8[8192]{0}', space=vmem, size = 0x2000, scoped, tag = 'input window, operand 9, single buffered']
    #allocation18 [shape = 's32[1]{0}', space=sflag, size = 0x4, scoped, tag = 'scoped memory for tpu_custom_call.1']
    #allocation19 [shape = 'u8[512]{0}', space=vmem, size = 0x400, scoped, tag = 'input window, operand 10, single buffered']
    #allocation20 [shape = 'u8[32768]{0}', space=vmem, size = 0x8000, scoped, tag = 'output window, operand 0']
    %16 = vsyncpa [#allocation3], 0
    %s17 = scalar_lea.sflag [#allocation3], 1
    %18 = vsyncpa %s17, 0
    %19 = vsyncpa [#allocation6], 0
    %s20 = scalar_lea.sflag [#allocation6], 1
    %21 = vsyncpa %s20, 0
    %22 = vsyncpa [#allocation9], 0
    %23 = vsyncpa [#allocation12], 0
    %24 = vsyncpa [#allocation15], 0
    %25 = vsyncpa [#allocation18], 0
    %26 = vsyncpa [#allocation4], 0
    %s27 = scalar_lea.sflag [#allocation4], 1
    %28 = vsyncpa %s27, 0
    loop: start=0, step=1, limit=4
    $region2: #{tpu_custom_call.1} parent=1 // loop_pre_header
      _
    $region3: #{tpu_custom_call.1} parent=1 // loop_header
      %s30 = sphi 0, %s34
      %p31 = scmp.ge.s32.totalorder %s30, 4
      %s40 = sphi 0, %s42
      %s43 = sphi 0, %s40
      %s44 = sphi 0, %s43
      %s60 = sphi 0, %s44
      %s66 = sphi 0, %s68
      %s69 = sphi 0, %s66
      %s70 = sphi 0, %s69
      %s86 = sphi 0, %s70
      %s92 = sphi 0, %s94
      %s95 = sphi 0, %s92
      %s96 = sphi 0, %s95
      %s112 = sphi 0, %s96
      %s116 = sphi 0, %s116
      %s118 = sphi 0, %s116
      %s119 = sphi 0, %s118
      %s133 = sphi 0, %s119
      %s137 = sphi 0, %s137
      %s139 = sphi 0, %s137
      %s140 = sphi 0, %s139
      %s154 = sphi 0, %s140
      %s158 = sphi 0, %s158
      %s160 = sphi 0, %s158
      %s161 = sphi 0, %s160
      %s175 = sphi 0, %s161
      %s179 = sphi 0, %s179
      %s181 = sphi 0, %s179
      %s182 = sphi 0, %s181
      %s196 = sphi 0, %s182
      %s200 = sphi 0, %s200
      %s202 = sphi 0, %s200
      %s203 = sphi 0, %s202
      %s217 = sphi 0, %s203
      %s221 = sphi 0, %s221
      %s223 = sphi 0, %s221
      %s224 = sphi 0, %s223
      %s238 = sphi 0, %s224
      %s242 = sphi 0, %s242
      %s244 = sphi 0, %s242
      %s245 = sphi 0, %s244
      %s259 = sphi 0, %s245
      %s263 = sphi 0, %s263
      %s265 = sphi 0, %s263
      %s266 = sphi 0, %s265
      %s280 = sphi 0, %s266
      %s286 = sphi 0, %s288
      %s289 = sphi 0, %s286
      %s290 = sphi 0, %s289
      %s306 = sphi 0, %s290
    $region4: #{tpu_custom_call.1} parent=1 // loop_header_branch
      %33 = sbr.rel (%p31) target = $region8
    $region5: #{tpu_custom_call.1} parent=1 // loop_body
      %s35 = ssub.s32 %s30, 1
      %s36 = ssub.s32 %s30, 2
      %s37 = sadd.s32 %s30, 1
      %s38 = ssub.s32 %s30, %s37
      %p39 = scmp.eq.s32.totalorder %s38, 0
      %s41 = sadd.s32 %s40, 1
      %s42 = scalar_select %p39, %s40, %s41
      %p45 = pneg %p39
      %p46 = scmp.eq.s32.totalorder %s30, 1
      %p47 = por %p45, %p46
      %p48 = scmp.ne.s32.totalorder %s40, %s43
      %p49 = scmp.eq.s32.totalorder %s30, 0
      %p50 = por %p48, %p49
      %p51 = scmp.ne.s32.totalorder %s40, %s43
      %p52 = scmp.eq.s32.totalorder %s35, 1
      %p53 = por %p51, %p52
      %p54 = scmp.ne.s32.totalorder %s43, %s44
      %p55 = scmp.eq.s32.totalorder %s35, 0
      %p56 = por %p54, %p55
      %p57 = scmp.ne.s32.totalorder %s43, %s44
      %p58 = scmp.eq.s32.totalorder %s36, 1
      %p59 = por %p57, %p58
      %p61 = scmp.ne.s32.totalorder %s44, %s60
      %p62 = scmp.eq.s32.totalorder %s36, 0
      %p63 = por %p61, %p62
      %s64 = ssub.s32 %s30, %s37
      %p65 = scmp.eq.s32.totalorder %s64, 0
      %s67 = sadd.s32 %s66, 1
      %s68 = scalar_select %p65, %s66, %s67
      %p71 = pneg %p65
      %p72 = scmp.eq.s32.totalorder %s30, 1
      %p73 = por %p71, %p72
      %p74 = scmp.ne.s32.totalorder %s66, %s69
      %p75 = scmp.eq.s32.totalorder %s30, 0
      %p76 = por %p74, %p75
      %p77 = scmp.ne.s32.totalorder %s66, %s69
      %p78 = scmp.eq.s32.totalorder %s35, 1
      %p79 = por %p77, %p78
      %p80 = scmp.ne.s32.totalorder %s69, %s70
      %p81 = scmp.eq.s32.totalorder %s35, 0
      %p82 = por %p80, %p81
      %p83 = scmp.ne.s32.totalorder %s69, %s70
      %p84 = scmp.eq.s32.totalorder %s36, 1
      %p85 = por %p83, %p84
      %p87 = scmp.ne.s32.totalorder %s70, %s86
      %p88 = scmp.eq.s32.totalorder %s36, 0
      %p89 = por %p87, %p88
      %s90 = ssub.s32 %s30, %s37
      %p91 = scmp.eq.s32.totalorder %s90, 0
      %s93 = sadd.s32 %s92, 1
      %s94 = scalar_select %p91, %s92, %s93
      %p97 = pneg %p91
      %p98 = scmp.eq.s32.totalorder %s30, 1
      %p99 = por %p97, %p98
      %p100 = scmp.ne.s32.totalorder %s92, %s95
      %p101 = scmp.eq.s32.totalorder %s30, 0
      %p102 = por %p100, %p101
      %p103 = scmp.ne.s32.totalorder %s92, %s95
      %p104 = scmp.eq.s32.totalorder %s35, 1
      %p105 = por %p103, %p104
      %p106 = scmp.ne.s32.totalorder %s95, %s96
      %p107 = scmp.eq.s32.totalorder %s35, 0
      %p108 = por %p106, %p107
      %p109 = scmp.ne.s32.totalorder %s95, %s96
      %p110 = scmp.eq.s32.totalorder %s36, 1
      %p111 = por %p109, %p110
      %p113 = scmp.ne.s32.totalorder %s96, %s112
      %p114 = scmp.eq.s32.totalorder %s36, 0
      %p115 = por %p113, %p114
      %s117 = sadd.s32 %s116, 1
      %p120 = scmp.eq.s32.totalorder %s30, 1
      %p121 = scmp.ne.s32.totalorder %s116, %s118
      %p122 = scmp.eq.s32.totalorder %s30, 0
      %p123 = por %p121, %p122
      %p124 = scmp.ne.s32.totalorder %s116, %s118
      %p125 = scmp.eq.s32.totalorder %s35, 1
      %p126 = por %p124, %p125
      %p127 = scmp.ne.s32.totalorder %s118, %s119
      %p128 = scmp.eq.s32.totalorder %s35, 0
      %p129 = por %p127, %p128
      %p130 = scmp.ne.s32.totalorder %s118, %s119
      %p131 = scmp.eq.s32.totalorder %s36, 1
      %p132 = por %p130, %p131
      %p134 = scmp.ne.s32.totalorder %s119, %s133
      %p135 = scmp.eq.s32.totalorder %s36, 0
      %p136 = por %p134, %p135
      %s138 = sadd.s32 %s137, 1
      %p141 = scmp.eq.s32.totalorder %s30, 1
      %p142 = scmp.ne.s32.totalorder %s137, %s139
      %p143 = scmp.eq.s32.totalorder %s30, 0
      %p144 = por %p142, %p143
      %p145 = scmp.ne.s32.totalorder %s137, %s139
      %p146 = scmp.eq.s32.totalorder %s35, 1
      %p147 = por %p145, %p146
      %p148 = scmp.ne.s32.totalorder %s139, %s140
      %p149 = scmp.eq.s32.totalorder %s35, 0
      %p150 = por %p148, %p149
      %p151 = scmp.ne.s32.totalorder %s139, %s140
      %p152 = scmp.eq.s32.totalorder %s36, 1
      %p153 = por %p151, %p152
      %p155 = scmp.ne.s32.totalorder %s140, %s154
      %p156 = scmp.eq.s32.totalorder %s36, 0
      %p157 = por %p155, %p156
      %s159 = sadd.s32 %s158, 1
      %p162 = scmp.eq.s32.totalorder %s30, 1
      %p163 = scmp.ne.s32.totalorder %s158, %s160
      %p164 = scmp.eq.s32.totalorder %s30, 0
      %p165 = por %p163, %p164
      %p166 = scmp.ne.s32.totalorder %s158, %s160
      %p167 = scmp.eq.s32.totalorder %s35, 1
      %p168 = por %p166, %p167
      %p169 = scmp.ne.s32.totalorder %s160, %s161
      %p170 = scmp.eq.s32.totalorder %s35, 0
      %p171 = por %p169, %p170
      %p172 = scmp.ne.s32.totalorder %s160, %s161
      %p173 = scmp.eq.s32.totalorder %s36, 1
      %p174 = por %p172, %p173
      %p176 = scmp.ne.s32.totalorder %s161, %s175
      %p177 = scmp.eq.s32.totalorder %s36, 0
      %p178 = por %p176, %p177
      %s180 = sadd.s32 %s179, 1
      %p183 = scmp.eq.s32.totalorder %s30, 1
      %p184 = scmp.ne.s32.totalorder %s179, %s181
      %p185 = scmp.eq.s32.totalorder %s30, 0
      %p186 = por %p184, %p185
      %p187 = scmp.ne.s32.totalorder %s179, %s181
      %p188 = scmp.eq.s32.totalorder %s35, 1
      %p189 = por %p187, %p188
      %p190 = scmp.ne.s32.totalorder %s181, %s182
      %p191 = scmp.eq.s32.totalorder %s35, 0
      %p192 = por %p190, %p191
      %p193 = scmp.ne.s32.totalorder %s181, %s182
      %p194 = scmp.eq.s32.totalorder %s36, 1
      %p195 = por %p193, %p194
      %p197 = scmp.ne.s32.totalorder %s182, %s196
      %p198 = scmp.eq.s32.totalorder %s36, 0
      %p199 = por %p197, %p198
      %s201 = sadd.s32 %s200, 1
      %p204 = scmp.eq.s32.totalorder %s30, 1
      %p205 = scmp.ne.s32.totalorder %s200, %s202
      %p206 = scmp.eq.s32.totalorder %s30, 0
      %p207 = por %p205, %p206
      %p208 = scmp.ne.s32.totalorder %s200, %s202
      %p209 = scmp.eq.s32.totalorder %s35, 1
      %p210 = por %p208, %p209
      %p211 = scmp.ne.s32.totalorder %s202, %s203
      %p212 = scmp.eq.s32.totalorder %s35, 0
      %p213 = por %p211, %p212
      %p214 = scmp.ne.s32.totalorder %s202, %s203
      %p215 = scmp.eq.s32.totalorder %s36, 1
      %p216 = por %p214, %p215
      %p218 = scmp.ne.s32.totalorder %s203, %s217
      %p219 = scmp.eq.s32.totalorder %s36, 0
      %p220 = por %p218, %p219
      %s222 = sadd.s32 %s221, 1
      %p225 = scmp.eq.s32.totalorder %s30, 1
      %p226 = scmp.ne.s32.totalorder %s221, %s223
      %p227 = scmp.eq.s32.totalorder %s30, 0
      %p228 = por %p226, %p227
      %p229 = scmp.ne.s32.totalorder %s221, %s223
      %p230 = scmp.eq.s32.totalorder %s35, 1
      %p231 = por %p229, %p230
      %p232 = scmp.ne.s32.totalorder %s223, %s224
      %p233 = scmp.eq.s32.totalorder %s35, 0
      %p234 = por %p232, %p233
      %p235 = scmp.ne.s32.totalorder %s223, %s224
      %p236 = scmp.eq.s32.totalorder %s36, 1
      %p237 = por %p235, %p236
      %p239 = scmp.ne.s32.totalorder %s224, %s238
      %p240 = scmp.eq.s32.totalorder %s36, 0
      %p241 = por %p239, %p240
      %s243 = sadd.s32 %s242, 1
      %p246 = scmp.eq.s32.totalorder %s30, 1
      %p247 = scmp.ne.s32.totalorder %s242, %s244
      %p248 = scmp.eq.s32.totalorder %s30, 0
      %p249 = por %p247, %p248
      %p250 = scmp.ne.s32.totalorder %s242, %s244
      %p251 = scmp.eq.s32.totalorder %s35, 1
      %p252 = por %p250, %p251
      %p253 = scmp.ne.s32.totalorder %s244, %s245
      %p254 = scmp.eq.s32.totalorder %s35, 0
      %p255 = por %p253, %p254
      %p256 = scmp.ne.s32.totalorder %s244, %s245
      %p257 = scmp.eq.s32.totalorder %s36, 1
      %p258 = por %p256, %p257
      %p260 = scmp.ne.s32.totalorder %s245, %s259
      %p261 = scmp.eq.s32.totalorder %s36, 0
      %p262 = por %p260, %p261
      %s264 = sadd.s32 %s263, 1
      %p267 = scmp.eq.s32.totalorder %s30, 1
      %p268 = scmp.ne.s32.totalorder %s263, %s265
      %p269 = scmp.eq.s32.totalorder %s30, 0
      %p270 = por %p268, %p269
      %p271 = scmp.ne.s32.totalorder %s263, %s265
      %p272 = scmp.eq.s32.totalorder %s35, 1
      %p273 = por %p271, %p272
      %p274 = scmp.ne.s32.totalorder %s265, %s266
      %p275 = scmp.eq.s32.totalorder %s35, 0
      %p276 = por %p274, %p275
      %p277 = scmp.ne.s32.totalorder %s265, %s266
      %p278 = scmp.eq.s32.totalorder %s36, 1
      %p279 = por %p277, %p278
      %p281 = scmp.ne.s32.totalorder %s266, %s280
      %p282 = scmp.eq.s32.totalorder %s36, 0
      %p283 = por %p281, %p282
      %s284 = ssub.s32 %s30, %s37
      %p285 = scmp.eq.s32.totalorder %s284, 0
      %s287 = sadd.s32 %s286, 1
      %s288 = scalar_select %p285, %s286, %s287
      %p291 = pneg %p285
      %p292 = scmp.eq.s32.totalorder %s30, 1
      %p293 = por %p291, %p292
      %p294 = scmp.ne.s32.totalorder %s286, %s289
      %p295 = scmp.eq.s32.totalorder %s30, 0
      %p296 = por %p294, %p295
      %p297 = scmp.ne.s32.totalorder %s286, %s289
      %p298 = scmp.eq.s32.totalorder %s35, 1
      %p299 = por %p297, %p298
      %p300 = scmp.ne.s32.totalorder %s289, %s290
      %p301 = scmp.eq.s32.totalorder %s35, 0
      %p302 = por %p300, %p301
      %p303 = scmp.ne.s32.totalorder %s289, %s290
      %p304 = scmp.eq.s32.totalorder %s36, 1
      %p305 = por %p303, %p304
      %p307 = scmp.ne.s32.totalorder %s290, %s306
      %p308 = scmp.eq.s32.totalorder %s36, 0
      %p309 = por %p307, %p308
      %p310 = scmp.le.s32.totalorder 1, %s30
      %p311 = scmp.lt.s32.totalorder %s30, 3
      %p312 = pnand %p310, %p311
      %p313 = pneg %p312
      // Predicated region
      $region9: #{tpu_custom_call.1} parent=5 // pred_check
        _
      $region10: #{tpu_custom_call.1} parent=5 // pred_check_branch
        %315 = sbr.rel (%p312) target = $region12
      $region11: #{tpu_custom_call.1} parent=5 // pred_region
        %s316 = ssub.s32 %s30, 1
        // Predicated region
        $region13: #{tpu_custom_call.1} parent=11 // pred_check
          %p317 = pneg %p129
        $region14: #{tpu_custom_call.1} parent=11 // pred_check_branch
          %319 = sbr.rel (%p317) target = $region16
        $region15: #{tpu_custom_call.1} parent=11 // pred_region
          %s321 = ssub.s32 256, 256
          %322 = vsyncadd [#allocation9], %s321
          %s323 = sshll.u32 [#allocation8], 4
          %s324 = int_to_ptr.vmem [resolvable:$true] %s323
          %329 = dma.hbm_to_vmem [thread:$0]  %s3, 256, %s324, [#allocation9], 64, 64, 4
        $region16: #{tpu_custom_call.1} parent=11 // pred_fallthru
          _
        // Predicated region
        $region17: #{tpu_custom_call.1} parent=11 // pred_check
          %p330 = pneg %p150
        $region18: #{tpu_custom_call.1} parent=11 // pred_check_branch
          %332 = sbr.rel (%p330) target = $region20
        $region19: #{tpu_custom_call.1} parent=11 // pred_region
          %s334 = ssub.s32 16, 16
          %335 = vsyncadd [#allocation9], %s334
          %s337 = sshll.u32 [#allocation10], 4
          %s338 = int_to_ptr.vmem [resolvable:$true] %s337
          %340 = dma.hbm_to_vmem [thread:$0]  %s4, 16, %s338, [#allocation9]
        $region20: #{tpu_custom_call.1} parent=11 // pred_fallthru
          _
        // Predicated region
        $region21: #{tpu_custom_call.1} parent=11 // pred_check
          %p341 = pneg %p171
        $region22: #{tpu_custom_call.1} parent=11 // pred_check_branch
          %343 = sbr.rel (%p341) target = $region24
        $region23: #{tpu_custom_call.1} parent=11 // pred_region
          %s345 = ssub.s32 256, 256
          %346 = vsyncadd [#allocation12], %s345
          %s347 = sshll.u32 [#allocation11], 4
          %s348 = int_to_ptr.vmem [resolvable:$true] %s347
          %353 = dma.hbm_to_vmem [thread:$0]  %s5, 256, %s348, [#allocation12], 64, 64, 4
        $region24: #{tpu_custom_call.1} parent=11 // pred_fallthru
          _
        // Predicated region
        $region25: #{tpu_custom_call.1} parent=11 // pred_check
          %p354 = pneg %p192
        $region26: #{tpu_custom_call.1} parent=11 // pred_check_branch
          %356 = sbr.rel (%p354) target = $region28
        $region27: #{tpu_custom_call.1} parent=11 // pred_region
          %s358 = ssub.s32 16, 16
          %359 = vsyncadd [#allocation12], %s358
          %s361 = sshll.u32 [#allocation13], 4
          %s362 = int_to_ptr.vmem [resolvable:$true] %s361
          %364 = dma.hbm_to_vmem [thread:$0]  %s6, 16, %s362, [#allocation12]
        $region28: #{tpu_custom_call.1} parent=11 // pred_fallthru
          _
        // Predicated region
        $region29: #{tpu_custom_call.1} parent=11 // pred_check
          %p365 = pneg %p213
        $region30: #{tpu_custom_call.1} parent=11 // pred_check_branch
          %367 = sbr.rel (%p365) target = $region32
        $region31: #{tpu_custom_call.1} parent=11 // pred_region
          %s369 = ssub.s32 256, 256
          %370 = vsyncadd [#allocation15], %s369
          %s371 = sshll.u32 [#allocation14], 4
          %s372 = int_to_ptr.vmem [resolvable:$true] %s371
          %377 = dma.hbm_to_vmem [thread:$0]  %s7, 256, %s372, [#allocation15], 64, 64, 4
        $region32: #{tpu_custom_call.1} parent=11 // pred_fallthru
          _
        // Predicated region
        $region33: #{tpu_custom_call.1} parent=11 // pred_check
          %p378 = pneg %p234
        $region34: #{tpu_custom_call.1} parent=11 // pred_check_branch
          %380 = sbr.rel (%p378) target = $region36
        $region35: #{tpu_custom_call.1} parent=11 // pred_region
          %s382 = ssub.s32 16, 16
          %383 = vsyncadd [#allocation15], %s382
          %s385 = sshll.u32 [#allocation16], 4
          %s386 = int_to_ptr.vmem [resolvable:$true] %s385
          %388 = dma.hbm_to_vmem [thread:$0]  %s8, 16, %s386, [#allocation15]
        $region36: #{tpu_custom_call.1} parent=11 // pred_fallthru
          _
        // Predicated region
        $region37: #{tpu_custom_call.1} parent=11 // pred_check
          %p389 = pneg %p255
        $region38: #{tpu_custom_call.1} parent=11 // pred_check_branch
          %391 = sbr.rel (%p389) target = $region40
        $region39: #{tpu_custom_call.1} parent=11 // pred_region
          %s393 = ssub.s32 256, 256
          %394 = vsyncadd [#allocation18], %s393
          %s395 = sshll.u32 [#allocation17], 4
          %s396 = int_to_ptr.vmem [resolvable:$true] %s395
          %401 = dma.hbm_to_vmem [thread:$0]  %s9, 256, %s396, [#allocation18], 64, 64, 4
        $region40: #{tpu_custom_call.1} parent=11 // pred_fallthru
          _
        // Predicated region
        $region41: #{tpu_custom_call.1} parent=11 // pred_check
          %p402 = pneg %p276
        $region42: #{tpu_custom_call.1} parent=11 // pred_check_branch
          %404 = sbr.rel (%p402) target = $region44
        $region43: #{tpu_custom_call.1} parent=11 // pred_region
          %s406 = ssub.s32 16, 16
          %407 = vsyncadd [#allocation18], %s406
          %s409 = sshll.u32 [#allocation19], 4
          %s410 = int_to_ptr.vmem [resolvable:$true] %s409
          %412 = dma.hbm_to_vmem [thread:$0]  %s10, 16, %s410, [#allocation18]
        $region44: #{tpu_custom_call.1} parent=11 // pred_fallthru
          _
      $region12: #{tpu_custom_call.1} parent=5 // pred_fallthru
        _
      %p413 = scmp.lt.s32.totalorder %s30, 2
      // Predicated region
      $region45: #{tpu_custom_call.1} parent=5 // pred_check
        %p414 = pneg %p413
      $region46: #{tpu_custom_call.1} parent=5 // pred_check_branch
        %416 = sbr.rel (%p414) target = $region48
      $region47: #{tpu_custom_call.1} parent=5 // pred_region
        // Predicated region
        $region49: #{tpu_custom_call.1} parent=47 // pred_check
          %p417 = pneg %p50
        $region50: #{tpu_custom_call.1} parent=47 // pred_check_branch
          %419 = sbr.rel (%p417) target = $region52
        $region51: #{tpu_custom_call.1} parent=47 // pred_region
          %s420 = sand.u32 %s40, 1
          %s421 = scalar_lea.sflag [#allocation3], %s420
          %s422 = sand.u32 %s40, 1
          %s423 = smul.addr %s422, 32
          %s424 = scalar_lea.vmem [#allocation2], %s423
          %s425 = smul.u32 4, %s30
          %s427 = ssub.s32 512, 512
          %428 = vsyncadd %s421, %s427
          %s429 = smul.addr %s425, 128
          %s430 = scalar_lea.hbm %s0, %s429
          %s431 = sshll.u32 %s424, 4
          %s432 = int_to_ptr.vmem [resolvable:$true] %s431
          %437 = dma.hbm_to_vmem [thread:$0]  %s430, 512, %s432, %s421, 128, 128, 8
        $region52: #{tpu_custom_call.1} parent=47 // pred_fallthru
          _
        // Predicated region
        $region53: #{tpu_custom_call.1} parent=47 // pred_check
          %p438 = pneg %p76
        $region54: #{tpu_custom_call.1} parent=47 // pred_check_branch
          %440 = sbr.rel (%p438) target = $region56
        $region55: #{tpu_custom_call.1} parent=47 // pred_region
          %s441 = sand.u32 %s30, 1
          %s442 = scalar_lea.sflag [#allocation6], %s441
          %s443 = sand.u32 %s66, 1
          %s444 = smul.addr %s443, 32
          %s445 = scalar_lea.vmem [#allocation5], %s444
          %s446 = smul.u32 4, %s30
          %s448 = ssub.s32 512, 512
          %449 = vsyncadd %s442, %s448
          %s450 = smul.addr %s446, 128
          %s451 = scalar_lea.hbm %s1, %s450
          %s452 = sshll.u32 %s445, 4
          %s453 = int_to_ptr.vmem [resolvable:$true] %s452
          %458 = dma.hbm_to_vmem [thread:$0]  %s451, 512, %s453, %s442, 128, 128, 8
        $region56: #{tpu_custom_call.1} parent=47 // pred_fallthru
          _
        // Predicated region
        $region57: #{tpu_custom_call.1} parent=47 // pred_check
          %p459 = pneg %p102
        $region58: #{tpu_custom_call.1} parent=47 // pred_check_branch
          %461 = sbr.rel (%p459) target = $region60
        $region59: #{tpu_custom_call.1} parent=47 // pred_region
          %s462 = sand.u32 %s30, 1
          %s463 = scalar_lea.sflag [#allocation6], %s462
          %s464 = sand.u32 %s92, 1
          %s465 = smul.addr %s464, 32
          %s466 = scalar_lea.vmem [#allocation7], %s465
          %s467 = smul.u32 4, %s30
          %s469 = ssub.s32 512, 512
          %470 = vsyncadd %s463, %s469
          %s471 = smul.addr %s467, 128
          %s472 = scalar_lea.hbm %s2, %s471
          %s473 = sshll.u32 %s466, 4
          %s474 = int_to_ptr.vmem [resolvable:$true] %s473
          %479 = dma.hbm_to_vmem [thread:$0]  %s472, 512, %s474, %s463, 128, 128, 8
        $region60: #{tpu_custom_call.1} parent=47 // pred_fallthru
          _
      $region48: #{tpu_custom_call.1} parent=5 // pred_fallthru
        _
      %p480 = scmp.le.s32.totalorder 1, %s30
      %p481 = scmp.lt.s32.totalorder %s30, 3
      %p482 = pnand %p480, %p481
      %p483 = pneg %p482
      // Predicated region
      $region61: #{tpu_custom_call.1} parent=5 // pred_check
        _
      $region62: #{tpu_custom_call.1} parent=5 // pred_check_branch
        %485 = sbr.rel (%p482) target = $region64
      $region63: #{tpu_custom_call.1} parent=5 // pred_region
        %s486 = ssub.s32 %s30, 1
        %s487 = sand.u32 %s43, 1
        %s488 = scalar_lea.sflag [#allocation3], %s487
        %s489 = sand.u32 %s43, 1
        %s490 = smul.addr %s489, 32
        %s491 = scalar_lea.vmem [#allocation2], %s490
        // Predicated region
        $region65: #{tpu_custom_call.1} parent=63 // pred_check
          %p492 = pneg %p56
        $region66: #{tpu_custom_call.1} parent=63 // pred_check_branch
          %494 = sbr.rel (%p492) target = $region68
        $region67: #{tpu_custom_call.1} parent=63 // pred_region
          %495 = dma.done %s488, 512
        $region68: #{tpu_custom_call.1} parent=63 // pred_fallthru
          _
        %s496 = sand.u32 %s35, 1
        %s497 = scalar_lea.sflag [#allocation6], %s496
        %s498 = sand.u32 %s69, 1
        %s499 = smul.addr %s498, 32
        %s500 = scalar_lea.vmem [#allocation5], %s499
        // Predicated region
        $region69: #{tpu_custom_call.1} parent=63 // pred_check
          %p501 = pneg %p82
        $region70: #{tpu_custom_call.1} parent=63 // pred_check_branch
          %503 = sbr.rel (%p501) target = $region72
        $region71: #{tpu_custom_call.1} parent=63 // pred_region
          %504 = dma.done %s497, 512
        $region72: #{tpu_custom_call.1} parent=63 // pred_fallthru
          _
        %s505 = sand.u32 %s35, 1
        %s506 = scalar_lea.sflag [#allocation6], %s505
        %s507 = sand.u32 %s95, 1
        %s508 = smul.addr %s507, 32
        %s509 = scalar_lea.vmem [#allocation7], %s508
        // Predicated region
        $region73: #{tpu_custom_call.1} parent=63 // pred_check
          %p510 = pneg %p108
        $region74: #{tpu_custom_call.1} parent=63 // pred_check_branch
          %512 = sbr.rel (%p510) target = $region76
        $region75: #{tpu_custom_call.1} parent=63 // pred_region
          %513 = dma.done %s506, 512
        $region76: #{tpu_custom_call.1} parent=63 // pred_fallthru
          _
        // Predicated region
        $region77: #{tpu_custom_call.1} parent=63 // pred_check
          %p514 = pneg %p129
        $region78: #{tpu_custom_call.1} parent=63 // pred_check_branch
          %516 = sbr.rel (%p514) target = $region80
        $region79: #{tpu_custom_call.1} parent=63 // pred_region
          %517 = dma.done [#allocation9], 256
        $region80: #{tpu_custom_call.1} parent=63 // pred_fallthru
          _
        // Predicated region
        $region81: #{tpu_custom_call.1} parent=63 // pred_check
          %p518 = pneg %p150
        $region82: #{tpu_custom_call.1} parent=63 // pred_check_branch
          %520 = sbr.rel (%p518) target = $region84
        $region83: #{tpu_custom_call.1} parent=63 // pred_region
          %521 = dma.done [#allocation9], 16
        $region84: #{tpu_custom_call.1} parent=63 // pred_fallthru
          _
        // Predicated region
        $region85: #{tpu_custom_call.1} parent=63 // pred_check
          %p522 = pneg %p171
        $region86: #{tpu_custom_call.1} parent=63 // pred_check_branch
          %524 = sbr.rel (%p522) target = $region88
        $region87: #{tpu_custom_call.1} parent=63 // pred_region
          %525 = dma.done [#allocation12], 256
        $region88: #{tpu_custom_call.1} parent=63 // pred_fallthru
          _
        // Predicated region
        $region89: #{tpu_custom_call.1} parent=63 // pred_check
          %p526 = pneg %p192
        $region90: #{tpu_custom_call.1} parent=63 // pred_check_branch
          %528 = sbr.rel (%p526) target = $region92
        $region91: #{tpu_custom_call.1} parent=63 // pred_region
          %529 = dma.done [#allocation12], 16
        $region92: #{tpu_custom_call.1} parent=63 // pred_fallthru
          _
        // Predicated region
        $region93: #{tpu_custom_call.1} parent=63 // pred_check
          %p530 = pneg %p213
        $region94: #{tpu_custom_call.1} parent=63 // pred_check_branch
          %532 = sbr.rel (%p530) target = $region96
        $region95: #{tpu_custom_call.1} parent=63 // pred_region
          %533 = dma.done [#allocation15], 256
        $region96: #{tpu_custom_call.1} parent=63 // pred_fallthru
          _
        // Predicated region
        $region97: #{tpu_custom_call.1} parent=63 // pred_check
          %p534 = pneg %p234
        $region98: #{tpu_custom_call.1} parent=63 // pred_check_branch
          %536 = sbr.rel (%p534) target = $region100
        $region99: #{tpu_custom_call.1} parent=63 // pred_region
          %537 = dma.done [#allocation15], 16
        $region100: #{tpu_custom_call.1} parent=63 // pred_fallthru
          _
        // Predicated region
        $region101: #{tpu_custom_call.1} parent=63 // pred_check
          %p538 = pneg %p255
        $region102: #{tpu_custom_call.1} parent=63 // pred_check_branch
          %540 = sbr.rel (%p538) target = $region104
        $region103: #{tpu_custom_call.1} parent=63 // pred_region
          %541 = dma.done [#allocation18], 256
        $region104: #{tpu_custom_call.1} parent=63 // pred_fallthru
          _
        // Predicated region
        $region105: #{tpu_custom_call.1} parent=63 // pred_check
          %p542 = pneg %p276
        $region106: #{tpu_custom_call.1} parent=63 // pred_check_branch
          %544 = sbr.rel (%p542) target = $region108
        $region107: #{tpu_custom_call.1} parent=63 // pred_region
          %545 = dma.done [#allocation18], 16
        $region108: #{tpu_custom_call.1} parent=63 // pred_fallthru
          _
        %s546 = sand.u32 %s43, 1
        %s547 = scalar_lea.sflag [#allocation3], %s546
        %s548 = sand.u32 %s43, 1
        %s549 = smul.addr %s548, 32
        %s550 = scalar_lea.vmem [#allocation2], %s549
        %p551 = pneg %p56
        %p552 = pneg %p53
        %s553 = sand.u32 %s35, 1
        %s554 = scalar_lea.sflag [#allocation6], %s553
        %s555 = sand.u32 %s69, 1
        %s556 = smul.addr %s555, 32
        %s557 = scalar_lea.vmem [#allocation5], %s556
        %p558 = pneg %p82
        %p559 = pneg %p79
        %s560 = sand.u32 %s35, 1
        %s561 = scalar_lea.sflag [#allocation6], %s560
        %s562 = sand.u32 %s95, 1
        %s563 = smul.addr %s562, 32
        %s564 = scalar_lea.vmem [#allocation7], %s563
        %p565 = pneg %p108
        %p566 = pneg %p105
        %p567 = pneg %p129
        %p568 = pneg %p126
        %p569 = pneg %p150
        %p570 = pneg %p147
        %p571 = pneg %p171
        %p572 = pneg %p168
        %p573 = pneg %p192
        %p574 = pneg %p189
        %p575 = pneg %p213
        %p576 = pneg %p210
        %p577 = pneg %p234
        %p578 = pneg %p231
        %p579 = pneg %p255
        %p580 = pneg %p252
        %p581 = pneg %p276
        %p582 = pneg %p273
        %p583 = pneg %p302
        %p584 = pneg %p299
        %s585 = sand.u32 %s289, 1
        %s586 = scalar_lea.sflag [#allocation4], %s585
        %s587 = sand.u32 %s289, 1
        %s588 = smul.addr %s587, 32
        %s589 = scalar_lea.vmem [#allocation20], %s588
        %s590 = smul.u32 4, %s35
        %s591 = smul.u32 4, %s35
        %s592 = smul.u32 4, %s35
        %s593 = smul.u32 4, %s35
        %v595 = vld [vmem:[%s491] sm:$0xff]
        %v596 = vld [vmem:[%s491 + $0x8] sm:$0xff]
        %v597 = vld [vmem:[%s491 + $0x10] sm:$0xff]
        %v598 = vld [vmem:[%s491 + $0x18] sm:$0xff]
        %v599 = vpack.c.bf16 %v596, %v595
        %v600 = vpack.c.bf16 %v598, %v597
        %v601 = vld [vmem:[%s500] sm:$0xff]
        %v602 = vld [vmem:[%s500 + $0x8] sm:$0xff]
        %v603 = vld [vmem:[%s500 + $0x10] sm:$0xff]
        %v604 = vld [vmem:[%s500 + $0x18] sm:$0xff]
        %v605 = vpack.c.bf16 %v602, %v601
        %v606 = vpack.c.bf16 %v604, %v603
        %v607 = vld [vmem:[%s509] sm:$0xff]
        %v608 = vld [vmem:[%s509 + $0x8] sm:$0xff]
        %v609 = vld [vmem:[%s509 + $0x10] sm:$0xff]
        %v610 = vld [vmem:[%s509 + $0x18] sm:$0xff]
        %v611 = vpack.c.bf16 %v608, %v607
        %v612 = vpack.c.bf16 %v610, %v609
        %v613 = vld [vmem:[#allocation8] sm:$0xf]
        %v614 = vld [vmem:[#allocation8 + $0x4] sm:$0xf]
        %v615 = vld [vmem:[#allocation8 + $0x8] sm:$0xf]
        %v616 = vld [vmem:[#allocation8 + $0xc] sm:$0xf]
        %v617 = vld [vmem:[#allocation10] sm:$0x1]
        %v619 = vlaneseq
        %v620 = vshrl.u32 %v619, 7
        %v621 = vsub.s32 0, %v620
        %v622 = vrot.slane %v617, %v621
        %v628 = vunpack.c.l.b16 %v613
        %v629 = vunpack.c.l.b16 %v614
        %v630 = vunpack.c.l.b16 %v615
        %v631 = vunpack.c.l.b16 %v616
        %v632 = vpack.c.b16 %v629, %v628
        %v633 = vpack.c.b16 %v631, %v630
        %vm636 = vcmask 261120
        %v638 = vsel %vm636, %v599, 0
        %v641 = vsel %vm636, %v600, 0
        %643 = vmatprep.subr.bf16.mxu0 0
        %644 = vmatpush1.bf16.msra.mxu0 %v632
        %645 = vmatprep.subr.bf16.mxu0 0
        %646 = vmatpush1.bf16.msra.mxu0 %v633
        %647 = vmatprep.subr.bf16.mxu0 0
        %648 = vmatpush1.bf16.msra.mxu0 0
        %649 = vmatprep.subr.bf16.mxu0 0
        %650 = vmatpush1.bf16.msra.mxu0 0
        %651 = vmatprep.subr.bf16.mxu0 0
        %652 = vmatpush1.bf16.msra.mxu0 0
        %653 = vmatprep.subr.bf16.mxu0 0
        %654 = vmatpush1.bf16.msra.mxu0 0
        %655 = vmatprep.subr.bf16.mxu0 0
        %656 = vmatpush1.bf16.msra.mxu0 0
        %657 = vmatprep.subr.bf16.mxu0 0
        %658 = vmatpush1.bf16.msra.mxu0 0
        %659 = vmatprep.subr.bf16.mxu0 0
        %660 = vmatpush1.bf16.msra.mxu0 0
        %661 = vmatprep.subr.bf16.mxu0 0
        %662 = vmatpush1.bf16.msra.mxu0 0
        %663 = vmatprep.subr.bf16.mxu0 0
        %664 = vmatpush1.bf16.msra.mxu0 0
        %665 = vmatprep.subr.bf16.mxu0 0
        %666 = vmatpush1.bf16.msra.mxu0 0
        %667 = vmatprep.subr.bf16.mxu0 0
        %668 = vmatpush1.bf16.msra.mxu0 0
        %669 = vmatprep.subr.bf16.mxu0 0
        %670 = vmatpush1.bf16.msra.mxu0 0
        %671 = vmatprep.subr.bf16.mxu0 0
        %672 = vmatpush1.bf16.msra.mxu0 0
        %673 = vmatprep.subr.bf16.mxu0 0
        %674 = vmatpush1.bf16.msra.mxu0 0
        %675 = vmatprep.mubr.bf16.mxu0 0
        %676 = vmatmul.mubr.bf16.gmra.mrb[0].mxu0 %v638
        %v677 = vpop.f32.mrb[0].mxu0
        %v678 = vadd.f32 %v622, %v677
        %v679 = vpop.f32.mrb[0].mxu0
        %v680 = vpop.f32.mrb[0].mxu0
        %v681 = vadd.f32 %v622, %v680
        %v682 = vpop.f32.mrb[0].mxu0
        %683 = vmatprep.mubr.bf16.mxu0 0
        %684 = vmatmul.mubr.bf16.gmra.mrb[0].mxu0 %v641
        %v685 = vpop.f32.mrb[0].mxu0
        %v686 = vadd.f32 %v622, %v685
        %v687 = vpop.f32.mrb[0].mxu0
        %v688 = vpop.f32.mrb[0].mxu0
        %v689 = vadd.f32 %v622, %v688
        %v690 = vpop.f32.mrb[0].mxu0
        %691 = vdwg.mxu0
        %v692 = vld [vmem:[#allocation11] sm:$0xf]
        %v693 = vld [vmem:[#allocation11 + $0x4] sm:$0xf]
        %v694 = vld [vmem:[#allocation11 + $0x8] sm:$0xf]
        %v695 = vld [vmem:[#allocation11 + $0xc] sm:$0xf]
        %v696 = vld [vmem:[#allocation13] sm:$0x1]
        %v698 = vlaneseq
        %v699 = vshrl.u32 %v698, 7
        %v700 = vsub.s32 0, %v699
        %v701 = vrot.slane %v696, %v700
        %v707 = vunpack.c.l.b16 %v692
        %v708 = vunpack.c.l.b16 %v693
        %v709 = vunpack.c.l.b16 %v694
        %v710 = vunpack.c.l.b16 %v695
        %v711 = vpack.c.b16 %v708, %v707
        %v712 = vpack.c.b16 %v710, %v709
        %v716 = vsel %vm636, %v605, 0
        %v719 = vsel %vm636, %v606, 0
        %721 = vmatprep.subr.bf16.mxu0 0
        %722 = vmatpush1.bf16.msra.mxu0 %v711
        %723 = vmatprep.subr.bf16.mxu0 0
        %724 = vmatpush1.bf16.msra.mxu0 %v712
        %725 = vmatprep.subr.bf16.mxu0 0
        %726 = vmatpush1.bf16.msra.mxu0 0
        %727 = vmatprep.subr.bf16.mxu0 0
        %728 = vmatpush1.bf16.msra.mxu0 0
        %729 = vmatprep.subr.bf16.mxu0 0
        %730 = vmatpush1.bf16.msra.mxu0 0
        %731 = vmatprep.subr.bf16.mxu0 0
        %732 = vmatpush1.bf16.msra.mxu0 0
        %733 = vmatprep.subr.bf16.mxu0 0
        %734 = vmatpush1.bf16.msra.mxu0 0
        %735 = vmatprep.subr.bf16.mxu0 0
        %736 = vmatpush1.bf16.msra.mxu0 0
        %737 = vmatprep.subr.bf16.mxu0 0
        %738 = vmatpush1.bf16.msra.mxu0 0
        %739 = vmatprep.subr.bf16.mxu0 0
        %740 = vmatpush1.bf16.msra.mxu0 0
        %741 = vmatprep.subr.bf16.mxu0 0
        %742 = vmatpush1.bf16.msra.mxu0 0
        %743 = vmatprep.subr.bf16.mxu0 0
        %744 = vmatpush1.bf16.msra.mxu0 0
        %745 = vmatprep.subr.bf16.mxu0 0
        %746 = vmatpush1.bf16.msra.mxu0 0
        %747 = vmatprep.subr.bf16.mxu0 0
        %748 = vmatpush1.bf16.msra.mxu0 0
        %749 = vmatprep.subr.bf16.mxu0 0
        %750 = vmatpush1.bf16.msra.mxu0 0
        %751 = vmatprep.subr.bf16.mxu0 0
        %752 = vmatpush1.bf16.msra.mxu0 0
        %753 = vmatprep.mubr.bf16.mxu0 0
        %754 = vmatmul.mubr.bf16.gmra.mrb[0].mxu0 %v716
        %v755 = vpop.f32.mrb[0].mxu0
        %v756 = vadd.f32 %v701, %v755
        %v757 = vpop.f32.mrb[0].mxu0
        %v758 = vpop.f32.mrb[0].mxu0
        %v759 = vadd.f32 %v701, %v758
        %v760 = vpop.f32.mrb[0].mxu0
        %761 = vmatprep.mubr.bf16.mxu0 0
        %762 = vmatmul.mubr.bf16.gmra.mrb[0].mxu0 %v719
        %v763 = vpop.f32.mrb[0].mxu0
        %v764 = vadd.f32 %v701, %v763
        %v765 = vpop.f32.mrb[0].mxu0
        %v766 = vpop.f32.mrb[0].mxu0
        %v767 = vadd.f32 %v701, %v766
        %v768 = vpop.f32.mrb[0].mxu0
        %769 = vdwg.mxu0
        %v770 = vld [vmem:[#allocation14] sm:$0xf]
        %v771 = vld [vmem:[#allocation14 + $0x4] sm:$0xf]
        %v772 = vld [vmem:[#allocation14 + $0x8] sm:$0xf]
        %v773 = vld [vmem:[#allocation14 + $0xc] sm:$0xf]
        %v774 = vld [vmem:[#allocation16] sm:$0x1]
        %v776 = vlaneseq
        %v777 = vshrl.u32 %v776, 7
        %v778 = vsub.s32 0, %v777
        %v779 = vrot.slane %v774, %v778
        %v785 = vunpack.c.l.b16 %v770
        %v786 = vunpack.c.l.b16 %v771
        %v787 = vunpack.c.l.b16 %v772
        %v788 = vunpack.c.l.b16 %v773
        %v789 = vpack.c.b16 %v786, %v785
        %v790 = vpack.c.b16 %v788, %v787
        %v794 = vsel %vm636, %v611, 0
        %v797 = vsel %vm636, %v612, 0
        %799 = vmatprep.subr.bf16.mxu0 0
        %800 = vmatpush1.bf16.msra.mxu0 %v789
        %801 = vmatprep.subr.bf16.mxu0 0
        %802 = vmatpush1.bf16.msra.mxu0 %v790
        %803 = vmatprep.subr.bf16.mxu0 0
        %804 = vmatpush1.bf16.msra.mxu0 0
        %805 = vmatprep.subr.bf16.mxu0 0
        %806 = vmatpush1.bf16.msra.mxu0 0
        %807 = vmatprep.subr.bf16.mxu0 0
        %808 = vmatpush1.bf16.msra.mxu0 0
        %809 = vmatprep.subr.bf16.mxu0 0
        %810 = vmatpush1.bf16.msra.mxu0 0
        %811 = vmatprep.subr.bf16.mxu0 0
        %812 = vmatpush1.bf16.msra.mxu0 0
        %813 = vmatprep.subr.bf16.mxu0 0
        %814 = vmatpush1.bf16.msra.mxu0 0
        %815 = vmatprep.subr.bf16.mxu0 0
        %816 = vmatpush1.bf16.msra.mxu0 0
        %817 = vmatprep.subr.bf16.mxu0 0
        %818 = vmatpush1.bf16.msra.mxu0 0
        %819 = vmatprep.subr.bf16.mxu0 0
        %820 = vmatpush1.bf16.msra.mxu0 0
        %821 = vmatprep.subr.bf16.mxu0 0
        %822 = vmatpush1.bf16.msra.mxu0 0
        %823 = vmatprep.subr.bf16.mxu0 0
        %824 = vmatpush1.bf16.msra.mxu0 0
        %825 = vmatprep.subr.bf16.mxu0 0
        %826 = vmatpush1.bf16.msra.mxu0 0
        %827 = vmatprep.subr.bf16.mxu0 0
        %828 = vmatpush1.bf16.msra.mxu0 0
        %829 = vmatprep.subr.bf16.mxu0 0
        %830 = vmatpush1.bf16.msra.mxu0 0
        %831 = vmatprep.mubr.bf16.mxu0 0
        %832 = vmatmul.mubr.bf16.gmra.mrb[0].mxu0 %v794
        %v833 = vpop.f32.mrb[0].mxu0
        %v834 = vadd.f32 %v779, %v833
        %v835 = vpop.f32.mrb[0].mxu0
        %v836 = vpop.f32.mrb[0].mxu0
        %v837 = vadd.f32 %v779, %v836
        %v838 = vpop.f32.mrb[0].mxu0
        %839 = vmatprep.mubr.bf16.mxu0 0
        %840 = vmatmul.mubr.bf16.gmra.mrb[0].mxu0 %v797
        %v841 = vpop.f32.mrb[0].mxu0
        %v842 = vadd.f32 %v779, %v841
        %v843 = vpop.f32.mrb[0].mxu0
        %v844 = vpop.f32.mrb[0].mxu0
        %v845 = vadd.f32 %v779, %v844
        %v846 = vpop.f32.mrb[0].mxu0
        %847 = vdwg.mxu0
        %v848 = vpack.c.bf16 %v678, %v678
        %v849 = vpack.c.bf16 %v681, %v681
        %v850 = vpack.c.bf16 %v686, %v686
        %v851 = vpack.c.bf16 %v689, %v689
        %v852 = vpack.c.bf16 %v756, %v756
        %v853 = vpack.c.bf16 %v759, %v759
        %v854 = vpack.c.bf16 %v764, %v764
        %v855 = vpack.c.bf16 %v767, %v767
        %v856 = vpack.c.bf16 %v834, %v834
        %v857 = vpack.c.bf16 %v837, %v837
        %v858 = vpack.c.bf16 %v842, %v842
        %v859 = vpack.c.bf16 %v845, %v845
        %vm860 = vcmask 64512
        %v862 = vsel %vm860, %v848, 0
        %v865 = vsel %vm860, %v852, 0
        %867 = vmatprep.subr.bf16.mxu0 0
        %868 = vmatpush1.bf16.xpose.msra.mxu0 %v865
        %869 = vmatprep.subr.bf16.mxu0 0
        %870 = vmatpush1.bf16.xpose.msra.mxu0 0
        %871 = vmatprep.subr.bf16.mxu0 0
        %872 = vmatpush1.bf16.xpose.msra.mxu0 0
        %873 = vmatprep.subr.bf16.mxu0 0
        %874 = vmatpush1.bf16.xpose.msra.mxu0 0
        %875 = vmatprep.subr.bf16.mxu0 0
        %876 = vmatpush1.bf16.xpose.msra.mxu0 0
        %877 = vmatprep.subr.bf16.mxu0 0
        %878 = vmatpush1.bf16.xpose.msra.mxu0 0
        %879 = vmatprep.subr.bf16.mxu0 0
        %880 = vmatpush1.bf16.xpose.msra.mxu0 0
        %881 = vmatprep.subr.bf16.mxu0 0
        %882 = vmatpush1.bf16.xpose.msra.mxu0 0
        %883 = vmatprep.subr.bf16.mxu0 0
        %884 = vmatpush1.bf16.xpose.msra.mxu0 0
        %885 = vmatprep.subr.bf16.mxu0 0
        %886 = vmatpush1.bf16.xpose.msra.mxu0 0
        %887 = vmatprep.subr.bf16.mxu0 0
        %888 = vmatpush1.bf16.xpose.msra.mxu0 0
        %889 = vmatprep.subr.bf16.mxu0 0
        %890 = vmatpush1.bf16.xpose.msra.mxu0 0
        %891 = vmatprep.subr.bf16.mxu0 0
        %892 = vmatpush1.bf16.xpose.msra.mxu0 0
        %893 = vmatprep.subr.bf16.mxu0 0
        %894 = vmatpush1.bf16.xpose.msra.mxu0 0
        %895 = vmatprep.subr.bf16.mxu0 0
        %896 = vmatpush1.bf16.xpose.msra.mxu0 0
        %897 = vmatprep.subr.bf16.mxu0 0
        %898 = vmatpush1.bf16.xpose.msra.mxu0 0
        %899 = vmatprep.mubr.bf16.mxu0 0
        %900 = vmatmul.mubr.bf16.gmra.mrb[0].mxu0 %v862
        %v901 = vpop.f32.mrb[0].mxu0
        %v902 = vadd.f32 0.0, %v901
        %v903 = vpop.f32.mrb[0].mxu0
        %v904 = vpop.f32.mrb[0].mxu0
        %v905 = vpop.f32.mrb[0].mxu0
        %906 = vdwg.mxu0
        %v908 = vsel %vm860, %v849, 0
        %v911 = vsel %vm860, %v853, 0
        %913 = vmatprep.subr.bf16.mxu0 0
        %914 = vmatpush1.bf16.xpose.msra.mxu0 %v911
        %915 = vmatprep.subr.bf16.mxu0 0
        %916 = vmatpush1.bf16.xpose.msra.mxu0 0
        %917 = vmatprep.subr.bf16.mxu0 0
        %918 = vmatpush1.bf16.xpose.msra.mxu0 0
        %919 = vmatprep.subr.bf16.mxu0 0
        %920 = vmatpush1.bf16.xpose.msra.mxu0 0
        %921 = vmatprep.subr.bf16.mxu0 0
        %922 = vmatpush1.bf16.xpose.msra.mxu0 0
        %923 = vmatprep.subr.bf16.mxu0 0
        %924 = vmatpush1.bf16.xpose.msra.mxu0 0
        %925 = vmatprep.subr.bf16.mxu0 0
        %926 = vmatpush1.bf16.xpose.msra.mxu0 0
        %927 = vmatprep.subr.bf16.mxu0 0
        %928 = vmatpush1.bf16.xpose.msra.mxu0 0
        %929 = vmatprep.subr.bf16.mxu0 0
        %930 = vmatpush1.bf16.xpose.msra.mxu0 0
        %931 = vmatprep.subr.bf16.mxu0 0
        %932 = vmatpush1.bf16.xpose.msra.mxu0 0
        %933 = vmatprep.subr.bf16.mxu0 0
        %934 = vmatpush1.bf16.xpose.msra.mxu0 0
        %935 = vmatprep.subr.bf16.mxu0 0
        %936 = vmatpush1.bf16.xpose.msra.mxu0 0
        %937 = vmatprep.subr.bf16.mxu0 0
        %938 = vmatpush1.bf16.xpose.msra.mxu0 0
        %939 = vmatprep.subr.bf16.mxu0 0
        %940 = vmatpush1.bf16.xpose.msra.mxu0 0
        %941 = vmatprep.subr.bf16.mxu0 0
        %942 = vmatpush1.bf16.xpose.msra.mxu0 0
        %943 = vmatprep.subr.bf16.mxu0 0
        %944 = vmatpush1.bf16.xpose.msra.mxu0 0
        %945 = vmatprep.mubr.bf16.mxu0 0
        %946 = vmatmul.mubr.bf16.gmra.mrb[0].mxu0 %v908
        %v947 = vpop.f32.mrb[0].mxu0
        %v948 = vadd.f32 0.0, %v947
        %v949 = vpop.f32.mrb[0].mxu0
        %v950 = vpop.f32.mrb[0].mxu0
        %v951 = vpop.f32.mrb[0].mxu0
        %952 = vdwg.mxu0
        %v954 = vsel %vm860, %v850, 0
        %v957 = vsel %vm860, %v854, 0
        %959 = vmatprep.subr.bf16.mxu0 0
        %960 = vmatpush1.bf16.xpose.msra.mxu0 %v957
        %961 = vmatprep.subr.bf16.mxu0 0
        %962 = vmatpush1.bf16.xpose.msra.mxu0 0
        %963 = vmatprep.subr.bf16.mxu0 0
        %964 = vmatpush1.bf16.xpose.msra.mxu0 0
        %965 = vmatprep.subr.bf16.mxu0 0
        %966 = vmatpush1.bf16.xpose.msra.mxu0 0
        %967 = vmatprep.subr.bf16.mxu0 0
        %968 = vmatpush1.bf16.xpose.msra.mxu0 0
        %969 = vmatprep.subr.bf16.mxu0 0
        %970 = vmatpush1.bf16.xpose.msra.mxu0 0
        %971 = vmatprep.subr.bf16.mxu0 0
        %972 = vmatpush1.bf16.xpose.msra.mxu0 0
        %973 = vmatprep.subr.bf16.mxu0 0
        %974 = vmatpush1.bf16.xpose.msra.mxu0 0
        %975 = vmatprep.subr.bf16.mxu0 0
        %976 = vmatpush1.bf16.xpose.msra.mxu0 0
        %977 = vmatprep.subr.bf16.mxu0 0
        %978 = vmatpush1.bf16.xpose.msra.mxu0 0
        %979 = vmatprep.subr.bf16.mxu0 0
        %980 = vmatpush1.bf16.xpose.msra.mxu0 0
        %981 = vmatprep.subr.bf16.mxu0 0
        %982 = vmatpush1.bf16.xpose.msra.mxu0 0
        %983 = vmatprep.subr.bf16.mxu0 0
        %984 = vmatpush1.bf16.xpose.msra.mxu0 0
        %985 = vmatprep.subr.bf16.mxu0 0
        %986 = vmatpush1.bf16.xpose.msra.mxu0 0
        %987 = vmatprep.subr.bf16.mxu0 0
        %988 = vmatpush1.bf16.xpose.msra.mxu0 0
        %989 = vmatprep.subr.bf16.mxu0 0
        %990 = vmatpush1.bf16.xpose.msra.mxu0 0
        %991 = vmatprep.mubr.bf16.mxu0 0
        %992 = vmatmul.mubr.bf16.gmra.mrb[0].mxu0 %v954
        %v993 = vpop.f32.mrb[0].mxu0
        %v994 = vadd.f32 0.0, %v993
        %v995 = vpop.f32.mrb[0].mxu0
        %v996 = vpop.f32.mrb[0].mxu0
        %v997 = vpop.f32.mrb[0].mxu0
        %998 = vdwg.mxu0
        %v1000 = vsel %vm860, %v851, 0
        %v1003 = vsel %vm860, %v855, 0
        %1005 = vmatprep.subr.bf16.mxu0 0
        %1006 = vmatpush1.bf16.xpose.msra.mxu0 %v1003
        %1007 = vmatprep.subr.bf16.mxu0 0
        %1008 = vmatpush1.bf16.xpose.msra.mxu0 0
        %1009 = vmatprep.subr.bf16.mxu0 0
        %1010 = vmatpush1.bf16.xpose.msra.mxu0 0
        %1011 = vmatprep.subr.bf16.mxu0 0
        %1012 = vmatpush1.bf16.xpose.msra.mxu0 0
        %1013 = vmatprep.subr.bf16.mxu0 0
        %1014 = vmatpush1.bf16.xpose.msra.mxu0 0
        %1015 = vmatprep.subr.bf16.mxu0 0
        %1016 = vmatpush1.bf16.xpose.msra.mxu0 0
        %1017 = vmatprep.subr.bf16.mxu0 0
        %1018 = vmatpush1.bf16.xpose.msra.mxu0 0
        %1019 = vmatprep.subr.bf16.mxu0 0
        %1020 = vmatpush1.bf16.xpose.msra.mxu0 0
        %1021 = vmatprep.subr.bf16.mxu0 0
        %1022 = vmatpush1.bf16.xpose.msra.mxu0 0
        %1023 = vmatprep.subr.bf16.mxu0 0
        %1024 = vmatpush1.bf16.xpose.msra.mxu0 0
        %1025 = vmatprep.subr.bf16.mxu0 0
        %1026 = vmatpush1.bf16.xpose.msra.mxu0 0
        %1027 = vmatprep.subr.bf16.mxu0 0
        %1028 = vmatpush1.bf16.xpose.msra.mxu0 0
        %1029 = vmatprep.subr.bf16.mxu0 0
        %1030 = vmatpush1.bf16.xpose.msra.mxu0 0
        %1031 = vmatprep.subr.bf16.mxu0 0
        %1032 = vmatpush1.bf16.xpose.msra.mxu0 0
        %1033 = vmatprep.subr.bf16.mxu0 0
        %1034 = vmatpush1.bf16.xpose.msra.mxu0 0
        %1035 = vmatprep.subr.bf16.mxu0 0
        %1036 = vmatpush1.bf16.xpose.msra.mxu0 0
        %1037 = vmatprep.mubr.bf16.mxu0 0
        %1038 = vmatmul.mubr.bf16.gmra.mrb[0].mxu0 %v1000
        %v1039 = vpop.f32.mrb[0].mxu0
        %v1040 = vadd.f32 0.0, %v1039
        %v1041 = vpop.f32.mrb[0].mxu0
        %v1042 = vpop.f32.mrb[0].mxu0
        %v1043 = vpop.f32.mrb[0].mxu0
        %1044 = vdwg.mxu0
        %v1045 = vmul.f32 %v902, 0.35355338
        %v1046 = vmul.f32 %v948, 0.35355338
        %v1047 = vmul.f32 %v994, 0.35355338
        %v1048 = vmul.f32 %v1040, 0.35355338
        %v1049 = vsel %vm860, %v1045, -inf
        %1050 = vmax.xlane.f32.xlu0 %v1049
        %v1051 = vpop.xlane.xlu0 %1050
        %v1052 = vsel %vm860, %v1046, -inf
        %1053 = vmax.xlane.f32.xlu0 %v1052
        %v1054 = vpop.xlane.xlu0 %1053
        %v1055 = vsel %vm860, %v1047, -inf
        %1056 = vmax.xlane.f32.xlu0 %v1055
        %v1057 = vpop.xlane.xlu0 %1056
        %v1058 = vsel %vm860, %v1048, -inf
        %1059 = vmax.xlane.f32.xlu0 %v1058
        %v1060 = vpop.xlane.xlu0 %1059
        %v1061 = vsub.f32 %v1045, %v1051
        %v1062 = vsub.f32 %v1046, %v1054
        %v1063 = vsub.f32 %v1047, %v1057
        %v1064 = vsub.f32 %v1048, %v1060
        %v1065 = vmul.f32 %v1061, 1.442695
        %v1066 = vpow.pop %v1065
        %v1067 = vmul.f32 %v1062, 1.442695
        %v1068 = vpow.pop %v1067
        %v1069 = vmul.f32 %v1063, 1.442695
        %v1070 = vpow.pop %v1069
        %v1071 = vmul.f32 %v1064, 1.442695
        %v1072 = vpow.pop %v1071
        %v1073 = vsel %vm860, %v1066, 0.0
        %1074 = vadd.xlane.f32.xlu0 %v1073
        %v1075 = vpop.xlane.xlu0 %1074
        %v1076 = vsel %vm860, %v1068, 0.0
        %1077 = vadd.xlane.f32.xlu0 %v1076
        %v1078 = vpop.xlane.xlu0 %1077
        %v1079 = vsel %vm860, %v1070, 0.0
        %1080 = vadd.xlane.f32.xlu0 %v1079
        %v1081 = vpop.xlane.xlu0 %1080
        %v1082 = vsel %vm860, %v1072, 0.0
        %1083 = vadd.xlane.f32.xlu0 %v1082
        %v1084 = vpop.xlane.xlu0 %1083
        %v1085 = vrcp.pop %v1075
        %v1086 = vrcp.pop %v1078
        %v1087 = vrcp.pop %v1081
        %v1088 = vrcp.pop %v1084
        %v1089 = vmul.f32 %v1066, %v1085
        %v1090 = vmul.f32 %v1068, %v1086
        %v1091 = vmul.f32 %v1070, %v1087
        %v1092 = vmul.f32 %v1072, %v1088
        %v1093 = vpack.c.bf16 %v1089, %v1089
        %v1094 = vpack.c.bf16 %v1090, %v1090
        %v1095 = vpack.c.bf16 %v1091, %v1091
        %v1096 = vpack.c.bf16 %v1092, %v1092
        %v1098 = vsel %vm860, %v1093, 0
        %vm1100 = vcmask 1043456
        %v1102 = vsel %vm1100, %v856, 0
        %1104 = vmatprep.subr.bf16.mxu0 0
        %1105 = vmatpush1.bf16.msra.mxu0 %v1102
        %1106 = vmatprep.subr.bf16.mxu0 0
        %1107 = vmatpush1.bf16.msra.mxu0 0
        %1108 = vmatprep.subr.bf16.mxu0 0
        %1109 = vmatpush1.bf16.msra.mxu0 0
        %1110 = vmatprep.subr.bf16.mxu0 0
        %1111 = vmatpush1.bf16.msra.mxu0 0
        %1112 = vmatprep.subr.bf16.mxu0 0
        %1113 = vmatpush1.bf16.msra.mxu0 0
        %1114 = vmatprep.subr.bf16.mxu0 0
        %1115 = vmatpush1.bf16.msra.mxu0 0
        %1116 = vmatprep.subr.bf16.mxu0 0
        %1117 = vmatpush1.bf16.msra.mxu0 0
        %1118 = vmatprep.subr.bf16.mxu0 0
        %1119 = vmatpush1.bf16.msra.mxu0 0
        %1120 = vmatprep.subr.bf16.mxu0 0
        %1121 = vmatpush1.bf16.msra.mxu0 0
        %1122 = vmatprep.subr.bf16.mxu0 0
        %1123 = vmatpush1.bf16.msra.mxu0 0
        %1124 = vmatprep.subr.bf16.mxu0 0
        %1125 = vmatpush1.bf16.msra.mxu0 0
        %1126 = vmatprep.subr.bf16.mxu0 0
        %1127 = vmatpush1.bf16.msra.mxu0 0
        %1128 = vmatprep.subr.bf16.mxu0 0
        %1129 = vmatpush1.bf16.msra.mxu0 0
        %1130 = vmatprep.subr.bf16.mxu0 0
        %1131 = vmatpush1.bf16.msra.mxu0 0
        %1132 = vmatprep.subr.bf16.mxu0 0
        %1133 = vmatpush1.bf16.msra.mxu0 0
        %1134 = vmatprep.subr.bf16.mxu0 0
        %1135 = vmatpush1.bf16.msra.mxu0 0
        %1136 = vmatprep.mubr.bf16.mxu0 0
        %1137 = vmatmul.mubr.bf16.gmra.mrb[0].mxu0 %v1098
        %v1138 = vpop.f32.mrb[0].mxu0
        %v1139 = vadd.f32 0.0, %v1138
        %v1140 = vpop.f32.mrb[0].mxu0
        %v1141 = vpop.f32.mrb[0].mxu0
        %v1142 = vpop.f32.mrb[0].mxu0
        %1143 = vdwg.mxu0
        %v1145 = vsel %vm860, %v1094, 0
        %v1148 = vsel %vm1100, %v857, 0
        %1150 = vmatprep.subr.bf16.mxu0 0
        %1151 = vmatpush1.bf16.msra.mxu0 %v1148
        %1152 = vmatprep.subr.bf16.mxu0 0
        %1153 = vmatpush1.bf16.msra.mxu0 0
        %1154 = vmatprep.subr.bf16.mxu0 0
        %1155 = vmatpush1.bf16.msra.mxu0 0
        %1156 = vmatprep.subr.bf16.mxu0 0
        %1157 = vmatpush1.bf16.msra.mxu0 0
        %1158 = vmatprep.subr.bf16.mxu0 0
        %1159 = vmatpush1.bf16.msra.mxu0 0
        %1160 = vmatprep.subr.bf16.mxu0 0
        %1161 = vmatpush1.bf16.msra.mxu0 0
        %1162 = vmatprep.subr.bf16.mxu0 0
        %1163 = vmatpush1.bf16.msra.mxu0 0
        %1164 = vmatprep.subr.bf16.mxu0 0
        %1165 = vmatpush1.bf16.msra.mxu0 0
        %1166 = vmatprep.subr.bf16.mxu0 0
        %1167 = vmatpush1.bf16.msra.mxu0 0
        %1168 = vmatprep.subr.bf16.mxu0 0
        %1169 = vmatpush1.bf16.msra.mxu0 0
        %1170 = vmatprep.subr.bf16.mxu0 0
        %1171 = vmatpush1.bf16.msra.mxu0 0
        %1172 = vmatprep.subr.bf16.mxu0 0
        %1173 = vmatpush1.bf16.msra.mxu0 0
        %1174 = vmatprep.subr.bf16.mxu0 0
        %1175 = vmatpush1.bf16.msra.mxu0 0
        %1176 = vmatprep.subr.bf16.mxu0 0
        %1177 = vmatpush1.bf16.msra.mxu0 0
        %1178 = vmatprep.subr.bf16.mxu0 0
        %1179 = vmatpush1.bf16.msra.mxu0 0
        %1180 = vmatprep.subr.bf16.mxu0 0
        %1181 = vmatpush1.bf16.msra.mxu0 0
        %1182 = vmatprep.mubr.bf16.mxu0 0
        %1183 = vmatmul.mubr.bf16.gmra.mrb[0].mxu0 %v1145
        %v1184 = vpop.f32.mrb[0].mxu0
        %v1185 = vadd.f32 0.0, %v1184
        %v1186 = vpop.f32.mrb[0].mxu0
        %v1187 = vpop.f32.mrb[0].mxu0
        %v1188 = vpop.f32.mrb[0].mxu0
        %1189 = vdwg.mxu0
        %v1191 = vsel %vm860, %v1095, 0
        %v1194 = vsel %vm1100, %v858, 0
        %1196 = vmatprep.subr.bf16.mxu0 0
        %1197 = vmatpush1.bf16.msra.mxu0 %v1194
        %1198 = vmatprep.subr.bf16.mxu0 0
        %1199 = vmatpush1.bf16.msra.mxu0 0
        %1200 = vmatprep.subr.bf16.mxu0 0
        %1201 = vmatpush1.bf16.msra.mxu0 0
        %1202 = vmatprep.subr.bf16.mxu0 0
        %1203 = vmatpush1.bf16.msra.mxu0 0
        %1204 = vmatprep.subr.bf16.mxu0 0
        %1205 = vmatpush1.bf16.msra.mxu0 0
        %1206 = vmatprep.subr.bf16.mxu0 0
        %1207 = vmatpush1.bf16.msra.mxu0 0
        %1208 = vmatprep.subr.bf16.mxu0 0
        %1209 = vmatpush1.bf16.msra.mxu0 0
        %1210 = vmatprep.subr.bf16.mxu0 0
        %1211 = vmatpush1.bf16.msra.mxu0 0
        %1212 = vmatprep.subr.bf16.mxu0 0
        %1213 = vmatpush1.bf16.msra.mxu0 0
        %1214 = vmatprep.subr.bf16.mxu0 0
        %1215 = vmatpush1.bf16.msra.mxu0 0
        %1216 = vmatprep.subr.bf16.mxu0 0
        %1217 = vmatpush1.bf16.msra.mxu0 0
        %1218 = vmatprep.subr.bf16.mxu0 0
        %1219 = vmatpush1.bf16.msra.mxu0 0
        %1220 = vmatprep.subr.bf16.mxu0 0
        %1221 = vmatpush1.bf16.msra.mxu0 0
        %1222 = vmatprep.subr.bf16.mxu0 0
        %1223 = vmatpush1.bf16.msra.mxu0 0
        %1224 = vmatprep.subr.bf16.mxu0 0
        %1225 = vmatpush1.bf16.msra.mxu0 0
        %1226 = vmatprep.subr.bf16.mxu0 0
        %1227 = vmatpush1.bf16.msra.mxu0 0
        %1228 = vmatprep.mubr.bf16.mxu0 0
        %1229 = vmatmul.mubr.bf16.gmra.mrb[0].mxu0 %v1191
        %v1230 = vpop.f32.mrb[0].mxu0
        %v1231 = vadd.f32 0.0, %v1230
        %v1232 = vpop.f32.mrb[0].mxu0
        %v1233 = vpop.f32.mrb[0].mxu0
        %v1234 = vpop.f32.mrb[0].mxu0
        %1235 = vdwg.mxu0
        %v1237 = vsel %vm860, %v1096, 0
        %v1240 = vsel %vm1100, %v859, 0
        %1242 = vmatprep.subr.bf16.mxu0 0
        %1243 = vmatpush1.bf16.msra.mxu0 %v1240
        %1244 = vmatprep.subr.bf16.mxu0 0
        %1245 = vmatpush1.bf16.msra.mxu0 0
        %1246 = vmatprep.subr.bf16.mxu0 0
        %1247 = vmatpush1.bf16.msra.mxu0 0
        %1248 = vmatprep.subr.bf16.mxu0 0
        %1249 = vmatpush1.bf16.msra.mxu0 0
        %1250 = vmatprep.subr.bf16.mxu0 0
        %1251 = vmatpush1.bf16.msra.mxu0 0
        %1252 = vmatprep.subr.bf16.mxu0 0
        %1253 = vmatpush1.bf16.msra.mxu0 0
        %1254 = vmatprep.subr.bf16.mxu0 0
        %1255 = vmatpush1.bf16.msra.mxu0 0
        %1256 = vmatprep.subr.bf16.mxu0 0
        %1257 = vmatpush1.bf16.msra.mxu0 0
        %1258 = vmatprep.subr.bf16.mxu0 0
        %1259 = vmatpush1.bf16.msra.mxu0 0
        %1260 = vmatprep.subr.bf16.mxu0 0
        %1261 = vmatpush1.bf16.msra.mxu0 0
        %1262 = vmatprep.subr.bf16.mxu0 0
        %1263 = vmatpush1.bf16.msra.mxu0 0
        %1264 = vmatprep.subr.bf16.mxu0 0
        %1265 = vmatpush1.bf16.msra.mxu0 0
        %1266 = vmatprep.subr.bf16.mxu0 0
        %1267 = vmatpush1.bf16.msra.mxu0 0
        %1268 = vmatprep.subr.bf16.mxu0 0
        %1269 = vmatpush1.bf16.msra.mxu0 0
        %1270 = vmatprep.subr.bf16.mxu0 0
        %1271 = vmatpush1.bf16.msra.mxu0 0
        %1272 = vmatprep.subr.bf16.mxu0 0
        %1273 = vmatpush1.bf16.msra.mxu0 0
        %1274 = vmatprep.mubr.bf16.mxu0 0
        %1275 = vmatmul.mubr.bf16.gmra.mrb[0].mxu0 %v1237
        %v1276 = vpop.f32.mrb[0].mxu0
        %v1277 = vadd.f32 0.0, %v1276
        %v1278 = vpop.f32.mrb[0].mxu0
        %v1279 = vpop.f32.mrb[0].mxu0
        %v1280 = vpop.f32.mrb[0].mxu0
        %1281 = vdwg.mxu0
        %1283 = vrot.lane.b32.xlu0 %v848, 120
        %v1284 = vpop.permute.xlu0 %1283
        %1286 = vrot.lane.b32.xlu0 %v852, 120
        %v1287 = vpop.permute.xlu0 %1286
        %v1289 = vsel %vm860, %v1284, 0
        %v1292 = vsel %vm860, %v1287, 0
        %1294 = vmatprep.subr.bf16.mxu0 0
        %1295 = vmatpush1.bf16.xpose.msra.mxu0 %v1292
        %1296 = vmatprep.subr.bf16.mxu0 0
        %1297 = vmatpush1.bf16.xpose.msra.mxu0 0
        %1298 = vmatprep.subr.bf16.mxu0 0
        %1299 = vmatpush1.bf16.xpose.msra.mxu0 0
        %1300 = vmatprep.subr.bf16.mxu0 0
        %1301 = vmatpush1.bf16.xpose.msra.mxu0 0
        %1302 = vmatprep.subr.bf16.mxu0 0
        %1303 = vmatpush1.bf16.xpose.msra.mxu0 0
        %1304 = vmatprep.subr.bf16.mxu0 0
        %1305 = vmatpush1.bf16.xpose.msra.mxu0 0
        %1306 = vmatprep.subr.bf16.mxu0 0
        %1307 = vmatpush1.bf16.xpose.msra.mxu0 0
        %1308 = vmatprep.subr.bf16.mxu0 0
        %1309 = vmatpush1.bf16.xpose.msra.mxu0 0
        %1310 = vmatprep.subr.bf16.mxu0 0
        %1311 = vmatpush1.bf16.xpose.msra.mxu0 0
        %1312 = vmatprep.subr.bf16.mxu0 0
        %1313 = vmatpush1.bf16.xpose.msra.mxu0 0
        %1314 = vmatprep.subr.bf16.mxu0 0
        %1315 = vmatpush1.bf16.xpose.msra.mxu0 0
        %1316 = vmatprep.subr.bf16.mxu0 0
        %1317 = vmatpush1.bf16.xpose.msra.mxu0 0
        %1318 = vmatprep.subr.bf16.mxu0 0
        %1319 = vmatpush1.bf16.xpose.msra.mxu0 0
        %1320 = vmatprep.subr.bf16.mxu0 0
        %1321 = vmatpush1.bf16.xpose.msra.mxu0 0
        %1322 = vmatprep.subr.bf16.mxu0 0
        %1323 = vmatpush1.bf16.xpose.msra.mxu0 0
        %1324 = vmatprep.subr.bf16.mxu0 0
        %1325 = vmatpush1.bf16.xpose.msra.mxu0 0
        %1326 = vmatprep.mubr.bf16.mxu0 0
        %1327 = vmatmul.mubr.bf16.gmra.mrb[0].mxu0 %v1289
        %v1328 = vpop.f32.mrb[0].mxu0
        %v1329 = vadd.f32 0.0, %v1328
        %v1330 = vpop.f32.mrb[0].mxu0
        %v1331 = vpop.f32.mrb[0].mxu0
        %v1332 = vpop.f32.mrb[0].mxu0
        %1333 = vdwg.mxu0
        %1335 = vrot.lane.b32.xlu0 %v849, 120
        %v1336 = vpop.permute.xlu0 %1335
        %1338 = vrot.lane.b32.xlu0 %v853, 120
        %v1339 = vpop.permute.xlu0 %1338
        %v1341 = vsel %vm860, %v1336, 0
        %v1344 = vsel %vm860, %v1339, 0
        %1346 = vmatprep.subr.bf16.mxu0 0
        %1347 = vmatpush1.bf16.xpose.msra.mxu0 %v1344
        %1348 = vmatprep.subr.bf16.mxu0 0
        %1349 = vmatpush1.bf16.xpose.msra.mxu0 0
        %1350 = vmatprep.subr.bf16.mxu0 0
        %1351 = vmatpush1.bf16.xpose.msra.mxu0 0
        %1352 = vmatprep.subr.bf16.mxu0 0
        %1353 = vmatpush1.bf16.xpose.msra.mxu0 0
        %1354 = vmatprep.subr.bf16.mxu0 0
        %1355 = vmatpush1.bf16.xpose.msra.mxu0 0
        %1356 = vmatprep.subr.bf16.mxu0 0
        %1357 = vmatpush1.bf16.xpose.msra.mxu0 0
        %1358 = vmatprep.subr.bf16.mxu0 0
        %1359 = vmatpush1.bf16.xpose.msra.mxu0 0
        %1360 = vmatprep.subr.bf16.mxu0 0
        %1361 = vmatpush1.bf16.xpose.msra.mxu0 0
        %1362 = vmatprep.subr.bf16.mxu0 0
        %1363 = vmatpush1.bf16.xpose.msra.mxu0 0
        %1364 = vmatprep.subr.bf16.mxu0 0
        %1365 = vmatpush1.bf16.xpose.msra.mxu0 0
        %1366 = vmatprep.subr.bf16.mxu0 0
        %1367 = vmatpush1.bf16.xpose.msra.mxu0 0
        %1368 = vmatprep.subr.bf16.mxu0 0
        %1369 = vmatpush1.bf16.xpose.msra.mxu0 0
        %1370 = vmatprep.subr.bf16.mxu0 0
        %1371 = vmatpush1.bf16.xpose.msra.mxu0 0
        %1372 = vmatprep.subr.bf16.mxu0 0
        %1373 = vmatpush1.bf16.xpose.msra.mxu0 0
        %1374 = vmatprep.subr.bf16.mxu0 0
        %1375 = vmatpush1.bf16.xpose.msra.mxu0 0
        %1376 = vmatprep.subr.bf16.mxu0 0
        %1377 = vmatpush1.bf16.xpose.msra.mxu0 0
        %1378 = vmatprep.mubr.bf16.mxu0 0
        %1379 = vmatmul.mubr.bf16.gmra.mrb[0].mxu0 %v1341
        %v1380 = vpop.f32.mrb[0].mxu0
        %v1381 = vadd.f32 0.0, %v1380
        %v1382 = vpop.f32.mrb[0].mxu0
        %v1383 = vpop.f32.mrb[0].mxu0
        %v1384 = vpop.f32.mrb[0].mxu0
        %1385 = vdwg.mxu0
        %1387 = vrot.lane.b32.xlu0 %v850, 120
        %v1388 = vpop.permute.xlu0 %1387
        %1390 = vrot.lane.b32.xlu0 %v854, 120
        %v1391 = vpop.permute.xlu0 %1390
        %v1393 = vsel %vm860, %v1388, 0
        %v1396 = vsel %vm860, %v1391, 0
        %1398 = vmatprep.subr.bf16.mxu0 0
        %1399 = vmatpush1.bf16.xpose.msra.mxu0 %v1396
        %1400 = vmatprep.subr.bf16.mxu0 0
        %1401 = vmatpush1.bf16.xpose.msra.mxu0 0
        %1402 = vmatprep.subr.bf16.mxu0 0
        %1403 = vmatpush1.bf16.xpose.msra.mxu0 0
        %1404 = vmatprep.subr.bf16.mxu0 0
        %1405 = vmatpush1.bf16.xpose.msra.mxu0 0
        %1406 = vmatprep.subr.bf16.mxu0 0
        %1407 = vmatpush1.bf16.xpose.msra.mxu0 0
        %1408 = vmatprep.subr.bf16.mxu0 0
        %1409 = vmatpush1.bf16.xpose.msra.mxu0 0
        %1410 = vmatprep.subr.bf16.mxu0 0
        %1411 = vmatpush1.bf16.xpose.msra.mxu0 0
        %1412 = vmatprep.subr.bf16.mxu0 0
        %1413 = vmatpush1.bf16.xpose.msra.mxu0 0
        %1414 = vmatprep.subr.bf16.mxu0 0
        %1415 = vmatpush1.bf16.xpose.msra.mxu0 0
        %1416 = vmatprep.subr.bf16.mxu0 0
        %1417 = vmatpush1.bf16.xpose.msra.mxu0 0
        %1418 = vmatprep.subr.bf16.mxu0 0
        %1419 = vmatpush1.bf16.xpose.msra.mxu0 0
        %1420 = vmatprep.subr.bf16.mxu0 0
        %1421 = vmatpush1.bf16.xpose.msra.mxu0 0
        %1422 = vmatprep.subr.bf16.mxu0 0
        %1423 = vmatpush1.bf16.xpose.msra.mxu0 0
        %1424 = vmatprep.subr.bf16.mxu0 0
        %1425 = vmatpush1.bf16.xpose.msra.mxu0 0
        %1426 = vmatprep.subr.bf16.mxu0 0
        %1427 = vmatpush1.bf16.xpose.msra.mxu0 0
        %1428 = vmatprep.subr.bf16.mxu0 0
        %1429 = vmatpush1.bf16.xpose.msra.mxu0 0
        %1430 = vmatprep.mubr.bf16.mxu0 0
        %1431 = vmatmul.mubr.bf16.gmra.mrb[0].mxu0 %v1393
        %v1432 = vpop.f32.mrb[0].mxu0
        %v1433 = vadd.f32 0.0, %v1432
        %v1434 = vpop.f32.mrb[0].mxu0
        %v1435 = vpop.f32.mrb[0].mxu0
        %v1436 = vpop.f32.mrb[0].mxu0
        %1437 = vdwg.mxu0
        %1439 = vrot.lane.b32.xlu0 %v851, 120
        %v1440 = vpop.permute.xlu0 %1439
        %1442 = vrot.lane.b32.xlu0 %v855, 120
        %v1443 = vpop.permute.xlu0 %1442
        %v1445 = vsel %vm860, %v1440, 0
        %v1448 = vsel %vm860, %v1443, 0
        %1450 = vmatprep.subr.bf16.mxu0 0
        %1451 = vmatpush1.bf16.xpose.msra.mxu0 %v1448
        %1452 = vmatprep.subr.bf16.mxu0 0
        %1453 = vmatpush1.bf16.xpose.msra.mxu0 0
        %1454 = vmatprep.subr.bf16.mxu0 0
        %1455 = vmatpush1.bf16.xpose.msra.mxu0 0
        %1456 = vmatprep.subr.bf16.mxu0 0
        %1457 = vmatpush1.bf16.xpose.msra.mxu0 0
        %1458 = vmatprep.subr.bf16.mxu0 0
        %1459 = vmatpush1.bf16.xpose.msra.mxu0 0
        %1460 = vmatprep.subr.bf16.mxu0 0
        %1461 = vmatpush1.bf16.xpose.msra.mxu0 0
        %1462 = vmatprep.subr.bf16.mxu0 0
        %1463 = vmatpush1.bf16.xpose.msra.mxu0 0
        %1464 = vmatprep.subr.bf16.mxu0 0
        %1465 = vmatpush1.bf16.xpose.msra.mxu0 0
        %1466 = vmatprep.subr.bf16.mxu0 0
        %1467 = vmatpush1.bf16.xpose.msra.mxu0 0
        %1468 = vmatprep.subr.bf16.mxu0 0
        %1469 = vmatpush1.bf16.xpose.msra.mxu0 0
        %1470 = vmatprep.subr.bf16.mxu0 0
        %1471 = vmatpush1.bf16.xpose.msra.mxu0 0
        %1472 = vmatprep.subr.bf16.mxu0 0
        %1473 = vmatpush1.bf16.xpose.msra.mxu0 0
        %1474 = vmatprep.subr.bf16.mxu0 0
        %1475 = vmatpush1.bf16.xpose.msra.mxu0 0
        %1476 = vmatprep.subr.bf16.mxu0 0
        %1477 = vmatpush1.bf16.xpose.msra.mxu0 0
        %1478 = vmatprep.subr.bf16.mxu0 0
        %1479 = vmatpush1.bf16.xpose.msra.mxu0 0
        %1480 = vmatprep.subr.bf16.mxu0 0
        %1481 = vmatpush1.bf16.xpose.msra.mxu0 0
        %1482 = vmatprep.mubr.bf16.mxu0 0
        %1483 = vmatmul.mubr.bf16.gmra.mrb[0].mxu0 %v1445
        %v1484 = vpop.f32.mrb[0].mxu0
        %v1485 = vadd.f32 0.0, %v1484
        %v1486 = vpop.f32.mrb[0].mxu0
        %v1487 = vpop.f32.mrb[0].mxu0
        %v1488 = vpop.f32.mrb[0].mxu0
        %1489 = vdwg.mxu0
        %v1490 = vmul.f32 %v1329, 0.35355338
        %v1491 = vmul.f32 %v1381, 0.35355338
        %v1492 = vmul.f32 %v1433, 0.35355338
        %v1493 = vmul.f32 %v1485, 0.35355338
        %v1494 = vsel %vm860, %v1490, -inf
        %1495 = vmax.xlane.f32.xlu0 %v1494
        %v1496 = vpop.xlane.xlu0 %1495
        %v1497 = vsel %vm860, %v1491, -inf
        %1498 = vmax.xlane.f32.xlu0 %v1497
        %v1499 = vpop.xlane.xlu0 %1498
        %v1500 = vsel %vm860, %v1492, -inf
        %1501 = vmax.xlane.f32.xlu0 %v1500
        %v1502 = vpop.xlane.xlu0 %1501
        %v1503 = vsel %vm860, %v1493, -inf
        %1504 = vmax.xlane.f32.xlu0 %v1503
        %v1505 = vpop.xlane.xlu0 %1504
        %v1506 = vsub.f32 %v1490, %v1496
        %v1507 = vsub.f32 %v1491, %v1499
        %v1508 = vsub.f32 %v1492, %v1502
        %v1509 = vsub.f32 %v1493, %v1505
        %v1510 = vmul.f32 %v1506, 1.442695
        %v1511 = vpow.pop %v1510
        %v1512 = vmul.f32 %v1507, 1.442695
        %v1513 = vpow.pop %v1512
        %v1514 = vmul.f32 %v1508, 1.442695
        %v1515 = vpow.pop %v1514
        %v1516 = vmul.f32 %v1509, 1.442695
        %v1517 = vpow.pop %v1516
        %v1518 = vsel %vm860, %v1511, 0.0
        %1519 = vadd.xlane.f32.xlu0 %v1518
        %v1520 = vpop.xlane.xlu0 %1519
        %v1521 = vsel %vm860, %v1513, 0.0
        %1522 = vadd.xlane.f32.xlu0 %v1521
        %v1523 = vpop.xlane.xlu0 %1522
        %v1524 = vsel %vm860, %v1515, 0.0
        %1525 = vadd.xlane.f32.xlu0 %v1524
        %v1526 = vpop.xlane.xlu0 %1525
        %v1527 = vsel %vm860, %v1517, 0.0
        %1528 = vadd.xlane.f32.xlu0 %v1527
        %v1529 = vpop.xlane.xlu0 %1528
        %v1530 = vrcp.pop %v1520
        %v1531 = vrcp.pop %v1523
        %v1532 = vrcp.pop %v1526
        %v1533 = vrcp.pop %v1529
        %v1534 = vmul.f32 %v1511, %v1530
        %v1535 = vmul.f32 %v1513, %v1531
        %v1536 = vmul.f32 %v1515, %v1532
        %v1537 = vmul.f32 %v1517, %v1533
        %v1538 = vpack.c.bf16 %v1534, %v1534
        %v1539 = vpack.c.bf16 %v1535, %v1535
        %v1540 = vpack.c.bf16 %v1536, %v1536
        %v1541 = vpack.c.bf16 %v1537, %v1537
        %1543 = vrot.lane.b32.xlu0 %v856, 120
        %v1544 = vpop.permute.xlu0 %1543
        %v1546 = vsel %vm860, %v1538, 0
        %v1549 = vsel %vm1100, %v1544, 0
        %1551 = vmatprep.subr.bf16.mxu0 0
        %1552 = vmatpush1.bf16.msra.mxu0 %v1549
        %1553 = vmatprep.subr.bf16.mxu0 0
        %1554 = vmatpush1.bf16.msra.mxu0 0
        %1555 = vmatprep.subr.bf16.mxu0 0
        %1556 = vmatpush1.bf16.msra.mxu0 0
        %1557 = vmatprep.subr.bf16.mxu0 0
        %1558 = vmatpush1.bf16.msra.mxu0 0
        %1559 = vmatprep.subr.bf16.mxu0 0
        %1560 = vmatpush1.bf16.msra.mxu0 0
        %1561 = vmatprep.subr.bf16.mxu0 0
        %1562 = vmatpush1.bf16.msra.mxu0 0
        %1563 = vmatprep.subr.bf16.mxu0 0
        %1564 = vmatpush1.bf16.msra.mxu0 0
        %1565 = vmatprep.subr.bf16.mxu0 0
        %1566 = vmatpush1.bf16.msra.mxu0 0
        %1567 = vmatprep.subr.bf16.mxu0 0
        %1568 = vmatpush1.bf16.msra.mxu0 0
        %1569 = vmatprep.subr.bf16.mxu0 0
        %1570 = vmatpush1.bf16.msra.mxu0 0
        %1571 = vmatprep.subr.bf16.mxu0 0
        %1572 = vmatpush1.bf16.msra.mxu0 0
        %1573 = vmatprep.subr.bf16.mxu0 0
        %1574 = vmatpush1.bf16.msra.mxu0 0
        %1575 = vmatprep.subr.bf16.mxu0 0
        %1576 = vmatpush1.bf16.msra.mxu0 0
        %1577 = vmatprep.subr.bf16.mxu0 0
        %1578 = vmatpush1.bf16.msra.mxu0 0
        %1579 = vmatprep.subr.bf16.mxu0 0
        %1580 = vmatpush1.bf16.msra.mxu0 0
        %1581 = vmatprep.subr.bf16.mxu0 0
        %1582 = vmatpush1.bf16.msra.mxu0 0
        %1583 = vmatprep.mubr.bf16.mxu0 0
        %1584 = vmatmul.mubr.bf16.gmra.mrb[0].mxu0 %v1546
        %v1585 = vpop.f32.mrb[0].mxu0
        %v1586 = vadd.f32 0.0, %v1585
        %v1587 = vpop.f32.mrb[0].mxu0
        %v1588 = vpop.f32.mrb[0].mxu0
        %v1589 = vpop.f32.mrb[0].mxu0
        %1590 = vdwg.mxu0
        %1592 = vrot.lane.b32.xlu0 %v857, 120
        %v1593 = vpop.permute.xlu0 %1592
        %v1595 = vsel %vm860, %v1539, 0
        %v1598 = vsel %vm1100, %v1593, 0
        %1600 = vmatprep.subr.bf16.mxu0 0
        %1601 = vmatpush1.bf16.msra.mxu0 %v1598
        %1602 = vmatprep.subr.bf16.mxu0 0
        %1603 = vmatpush1.bf16.msra.mxu0 0
        %1604 = vmatprep.subr.bf16.mxu0 0
        %1605 = vmatpush1.bf16.msra.mxu0 0
        %1606 = vmatprep.subr.bf16.mxu0 0
        %1607 = vmatpush1.bf16.msra.mxu0 0
        %1608 = vmatprep.subr.bf16.mxu0 0
        %1609 = vmatpush1.bf16.msra.mxu0 0
        %1610 = vmatprep.subr.bf16.mxu0 0
        %1611 = vmatpush1.bf16.msra.mxu0 0
        %1612 = vmatprep.subr.bf16.mxu0 0
        %1613 = vmatpush1.bf16.msra.mxu0 0
        %1614 = vmatprep.subr.bf16.mxu0 0
        %1615 = vmatpush1.bf16.msra.mxu0 0
        %1616 = vmatprep.subr.bf16.mxu0 0
        %1617 = vmatpush1.bf16.msra.mxu0 0
        %1618 = vmatprep.subr.bf16.mxu0 0
        %1619 = vmatpush1.bf16.msra.mxu0 0
        %1620 = vmatprep.subr.bf16.mxu0 0
        %1621 = vmatpush1.bf16.msra.mxu0 0
        %1622 = vmatprep.subr.bf16.mxu0 0
        %1623 = vmatpush1.bf16.msra.mxu0 0
        %1624 = vmatprep.subr.bf16.mxu0 0
        %1625 = vmatpush1.bf16.msra.mxu0 0
        %1626 = vmatprep.subr.bf16.mxu0 0
        %1627 = vmatpush1.bf16.msra.mxu0 0
        %1628 = vmatprep.subr.bf16.mxu0 0
        %1629 = vmatpush1.bf16.msra.mxu0 0
        %1630 = vmatprep.subr.bf16.mxu0 0
        %1631 = vmatpush1.bf16.msra.mxu0 0
        %1632 = vmatprep.mubr.bf16.mxu0 0
        %1633 = vmatmul.mubr.bf16.gmra.mrb[0].mxu0 %v1595
        %v1634 = vpop.f32.mrb[0].mxu0
        %v1635 = vadd.f32 0.0, %v1634
        %v1636 = vpop.f32.mrb[0].mxu0
        %v1637 = vpop.f32.mrb[0].mxu0
        %v1638 = vpop.f32.mrb[0].mxu0
        %1639 = vdwg.mxu0
        %1641 = vrot.lane.b32.xlu0 %v858, 120
        %v1642 = vpop.permute.xlu0 %1641
        %v1644 = vsel %vm860, %v1540, 0
        %v1647 = vsel %vm1100, %v1642, 0
        %1649 = vmatprep.subr.bf16.mxu0 0
        %1650 = vmatpush1.bf16.msra.mxu0 %v1647
        %1651 = vmatprep.subr.bf16.mxu0 0
        %1652 = vmatpush1.bf16.msra.mxu0 0
        %1653 = vmatprep.subr.bf16.mxu0 0
        %1654 = vmatpush1.bf16.msra.mxu0 0
        %1655 = vmatprep.subr.bf16.mxu0 0
        %1656 = vmatpush1.bf16.msra.mxu0 0
        %1657 = vmatprep.subr.bf16.mxu0 0
        %1658 = vmatpush1.bf16.msra.mxu0 0
        %1659 = vmatprep.subr.bf16.mxu0 0
        %1660 = vmatpush1.bf16.msra.mxu0 0
        %1661 = vmatprep.subr.bf16.mxu0 0
        %1662 = vmatpush1.bf16.msra.mxu0 0
        %1663 = vmatprep.subr.bf16.mxu0 0
        %1664 = vmatpush1.bf16.msra.mxu0 0
        %1665 = vmatprep.subr.bf16.mxu0 0
        %1666 = vmatpush1.bf16.msra.mxu0 0
        %1667 = vmatprep.subr.bf16.mxu0 0
        %1668 = vmatpush1.bf16.msra.mxu0 0
        %1669 = vmatprep.subr.bf16.mxu0 0
        %1670 = vmatpush1.bf16.msra.mxu0 0
        %1671 = vmatprep.subr.bf16.mxu0 0
        %1672 = vmatpush1.bf16.msra.mxu0 0
        %1673 = vmatprep.subr.bf16.mxu0 0
        %1674 = vmatpush1.bf16.msra.mxu0 0
        %1675 = vmatprep.subr.bf16.mxu0 0
        %1676 = vmatpush1.bf16.msra.mxu0 0
        %1677 = vmatprep.subr.bf16.mxu0 0
        %1678 = vmatpush1.bf16.msra.mxu0 0
        %1679 = vmatprep.subr.bf16.mxu0 0
        %1680 = vmatpush1.bf16.msra.mxu0 0
        %1681 = vmatprep.mubr.bf16.mxu0 0
        %1682 = vmatmul.mubr.bf16.gmra.mrb[0].mxu0 %v1644
        %v1683 = vpop.f32.mrb[0].mxu0
        %v1684 = vadd.f32 0.0, %v1683
        %v1685 = vpop.f32.mrb[0].mxu0
        %v1686 = vpop.f32.mrb[0].mxu0
        %v1687 = vpop.f32.mrb[0].mxu0
        %1688 = vdwg.mxu0
        %1690 = vrot.lane.b32.xlu0 %v859, 120
        %v1691 = vpop.permute.xlu0 %1690
        %v1693 = vsel %vm860, %v1541, 0
        %v1696 = vsel %vm1100, %v1691, 0
        %1698 = vmatprep.subr.bf16.mxu0 0
        %1699 = vmatpush1.bf16.msra.mxu0 %v1696
        %1700 = vmatprep.subr.bf16.mxu0 0
        %1701 = vmatpush1.bf16.msra.mxu0 0
        %1702 = vmatprep.subr.bf16.mxu0 0
        %1703 = vmatpush1.bf16.msra.mxu0 0
        %1704 = vmatprep.subr.bf16.mxu0 0
        %1705 = vmatpush1.bf16.msra.mxu0 0
        %1706 = vmatprep.subr.bf16.mxu0 0
        %1707 = vmatpush1.bf16.msra.mxu0 0
        %1708 = vmatprep.subr.bf16.mxu0 0
        %1709 = vmatpush1.bf16.msra.mxu0 0
        %1710 = vmatprep.subr.bf16.mxu0 0
        %1711 = vmatpush1.bf16.msra.mxu0 0
        %1712 = vmatprep.subr.bf16.mxu0 0
        %1713 = vmatpush1.bf16.msra.mxu0 0
        %1714 = vmatprep.subr.bf16.mxu0 0
        %1715 = vmatpush1.bf16.msra.mxu0 0
        %1716 = vmatprep.subr.bf16.mxu0 0
        %1717 = vmatpush1.bf16.msra.mxu0 0
        %1718 = vmatprep.subr.bf16.mxu0 0
        %1719 = vmatpush1.bf16.msra.mxu0 0
        %1720 = vmatprep.subr.bf16.mxu0 0
        %1721 = vmatpush1.bf16.msra.mxu0 0
        %1722 = vmatprep.subr.bf16.mxu0 0
        %1723 = vmatpush1.bf16.msra.mxu0 0
        %1724 = vmatprep.subr.bf16.mxu0 0
        %1725 = vmatpush1.bf16.msra.mxu0 0
        %1726 = vmatprep.subr.bf16.mxu0 0
        %1727 = vmatpush1.bf16.msra.mxu0 0
        %1728 = vmatprep.subr.bf16.mxu0 0
        %1729 = vmatpush1.bf16.msra.mxu0 0
        %1730 = vmatprep.mubr.bf16.mxu0 0
        %1731 = vmatmul.mubr.bf16.gmra.mrb[0].mxu0 %v1693
        %v1732 = vpop.f32.mrb[0].mxu0
        %v1733 = vadd.f32 0.0, %v1732
        %v1734 = vpop.f32.mrb[0].mxu0
        %v1735 = vpop.f32.mrb[0].mxu0
        %v1736 = vpop.f32.mrb[0].mxu0
        %1737 = vdwg.mxu0
        %1738 = vrot.lane.b32.xlu0 %v848, 112
        %v1739 = vpop.permute.xlu0 %1738
        %1740 = vrot.lane.b32.xlu0 %v852, 112
        %v1741 = vpop.permute.xlu0 %1740
        %v1743 = vsel %vm860, %v1739, 0
        %v1746 = vsel %vm860, %v1741, 0
        %1748 = vmatprep.subr.bf16.mxu0 0
        %1749 = vmatpush1.bf16.xpose.msra.mxu0 %v1746
        %1750 = vmatprep.subr.bf16.mxu0 0
        %1751 = vmatpush1.bf16.xpose.msra.mxu0 0
        %1752 = vmatprep.subr.bf16.mxu0 0
        %1753 = vmatpush1.bf16.xpose.msra.mxu0 0
        %1754 = vmatprep.subr.bf16.mxu0 0
        %1755 = vmatpush1.bf16.xpose.msra.mxu0 0
        %1756 = vmatprep.subr.bf16.mxu0 0
        %1757 = vmatpush1.bf16.xpose.msra.mxu0 0
        %1758 = vmatprep.subr.bf16.mxu0 0
        %1759 = vmatpush1.bf16.xpose.msra.mxu0 0
        %1760 = vmatprep.subr.bf16.mxu0 0
        %1761 = vmatpush1.bf16.xpose.msra.mxu0 0
        %1762 = vmatprep.subr.bf16.mxu0 0
        %1763 = vmatpush1.bf16.xpose.msra.mxu0 0
        %1764 = vmatprep.subr.bf16.mxu0 0
        %1765 = vmatpush1.bf16.xpose.msra.mxu0 0
        %1766 = vmatprep.subr.bf16.mxu0 0
        %1767 = vmatpush1.bf16.xpose.msra.mxu0 0
        %1768 = vmatprep.subr.bf16.mxu0 0
        %1769 = vmatpush1.bf16.xpose.msra.mxu0 0
        %1770 = vmatprep.subr.bf16.mxu0 0
        %1771 = vmatpush1.bf16.xpose.msra.mxu0 0
        %1772 = vmatprep.subr.bf16.mxu0 0
        %1773 = vmatpush1.bf16.xpose.msra.mxu0 0
        %1774 = vmatprep.subr.bf16.mxu0 0
        %1775 = vmatpush1.bf16.xpose.msra.mxu0 0
        %1776 = vmatprep.subr.bf16.mxu0 0
        %1777 = vmatpush1.bf16.xpose.msra.mxu0 0
        %1778 = vmatprep.subr.bf16.mxu0 0
        %1779 = vmatpush1.bf16.xpose.msra.mxu0 0
        %1780 = vmatprep.mubr.bf16.mxu0 0
        %1781 = vmatmul.mubr.bf16.gmra.mrb[0].mxu0 %v1743
        %v1782 = vpop.f32.mrb[0].mxu0
        %v1783 = vadd.f32 0.0, %v1782
        %v1784 = vpop.f32.mrb[0].mxu0
        %v1785 = vpop.f32.mrb[0].mxu0
        %v1786 = vpop.f32.mrb[0].mxu0
        %1787 = vdwg.mxu0
        %1788 = vrot.lane.b32.xlu0 %v849, 112
        %v1789 = vpop.permute.xlu0 %1788
        %1790 = vrot.lane.b32.xlu0 %v853, 112
        %v1791 = vpop.permute.xlu0 %1790
        %v1793 = vsel %vm860, %v1789, 0
        %v1796 = vsel %vm860, %v1791, 0
        %1798 = vmatprep.subr.bf16.mxu0 0
        %1799 = vmatpush1.bf16.xpose.msra.mxu0 %v1796
        %1800 = vmatprep.subr.bf16.mxu0 0
        %1801 = vmatpush1.bf16.xpose.msra.mxu0 0
        %1802 = vmatprep.subr.bf16.mxu0 0
        %1803 = vmatpush1.bf16.xpose.msra.mxu0 0
        %1804 = vmatprep.subr.bf16.mxu0 0
        %1805 = vmatpush1.bf16.xpose.msra.mxu0 0
        %1806 = vmatprep.subr.bf16.mxu0 0
        %1807 = vmatpush1.bf16.xpose.msra.mxu0 0
        %1808 = vmatprep.subr.bf16.mxu0 0
        %1809 = vmatpush1.bf16.xpose.msra.mxu0 0
        %1810 = vmatprep.subr.bf16.mxu0 0
        %1811 = vmatpush1.bf16.xpose.msra.mxu0 0
        %1812 = vmatprep.subr.bf16.mxu0 0
        %1813 = vmatpush1.bf16.xpose.msra.mxu0 0
        %1814 = vmatprep.subr.bf16.mxu0 0
        %1815 = vmatpush1.bf16.xpose.msra.mxu0 0
        %1816 = vmatprep.subr.bf16.mxu0 0
        %1817 = vmatpush1.bf16.xpose.msra.mxu0 0
        %1818 = vmatprep.subr.bf16.mxu0 0
        %1819 = vmatpush1.bf16.xpose.msra.mxu0 0
        %1820 = vmatprep.subr.bf16.mxu0 0
        %1821 = vmatpush1.bf16.xpose.msra.mxu0 0
        %1822 = vmatprep.subr.bf16.mxu0 0
        %1823 = vmatpush1.bf16.xpose.msra.mxu0 0
        %1824 = vmatprep.subr.bf16.mxu0 0
        %1825 = vmatpush1.bf16.xpose.msra.mxu0 0
        %1826 = vmatprep.subr.bf16.mxu0 0
        %1827 = vmatpush1.bf16.xpose.msra.mxu0 0
        %1828 = vmatprep.subr.bf16.mxu0 0
        %1829 = vmatpush1.bf16.xpose.msra.mxu0 0
        %1830 = vmatprep.mubr.bf16.mxu0 0
        %1831 = vmatmul.mubr.bf16.gmra.mrb[0].mxu0 %v1793
        %v1832 = vpop.f32.mrb[0].mxu0
        %v1833 = vadd.f32 0.0, %v1832
        %v1834 = vpop.f32.mrb[0].mxu0
        %v1835 = vpop.f32.mrb[0].mxu0
        %v1836 = vpop.f32.mrb[0].mxu0
        %1837 = vdwg.mxu0
        %1838 = vrot.lane.b32.xlu0 %v850, 112
        %v1839 = vpop.permute.xlu0 %1838
        %1840 = vrot.lane.b32.xlu0 %v854, 112
        %v1841 = vpop.permute.xlu0 %1840
        %v1843 = vsel %vm860, %v1839, 0
        %v1846 = vsel %vm860, %v1841, 0
        %1848 = vmatprep.subr.bf16.mxu0 0
        %1849 = vmatpush1.bf16.xpose.msra.mxu0 %v1846
        %1850 = vmatprep.subr.bf16.mxu0 0
        %1851 = vmatpush1.bf16.xpose.msra.mxu0 0
        %1852 = vmatprep.subr.bf16.mxu0 0
        %1853 = vmatpush1.bf16.xpose.msra.mxu0 0
        %1854 = vmatprep.subr.bf16.mxu0 0
        %1855 = vmatpush1.bf16.xpose.msra.mxu0 0
        %1856 = vmatprep.subr.bf16.mxu0 0
        %1857 = vmatpush1.bf16.xpose.msra.mxu0 0
        %1858 = vmatprep.subr.bf16.mxu0 0
        %1859 = vmatpush1.bf16.xpose.msra.mxu0 0
        %1860 = vmatprep.subr.bf16.mxu0 0
        %1861 = vmatpush1.bf16.xpose.msra.mxu0 0
        %1862 = vmatprep.subr.bf16.mxu0 0
        %1863 = vmatpush1.bf16.xpose.msra.mxu0 0
        %1864 = vmatprep.subr.bf16.mxu0 0
        %1865 = vmatpush1.bf16.xpose.msra.mxu0 0
        %1866 = vmatprep.subr.bf16.mxu0 0
        %1867 = vmatpush1.bf16.xpose.msra.mxu0 0
        %1868 = vmatprep.subr.bf16.mxu0 0
        %1869 = vmatpush1.bf16.xpose.msra.mxu0 0
        %1870 = vmatprep.subr.bf16.mxu0 0
        %1871 = vmatpush1.bf16.xpose.msra.mxu0 0
        %1872 = vmatprep.subr.bf16.mxu0 0
        %1873 = vmatpush1.bf16.xpose.msra.mxu0 0
        %1874 = vmatprep.subr.bf16.mxu0 0
        %1875 = vmatpush1.bf16.xpose.msra.mxu0 0
        %1876 = vmatprep.subr.bf16.mxu0 0
        %1877 = vmatpush1.bf16.xpose.msra.mxu0 0
        %1878 = vmatprep.subr.bf16.mxu0 0
        %1879 = vmatpush1.bf16.xpose.msra.mxu0 0
        %1880 = vmatprep.mubr.bf16.mxu0 0
        %1881 = vmatmul.mubr.bf16.gmra.mrb[0].mxu0 %v1843
        %v1882 = vpop.f32.mrb[0].mxu0
        %v1883 = vadd.f32 0.0, %v1882
        %v1884 = vpop.f32.mrb[0].mxu0
        %v1885 = vpop.f32.mrb[0].mxu0
        %v1886 = vpop.f32.mrb[0].mxu0
        %1887 = vdwg.mxu0
        %1888 = vrot.lane.b32.xlu0 %v851, 112
        %v1889 = vpop.permute.xlu0 %1888
        %1890 = vrot.lane.b32.xlu0 %v855, 112
        %v1891 = vpop.permute.xlu0 %1890
        %v1893 = vsel %vm860, %v1889, 0
        %v1896 = vsel %vm860, %v1891, 0
        %1898 = vmatprep.subr.bf16.mxu0 0
        %1899 = vmatpush1.bf16.xpose.msra.mxu0 %v1896
        %1900 = vmatprep.subr.bf16.mxu0 0
        %1901 = vmatpush1.bf16.xpose.msra.mxu0 0
        %1902 = vmatprep.subr.bf16.mxu0 0
        %1903 = vmatpush1.bf16.xpose.msra.mxu0 0
        %1904 = vmatprep.subr.bf16.mxu0 0
        %1905 = vmatpush1.bf16.xpose.msra.mxu0 0
        %1906 = vmatprep.subr.bf16.mxu0 0
        %1907 = vmatpush1.bf16.xpose.msra.mxu0 0
        %1908 = vmatprep.subr.bf16.mxu0 0
        %1909 = vmatpush1.bf16.xpose.msra.mxu0 0
        %1910 = vmatprep.subr.bf16.mxu0 0
        %1911 = vmatpush1.bf16.xpose.msra.mxu0 0
        %1912 = vmatprep.subr.bf16.mxu0 0
        %1913 = vmatpush1.bf16.xpose.msra.mxu0 0
        %1914 = vmatprep.subr.bf16.mxu0 0
        %1915 = vmatpush1.bf16.xpose.msra.mxu0 0
        %1916 = vmatprep.subr.bf16.mxu0 0
        %1917 = vmatpush1.bf16.xpose.msra.mxu0 0
        %1918 = vmatprep.subr.bf16.mxu0 0
        %1919 = vmatpush1.bf16.xpose.msra.mxu0 0
        %1920 = vmatprep.subr.bf16.mxu0 0
        %1921 = vmatpush1.bf16.xpose.msra.mxu0 0
        %1922 = vmatprep.subr.bf16.mxu0 0
        %1923 = vmatpush1.bf16.xpose.msra.mxu0 0
        %1924 = vmatprep.subr.bf16.mxu0 0
        %1925 = vmatpush1.bf16.xpose.msra.mxu0 0
        %1926 = vmatprep.subr.bf16.mxu0 0
        %1927 = vmatpush1.bf16.xpose.msra.mxu0 0
        %1928 = vmatprep.subr.bf16.mxu0 0
        %1929 = vmatpush1.bf16.xpose.msra.mxu0 0
        %1930 = vmatprep.mubr.bf16.mxu0 0
        %1931 = vmatmul.mubr.bf16.gmra.mrb[0].mxu0 %v1893
        %v1932 = vpop.f32.mrb[0].mxu0
        %v1933 = vadd.f32 0.0, %v1932
        %v1934 = vpop.f32.mrb[0].mxu0
        %v1935 = vpop.f32.mrb[0].mxu0
        %v1936 = vpop.f32.mrb[0].mxu0
        %1937 = vdwg.mxu0
        %v1938 = vmul.f32 %v1783, 0.35355338
        %v1939 = vmul.f32 %v1833, 0.35355338
        %v1940 = vmul.f32 %v1883, 0.35355338
        %v1941 = vmul.f32 %v1933, 0.35355338
        %v1942 = vsel %vm860, %v1938, -inf
        %1943 = vmax.xlane.f32.xlu0 %v1942
        %v1944 = vpop.xlane.xlu0 %1943
        %v1945 = vsel %vm860, %v1939, -inf
        %1946 = vmax.xlane.f32.xlu0 %v1945
        %v1947 = vpop.xlane.xlu0 %1946
        %v1948 = vsel %vm860, %v1940, -inf
        %1949 = vmax.xlane.f32.xlu0 %v1948
        %v1950 = vpop.xlane.xlu0 %1949
        %v1951 = vsel %vm860, %v1941, -inf
        %1952 = vmax.xlane.f32.xlu0 %v1951
        %v1953 = vpop.xlane.xlu0 %1952
        %v1954 = vsub.f32 %v1938, %v1944
        %v1955 = vsub.f32 %v1939, %v1947
        %v1956 = vsub.f32 %v1940, %v1950
        %v1957 = vsub.f32 %v1941, %v1953
        %v1958 = vmul.f32 %v1954, 1.442695
        %v1959 = vpow.pop %v1958
        %v1960 = vmul.f32 %v1955, 1.442695
        %v1961 = vpow.pop %v1960
        %v1962 = vmul.f32 %v1956, 1.442695
        %v1963 = vpow.pop %v1962
        %v1964 = vmul.f32 %v1957, 1.442695
        %v1965 = vpow.pop %v1964
        %v1966 = vsel %vm860, %v1959, 0.0
        %1967 = vadd.xlane.f32.xlu0 %v1966
        %v1968 = vpop.xlane.xlu0 %1967
        %v1969 = vsel %vm860, %v1961, 0.0
        %1970 = vadd.xlane.f32.xlu0 %v1969
        %v1971 = vpop.xlane.xlu0 %1970
        %v1972 = vsel %vm860, %v1963, 0.0
        %1973 = vadd.xlane.f32.xlu0 %v1972
        %v1974 = vpop.xlane.xlu0 %1973
        %v1975 = vsel %vm860, %v1965, 0.0
        %1976 = vadd.xlane.f32.xlu0 %v1975
        %v1977 = vpop.xlane.xlu0 %1976
        %v1978 = vrcp.pop %v1968
        %v1979 = vrcp.pop %v1971
        %v1980 = vrcp.pop %v1974
        %v1981 = vrcp.pop %v1977
        %v1982 = vmul.f32 %v1959, %v1978
        %v1983 = vmul.f32 %v1961, %v1979
        %v1984 = vmul.f32 %v1963, %v1980
        %v1985 = vmul.f32 %v1965, %v1981
        %v1986 = vpack.c.bf16 %v1982, %v1982
        %v1987 = vpack.c.bf16 %v1983, %v1983
        %v1988 = vpack.c.bf16 %v1984, %v1984
        %v1989 = vpack.c.bf16 %v1985, %v1985
        %1990 = vrot.lane.b32.xlu0 %v856, 112
        %v1991 = vpop.permute.xlu0 %1990
        %v1993 = vsel %vm860, %v1986, 0
        %v1996 = vsel %vm1100, %v1991, 0
        %1998 = vmatprep.subr.bf16.mxu0 0
        %1999 = vmatpush1.bf16.msra.mxu0 %v1996
        %2000 = vmatprep.subr.bf16.mxu0 0
        %2001 = vmatpush1.bf16.msra.mxu0 0
        %2002 = vmatprep.subr.bf16.mxu0 0
        %2003 = vmatpush1.bf16.msra.mxu0 0
        %2004 = vmatprep.subr.bf16.mxu0 0
        %2005 = vmatpush1.bf16.msra.mxu0 0
        %2006 = vmatprep.subr.bf16.mxu0 0
        %2007 = vmatpush1.bf16.msra.mxu0 0
        %2008 = vmatprep.subr.bf16.mxu0 0
        %2009 = vmatpush1.bf16.msra.mxu0 0
        %2010 = vmatprep.subr.bf16.mxu0 0
        %2011 = vmatpush1.bf16.msra.mxu0 0
        %2012 = vmatprep.subr.bf16.mxu0 0
        %2013 = vmatpush1.bf16.msra.mxu0 0
        %2014 = vmatprep.subr.bf16.mxu0 0
        %2015 = vmatpush1.bf16.msra.mxu0 0
        %2016 = vmatprep.subr.bf16.mxu0 0
        %2017 = vmatpush1.bf16.msra.mxu0 0
        %2018 = vmatprep.subr.bf16.mxu0 0
        %2019 = vmatpush1.bf16.msra.mxu0 0
        %2020 = vmatprep.subr.bf16.mxu0 0
        %2021 = vmatpush1.bf16.msra.mxu0 0
        %2022 = vmatprep.subr.bf16.mxu0 0
        %2023 = vmatpush1.bf16.msra.mxu0 0
        %2024 = vmatprep.subr.bf16.mxu0 0
        %2025 = vmatpush1.bf16.msra.mxu0 0
        %2026 = vmatprep.subr.bf16.mxu0 0
        %2027 = vmatpush1.bf16.msra.mxu0 0
        %2028 = vmatprep.subr.bf16.mxu0 0
        %2029 = vmatpush1.bf16.msra.mxu0 0
        %2030 = vmatprep.mubr.bf16.mxu0 0
        %2031 = vmatmul.mubr.bf16.gmra.mrb[0].mxu0 %v1993
        %v2032 = vpop.f32.mrb[0].mxu0
        %v2033 = vadd.f32 0.0, %v2032
        %v2034 = vpop.f32.mrb[0].mxu0
        %v2035 = vpop.f32.mrb[0].mxu0
        %v2036 = vpop.f32.mrb[0].mxu0
        %2037 = vdwg.mxu0
        %2038 = vrot.lane.b32.xlu0 %v857, 112
        %v2039 = vpop.permute.xlu0 %2038
        %v2041 = vsel %vm860, %v1987, 0
        %v2044 = vsel %vm1100, %v2039, 0
        %2046 = vmatprep.subr.bf16.mxu0 0
        %2047 = vmatpush1.bf16.msra.mxu0 %v2044
        %2048 = vmatprep.subr.bf16.mxu0 0
        %2049 = vmatpush1.bf16.msra.mxu0 0
        %2050 = vmatprep.subr.bf16.mxu0 0
        %2051 = vmatpush1.bf16.msra.mxu0 0
        %2052 = vmatprep.subr.bf16.mxu0 0
        %2053 = vmatpush1.bf16.msra.mxu0 0
        %2054 = vmatprep.subr.bf16.mxu0 0
        %2055 = vmatpush1.bf16.msra.mxu0 0
        %2056 = vmatprep.subr.bf16.mxu0 0
        %2057 = vmatpush1.bf16.msra.mxu0 0
        %2058 = vmatprep.subr.bf16.mxu0 0
        %2059 = vmatpush1.bf16.msra.mxu0 0
        %2060 = vmatprep.subr.bf16.mxu0 0
        %2061 = vmatpush1.bf16.msra.mxu0 0
        %2062 = vmatprep.subr.bf16.mxu0 0
        %2063 = vmatpush1.bf16.msra.mxu0 0
        %2064 = vmatprep.subr.bf16.mxu0 0
        %2065 = vmatpush1.bf16.msra.mxu0 0
        %2066 = vmatprep.subr.bf16.mxu0 0
        %2067 = vmatpush1.bf16.msra.mxu0 0
        %2068 = vmatprep.subr.bf16.mxu0 0
        %2069 = vmatpush1.bf16.msra.mxu0 0
        %2070 = vmatprep.subr.bf16.mxu0 0
        %2071 = vmatpush1.bf16.msra.mxu0 0
        %2072 = vmatprep.subr.bf16.mxu0 0
        %2073 = vmatpush1.bf16.msra.mxu0 0
        %2074 = vmatprep.subr.bf16.mxu0 0
        %2075 = vmatpush1.bf16.msra.mxu0 0
        %2076 = vmatprep.subr.bf16.mxu0 0
        %2077 = vmatpush1.bf16.msra.mxu0 0
        %2078 = vmatprep.mubr.bf16.mxu0 0
        %2079 = vmatmul.mubr.bf16.gmra.mrb[0].mxu0 %v2041
        %v2080 = vpop.f32.mrb[0].mxu0
        %v2081 = vadd.f32 0.0, %v2080
        %v2082 = vpop.f32.mrb[0].mxu0
        %v2083 = vpop.f32.mrb[0].mxu0
        %v2084 = vpop.f32.mrb[0].mxu0
        %2085 = vdwg.mxu0
        %2086 = vrot.lane.b32.xlu0 %v858, 112
        %v2087 = vpop.permute.xlu0 %2086
        %v2089 = vsel %vm860, %v1988, 0
        %v2092 = vsel %vm1100, %v2087, 0
        %2094 = vmatprep.subr.bf16.mxu0 0
        %2095 = vmatpush1.bf16.msra.mxu0 %v2092
        %2096 = vmatprep.subr.bf16.mxu0 0
        %2097 = vmatpush1.bf16.msra.mxu0 0
        %2098 = vmatprep.subr.bf16.mxu0 0
        %2099 = vmatpush1.bf16.msra.mxu0 0
        %2100 = vmatprep.subr.bf16.mxu0 0
        %2101 = vmatpush1.bf16.msra.mxu0 0
        %2102 = vmatprep.subr.bf16.mxu0 0
        %2103 = vmatpush1.bf16.msra.mxu0 0
        %2104 = vmatprep.subr.bf16.mxu0 0
        %2105 = vmatpush1.bf16.msra.mxu0 0
        %2106 = vmatprep.subr.bf16.mxu0 0
        %2107 = vmatpush1.bf16.msra.mxu0 0
        %2108 = vmatprep.subr.bf16.mxu0 0
        %2109 = vmatpush1.bf16.msra.mxu0 0
        %2110 = vmatprep.subr.bf16.mxu0 0
        %2111 = vmatpush1.bf16.msra.mxu0 0
        %2112 = vmatprep.subr.bf16.mxu0 0
        %2113 = vmatpush1.bf16.msra.mxu0 0
        %2114 = vmatprep.subr.bf16.mxu0 0
        %2115 = vmatpush1.bf16.msra.mxu0 0
        %2116 = vmatprep.subr.bf16.mxu0 0
        %2117 = vmatpush1.bf16.msra.mxu0 0
        %2118 = vmatprep.subr.bf16.mxu0 0
        %2119 = vmatpush1.bf16.msra.mxu0 0
        %2120 = vmatprep.subr.bf16.mxu0 0
        %2121 = vmatpush1.bf16.msra.mxu0 0
        %2122 = vmatprep.subr.bf16.mxu0 0
        %2123 = vmatpush1.bf16.msra.mxu0 0
        %2124 = vmatprep.subr.bf16.mxu0 0
        %2125 = vmatpush1.bf16.msra.mxu0 0
        %2126 = vmatprep.mubr.bf16.mxu0 0
        %2127 = vmatmul.mubr.bf16.gmra.mrb[0].mxu0 %v2089
        %v2128 = vpop.f32.mrb[0].mxu0
        %v2129 = vadd.f32 0.0, %v2128
        %v2130 = vpop.f32.mrb[0].mxu0
        %v2131 = vpop.f32.mrb[0].mxu0
        %v2132 = vpop.f32.mrb[0].mxu0
        %2133 = vdwg.mxu0
        %2134 = vrot.lane.b32.xlu0 %v859, 112
        %v2135 = vpop.permute.xlu0 %2134
        %v2137 = vsel %vm860, %v1989, 0
        %v2140 = vsel %vm1100, %v2135, 0
        %2142 = vmatprep.subr.bf16.mxu0 0
        %2143 = vmatpush1.bf16.msra.mxu0 %v2140
        %2144 = vmatprep.subr.bf16.mxu0 0
        %2145 = vmatpush1.bf16.msra.mxu0 0
        %2146 = vmatprep.subr.bf16.mxu0 0
        %2147 = vmatpush1.bf16.msra.mxu0 0
        %2148 = vmatprep.subr.bf16.mxu0 0
        %2149 = vmatpush1.bf16.msra.mxu0 0
        %2150 = vmatprep.subr.bf16.mxu0 0
        %2151 = vmatpush1.bf16.msra.mxu0 0
        %2152 = vmatprep.subr.bf16.mxu0 0
        %2153 = vmatpush1.bf16.msra.mxu0 0
        %2154 = vmatprep.subr.bf16.mxu0 0
        %2155 = vmatpush1.bf16.msra.mxu0 0
        %2156 = vmatprep.subr.bf16.mxu0 0
        %2157 = vmatpush1.bf16.msra.mxu0 0
        %2158 = vmatprep.subr.bf16.mxu0 0
        %2159 = vmatpush1.bf16.msra.mxu0 0
        %2160 = vmatprep.subr.bf16.mxu0 0
        %2161 = vmatpush1.bf16.msra.mxu0 0
        %2162 = vmatprep.subr.bf16.mxu0 0
        %2163 = vmatpush1.bf16.msra.mxu0 0
        %2164 = vmatprep.subr.bf16.mxu0 0
        %2165 = vmatpush1.bf16.msra.mxu0 0
        %2166 = vmatprep.subr.bf16.mxu0 0
        %2167 = vmatpush1.bf16.msra.mxu0 0
        %2168 = vmatprep.subr.bf16.mxu0 0
        %2169 = vmatpush1.bf16.msra.mxu0 0
        %2170 = vmatprep.subr.bf16.mxu0 0
        %2171 = vmatpush1.bf16.msra.mxu0 0
        %2172 = vmatprep.subr.bf16.mxu0 0
        %2173 = vmatpush1.bf16.msra.mxu0 0
        %2174 = vmatprep.mubr.bf16.mxu0 0
        %2175 = vmatmul.mubr.bf16.gmra.mrb[0].mxu0 %v2137
        %v2176 = vpop.f32.mrb[0].mxu0
        %v2177 = vadd.f32 0.0, %v2176
        %v2178 = vpop.f32.mrb[0].mxu0
        %v2179 = vpop.f32.mrb[0].mxu0
        %v2180 = vpop.f32.mrb[0].mxu0
        %2181 = vdwg.mxu0
        %2182 = vrot.lane.b32.xlu0 %v848, 104
        %v2183 = vpop.permute.xlu0 %2182
        %2184 = vrot.lane.b32.xlu0 %v852, 104
        %v2185 = vpop.permute.xlu0 %2184
        %v2187 = vsel %vm860, %v2183, 0
        %v2190 = vsel %vm860, %v2185, 0
        %2192 = vmatprep.subr.bf16.mxu0 0
        %2193 = vmatpush1.bf16.xpose.msra.mxu0 %v2190
        %2194 = vmatprep.subr.bf16.mxu0 0
        %2195 = vmatpush1.bf16.xpose.msra.mxu0 0
        %2196 = vmatprep.subr.bf16.mxu0 0
        %2197 = vmatpush1.bf16.xpose.msra.mxu0 0
        %2198 = vmatprep.subr.bf16.mxu0 0
        %2199 = vmatpush1.bf16.xpose.msra.mxu0 0
        %2200 = vmatprep.subr.bf16.mxu0 0
        %2201 = vmatpush1.bf16.xpose.msra.mxu0 0
        %2202 = vmatprep.subr.bf16.mxu0 0
        %2203 = vmatpush1.bf16.xpose.msra.mxu0 0
        %2204 = vmatprep.subr.bf16.mxu0 0
        %2205 = vmatpush1.bf16.xpose.msra.mxu0 0
        %2206 = vmatprep.subr.bf16.mxu0 0
        %2207 = vmatpush1.bf16.xpose.msra.mxu0 0
        %2208 = vmatprep.subr.bf16.mxu0 0
        %2209 = vmatpush1.bf16.xpose.msra.mxu0 0
        %2210 = vmatprep.subr.bf16.mxu0 0
        %2211 = vmatpush1.bf16.xpose.msra.mxu0 0
        %2212 = vmatprep.subr.bf16.mxu0 0
        %2213 = vmatpush1.bf16.xpose.msra.mxu0 0
        %2214 = vmatprep.subr.bf16.mxu0 0
        %2215 = vmatpush1.bf16.xpose.msra.mxu0 0
        %2216 = vmatprep.subr.bf16.mxu0 0
        %2217 = vmatpush1.bf16.xpose.msra.mxu0 0
        %2218 = vmatprep.subr.bf16.mxu0 0
        %2219 = vmatpush1.bf16.xpose.msra.mxu0 0
        %2220 = vmatprep.subr.bf16.mxu0 0
        %2221 = vmatpush1.bf16.xpose.msra.mxu0 0
        %2222 = vmatprep.subr.bf16.mxu0 0
        %2223 = vmatpush1.bf16.xpose.msra.mxu0 0
        %2224 = vmatprep.mubr.bf16.mxu0 0
        %2225 = vmatmul.mubr.bf16.gmra.mrb[0].mxu0 %v2187
        %v2226 = vpop.f32.mrb[0].mxu0
        %v2227 = vadd.f32 0.0, %v2226
        %v2228 = vpop.f32.mrb[0].mxu0
        %v2229 = vpop.f32.mrb[0].mxu0
        %v2230 = vpop.f32.mrb[0].mxu0
        %2231 = vdwg.mxu0
        %2232 = vrot.lane.b32.xlu0 %v849, 104
        %v2233 = vpop.permute.xlu0 %2232
        %2234 = vrot.lane.b32.xlu0 %v853, 104
        %v2235 = vpop.permute.xlu0 %2234
        %v2237 = vsel %vm860, %v2233, 0
        %v2240 = vsel %vm860, %v2235, 0
        %2242 = vmatprep.subr.bf16.mxu0 0
        %2243 = vmatpush1.bf16.xpose.msra.mxu0 %v2240
        %2244 = vmatprep.subr.bf16.mxu0 0
        %2245 = vmatpush1.bf16.xpose.msra.mxu0 0
        %2246 = vmatprep.subr.bf16.mxu0 0
        %2247 = vmatpush1.bf16.xpose.msra.mxu0 0
        %2248 = vmatprep.subr.bf16.mxu0 0
        %2249 = vmatpush1.bf16.xpose.msra.mxu0 0
        %2250 = vmatprep.subr.bf16.mxu0 0
        %2251 = vmatpush1.bf16.xpose.msra.mxu0 0
        %2252 = vmatprep.subr.bf16.mxu0 0
        %2253 = vmatpush1.bf16.xpose.msra.mxu0 0
        %2254 = vmatprep.subr.bf16.mxu0 0
        %2255 = vmatpush1.bf16.xpose.msra.mxu0 0
        %2256 = vmatprep.subr.bf16.mxu0 0
        %2257 = vmatpush1.bf16.xpose.msra.mxu0 0
        %2258 = vmatprep.subr.bf16.mxu0 0
        %2259 = vmatpush1.bf16.xpose.msra.mxu0 0
        %2260 = vmatprep.subr.bf16.mxu0 0
        %2261 = vmatpush1.bf16.xpose.msra.mxu0 0
        %2262 = vmatprep.subr.bf16.mxu0 0
        %2263 = vmatpush1.bf16.xpose.msra.mxu0 0
        %2264 = vmatprep.subr.bf16.mxu0 0
        %2265 = vmatpush1.bf16.xpose.msra.mxu0 0
        %2266 = vmatprep.subr.bf16.mxu0 0
        %2267 = vmatpush1.bf16.xpose.msra.mxu0 0
        %2268 = vmatprep.subr.bf16.mxu0 0
        %2269 = vmatpush1.bf16.xpose.msra.mxu0 0
        %2270 = vmatprep.subr.bf16.mxu0 0
        %2271 = vmatpush1.bf16.xpose.msra.mxu0 0
        %2272 = vmatprep.subr.bf16.mxu0 0
        %2273 = vmatpush1.bf16.xpose.msra.mxu0 0
        %2274 = vmatprep.mubr.bf16.mxu0 0
        %2275 = vmatmul.mubr.bf16.gmra.mrb[0].mxu0 %v2237
        %v2276 = vpop.f32.mrb[0].mxu0
        %v2277 = vadd.f32 0.0, %v2276
        %v2278 = vpop.f32.mrb[0].mxu0
        %v2279 = vpop.f32.mrb[0].mxu0
        %v2280 = vpop.f32.mrb[0].mxu0
        %2281 = vdwg.mxu0
        %2282 = vrot.lane.b32.xlu0 %v850, 104
        %v2283 = vpop.permute.xlu0 %2282
        %2284 = vrot.lane.b32.xlu0 %v854, 104
        %v2285 = vpop.permute.xlu0 %2284
        %v2287 = vsel %vm860, %v2283, 0
        %v2290 = vsel %vm860, %v2285, 0
        %2292 = vmatprep.subr.bf16.mxu0 0
        %2293 = vmatpush1.bf16.xpose.msra.mxu0 %v2290
        %2294 = vmatprep.subr.bf16.mxu0 0
        %2295 = vmatpush1.bf16.xpose.msra.mxu0 0
        %2296 = vmatprep.subr.bf16.mxu0 0
        %2297 = vmatpush1.bf16.xpose.msra.mxu0 0
        %2298 = vmatprep.subr.bf16.mxu0 0
        %2299 = vmatpush1.bf16.xpose.msra.mxu0 0
        %2300 = vmatprep.subr.bf16.mxu0 0
        %2301 = vmatpush1.bf16.xpose.msra.mxu0 0
        %2302 = vmatprep.subr.bf16.mxu0 0
        %2303 = vmatpush1.bf16.xpose.msra.mxu0 0
        %2304 = vmatprep.subr.bf16.mxu0 0
        %2305 = vmatpush1.bf16.xpose.msra.mxu0 0
        %2306 = vmatprep.subr.bf16.mxu0 0
        %2307 = vmatpush1.bf16.xpose.msra.mxu0 0
        %2308 = vmatprep.subr.bf16.mxu0 0
        %2309 = vmatpush1.bf16.xpose.msra.mxu0 0
        %2310 = vmatprep.subr.bf16.mxu0 0
        %2311 = vmatpush1.bf16.xpose.msra.mxu0 0
        %2312 = vmatprep.subr.bf16.mxu0 0
        %2313 = vmatpush1.bf16.xpose.msra.mxu0 0
        %2314 = vmatprep.subr.bf16.mxu0 0
        %2315 = vmatpush1.bf16.xpose.msra.mxu0 0
        %2316 = vmatprep.subr.bf16.mxu0 0
        %2317 = vmatpush1.bf16.xpose.msra.mxu0 0
        %2318 = vmatprep.subr.bf16.mxu0 0
        %2319 = vmatpush1.bf16.xpose.msra.mxu0 0
        %2320 = vmatprep.subr.bf16.mxu0 0
        %2321 = vmatpush1.bf16.xpose.msra.mxu0 0
        %2322 = vmatprep.subr.bf16.mxu0 0
        %2323 = vmatpush1.bf16.xpose.msra.mxu0 0
        %2324 = vmatprep.mubr.bf16.mxu0 0
        %2325 = vmatmul.mubr.bf16.gmra.mrb[0].mxu0 %v2287
        %v2326 = vpop.f32.mrb[0].mxu0
        %v2327 = vadd.f32 0.0, %v2326
        %v2328 = vpop.f32.mrb[0].mxu0
        %v2329 = vpop.f32.mrb[0].mxu0
        %v2330 = vpop.f32.mrb[0].mxu0
        %2331 = vdwg.mxu0
        %2332 = vrot.lane.b32.xlu0 %v851, 104
        %v2333 = vpop.permute.xlu0 %2332
        %2334 = vrot.lane.b32.xlu0 %v855, 104
        %v2335 = vpop.permute.xlu0 %2334
        %v2337 = vsel %vm860, %v2333, 0
        %v2340 = vsel %vm860, %v2335, 0
        %2342 = vmatprep.subr.bf16.mxu0 0
        %2343 = vmatpush1.bf16.xpose.msra.mxu0 %v2340
        %2344 = vmatprep.subr.bf16.mxu0 0
        %2345 = vmatpush1.bf16.xpose.msra.mxu0 0
        %2346 = vmatprep.subr.bf16.mxu0 0
        %2347 = vmatpush1.bf16.xpose.msra.mxu0 0
        %2348 = vmatprep.subr.bf16.mxu0 0
        %2349 = vmatpush1.bf16.xpose.msra.mxu0 0
        %2350 = vmatprep.subr.bf16.mxu0 0
        %2351 = vmatpush1.bf16.xpose.msra.mxu0 0
        %2352 = vmatprep.subr.bf16.mxu0 0
        %2353 = vmatpush1.bf16.xpose.msra.mxu0 0
        %2354 = vmatprep.subr.bf16.mxu0 0
        %2355 = vmatpush1.bf16.xpose.msra.mxu0 0
        %2356 = vmatprep.subr.bf16.mxu0 0
        %2357 = vmatpush1.bf16.xpose.msra.mxu0 0
        %2358 = vmatprep.subr.bf16.mxu0 0
        %2359 = vmatpush1.bf16.xpose.msra.mxu0 0
        %2360 = vmatprep.subr.bf16.mxu0 0
        %2361 = vmatpush1.bf16.xpose.msra.mxu0 0
        %2362 = vmatprep.subr.bf16.mxu0 0
        %2363 = vmatpush1.bf16.xpose.msra.mxu0 0
        %2364 = vmatprep.subr.bf16.mxu0 0
        %2365 = vmatpush1.bf16.xpose.msra.mxu0 0
        %2366 = vmatprep.subr.bf16.mxu0 0
        %2367 = vmatpush1.bf16.xpose.msra.mxu0 0
        %2368 = vmatprep.subr.bf16.mxu0 0
        %2369 = vmatpush1.bf16.xpose.msra.mxu0 0
        %2370 = vmatprep.subr.bf16.mxu0 0
        %2371 = vmatpush1.bf16.xpose.msra.mxu0 0
        %2372 = vmatprep.subr.bf16.mxu0 0
        %2373 = vmatpush1.bf16.xpose.msra.mxu0 0
        %2374 = vmatprep.mubr.bf16.mxu0 0
        %2375 = vmatmul.mubr.bf16.gmra.mrb[0].mxu0 %v2337
        %v2376 = vpop.f32.mrb[0].mxu0
        %v2377 = vadd.f32 0.0, %v2376
        %v2378 = vpop.f32.mrb[0].mxu0
        %v2379 = vpop.f32.mrb[0].mxu0
        %v2380 = vpop.f32.mrb[0].mxu0
        %2381 = vdwg.mxu0
        %v2382 = vmul.f32 %v2227, 0.35355338
        %v2383 = vmul.f32 %v2277, 0.35355338
        %v2384 = vmul.f32 %v2327, 0.35355338
        %v2385 = vmul.f32 %v2377, 0.35355338
        %v2386 = vsel %vm860, %v2382, -inf
        %2387 = vmax.xlane.f32.xlu0 %v2386
        %v2388 = vpop.xlane.xlu0 %2387
        %v2389 = vsel %vm860, %v2383, -inf
        %2390 = vmax.xlane.f32.xlu0 %v2389
        %v2391 = vpop.xlane.xlu0 %2390
        %v2392 = vsel %vm860, %v2384, -inf
        %2393 = vmax.xlane.f32.xlu0 %v2392
        %v2394 = vpop.xlane.xlu0 %2393
        %v2395 = vsel %vm860, %v2385, -inf
        %2396 = vmax.xlane.f32.xlu0 %v2395
        %v2397 = vpop.xlane.xlu0 %2396
        %v2398 = vsub.f32 %v2382, %v2388
        %v2399 = vsub.f32 %v2383, %v2391
        %v2400 = vsub.f32 %v2384, %v2394
        %v2401 = vsub.f32 %v2385, %v2397
        %v2402 = vmul.f32 %v2398, 1.442695
        %v2403 = vpow.pop %v2402
        %v2404 = vmul.f32 %v2399, 1.442695
        %v2405 = vpow.pop %v2404
        %v2406 = vmul.f32 %v2400, 1.442695
        %v2407 = vpow.pop %v2406
        %v2408 = vmul.f32 %v2401, 1.442695
        %v2409 = vpow.pop %v2408
        %v2410 = vsel %vm860, %v2403, 0.0
        %2411 = vadd.xlane.f32.xlu0 %v2410
        %v2412 = vpop.xlane.xlu0 %2411
        %v2413 = vsel %vm860, %v2405, 0.0
        %2414 = vadd.xlane.f32.xlu0 %v2413
        %v2415 = vpop.xlane.xlu0 %2414
        %v2416 = vsel %vm860, %v2407, 0.0
        %2417 = vadd.xlane.f32.xlu0 %v2416
        %v2418 = vpop.xlane.xlu0 %2417
        %v2419 = vsel %vm860, %v2409, 0.0
        %2420 = vadd.xlane.f32.xlu0 %v2419
        %v2421 = vpop.xlane.xlu0 %2420
        %v2422 = vrcp.pop %v2412
        %v2423 = vrcp.pop %v2415
        %v2424 = vrcp.pop %v2418
        %v2425 = vrcp.pop %v2421
        %v2426 = vmul.f32 %v2403, %v2422
        %v2427 = vmul.f32 %v2405, %v2423
        %v2428 = vmul.f32 %v2407, %v2424
        %v2429 = vmul.f32 %v2409, %v2425
        %v2430 = vpack.c.bf16 %v2426, %v2426
        %v2431 = vpack.c.bf16 %v2427, %v2427
        %v2432 = vpack.c.bf16 %v2428, %v2428
        %v2433 = vpack.c.bf16 %v2429, %v2429
        %2434 = vrot.lane.b32.xlu0 %v856, 104
        %v2435 = vpop.permute.xlu0 %2434
        %v2437 = vsel %vm860, %v2430, 0
        %v2440 = vsel %vm1100, %v2435, 0
        %2442 = vmatprep.subr.bf16.mxu0 0
        %2443 = vmatpush1.bf16.msra.mxu0 %v2440
        %2444 = vmatprep.subr.bf16.mxu0 0
        %2445 = vmatpush1.bf16.msra.mxu0 0
        %2446 = vmatprep.subr.bf16.mxu0 0
        %2447 = vmatpush1.bf16.msra.mxu0 0
        %2448 = vmatprep.subr.bf16.mxu0 0
        %2449 = vmatpush1.bf16.msra.mxu0 0
        %2450 = vmatprep.subr.bf16.mxu0 0
        %2451 = vmatpush1.bf16.msra.mxu0 0
        %2452 = vmatprep.subr.bf16.mxu0 0
        %2453 = vmatpush1.bf16.msra.mxu0 0
        %2454 = vmatprep.subr.bf16.mxu0 0
        %2455 = vmatpush1.bf16.msra.mxu0 0
        %2456 = vmatprep.subr.bf16.mxu0 0
        %2457 = vmatpush1.bf16.msra.mxu0 0
        %2458 = vmatprep.subr.bf16.mxu0 0
        %2459 = vmatpush1.bf16.msra.mxu0 0
        %2460 = vmatprep.subr.bf16.mxu0 0
        %2461 = vmatpush1.bf16.msra.mxu0 0
        %2462 = vmatprep.subr.bf16.mxu0 0
        %2463 = vmatpush1.bf16.msra.mxu0 0
        %2464 = vmatprep.subr.bf16.mxu0 0
        %2465 = vmatpush1.bf16.msra.mxu0 0
        %2466 = vmatprep.subr.bf16.mxu0 0
        %2467 = vmatpush1.bf16.msra.mxu0 0
        %2468 = vmatprep.subr.bf16.mxu0 0
        %2469 = vmatpush1.bf16.msra.mxu0 0
        %2470 = vmatprep.subr.bf16.mxu0 0
        %2471 = vmatpush1.bf16.msra.mxu0 0
        %2472 = vmatprep.subr.bf16.mxu0 0
        %2473 = vmatpush1.bf16.msra.mxu0 0
        %2474 = vmatprep.mubr.bf16.mxu0 0
        %2475 = vmatmul.mubr.bf16.gmra.mrb[0].mxu0 %v2437
        %v2476 = vpop.f32.mrb[0].mxu0
        %v2477 = vadd.f32 0.0, %v2476
        %v2478 = vpop.f32.mrb[0].mxu0
        %v2479 = vpop.f32.mrb[0].mxu0
        %v2480 = vpop.f32.mrb[0].mxu0
        %2481 = vdwg.mxu0
        %2482 = vrot.lane.b32.xlu0 %v857, 104
        %v2483 = vpop.permute.xlu0 %2482
        %v2485 = vsel %vm860, %v2431, 0
        %v2488 = vsel %vm1100, %v2483, 0
        %2490 = vmatprep.subr.bf16.mxu0 0
        %2491 = vmatpush1.bf16.msra.mxu0 %v2488
        %2492 = vmatprep.subr.bf16.mxu0 0
        %2493 = vmatpush1.bf16.msra.mxu0 0
        %2494 = vmatprep.subr.bf16.mxu0 0
        %2495 = vmatpush1.bf16.msra.mxu0 0
        %2496 = vmatprep.subr.bf16.mxu0 0
        %2497 = vmatpush1.bf16.msra.mxu0 0
        %2498 = vmatprep.subr.bf16.mxu0 0
        %2499 = vmatpush1.bf16.msra.mxu0 0
        %2500 = vmatprep.subr.bf16.mxu0 0
        %2501 = vmatpush1.bf16.msra.mxu0 0
        %2502 = vmatprep.subr.bf16.mxu0 0
        %2503 = vmatpush1.bf16.msra.mxu0 0
        %2504 = vmatprep.subr.bf16.mxu0 0
        %2505 = vmatpush1.bf16.msra.mxu0 0
        %2506 = vmatprep.subr.bf16.mxu0 0
        %2507 = vmatpush1.bf16.msra.mxu0 0
        %2508 = vmatprep.subr.bf16.mxu0 0
        %2509 = vmatpush1.bf16.msra.mxu0 0
        %2510 = vmatprep.subr.bf16.mxu0 0
        %2511 = vmatpush1.bf16.msra.mxu0 0
        %2512 = vmatprep.subr.bf16.mxu0 0
        %2513 = vmatpush1.bf16.msra.mxu0 0
        %2514 = vmatprep.subr.bf16.mxu0 0
        %2515 = vmatpush1.bf16.msra.mxu0 0
        %2516 = vmatprep.subr.bf16.mxu0 0
        %2517 = vmatpush1.bf16.msra.mxu0 0
        %2518 = vmatprep.subr.bf16.mxu0 0
        %2519 = vmatpush1.bf16.msra.mxu0 0
        %2520 = vmatprep.subr.bf16.mxu0 0
        %2521 = vmatpush1.bf16.msra.mxu0 0
        %2522 = vmatprep.mubr.bf16.mxu0 0
        %2523 = vmatmul.mubr.bf16.gmra.mrb[0].mxu0 %v2485
        %v2524 = vpop.f32.mrb[0].mxu0
        %v2525 = vadd.f32 0.0, %v2524
        %v2526 = vpop.f32.mrb[0].mxu0
        %v2527 = vpop.f32.mrb[0].mxu0
        %v2528 = vpop.f32.mrb[0].mxu0
        %2529 = vdwg.mxu0
        %2530 = vrot.lane.b32.xlu0 %v858, 104
        %v2531 = vpop.permute.xlu0 %2530
        %v2533 = vsel %vm860, %v2432, 0
        %v2536 = vsel %vm1100, %v2531, 0
        %2538 = vmatprep.subr.bf16.mxu0 0
        %2539 = vmatpush1.bf16.msra.mxu0 %v2536
        %2540 = vmatprep.subr.bf16.mxu0 0
        %2541 = vmatpush1.bf16.msra.mxu0 0
        %2542 = vmatprep.subr.bf16.mxu0 0
        %2543 = vmatpush1.bf16.msra.mxu0 0
        %2544 = vmatprep.subr.bf16.mxu0 0
        %2545 = vmatpush1.bf16.msra.mxu0 0
        %2546 = vmatprep.subr.bf16.mxu0 0
        %2547 = vmatpush1.bf16.msra.mxu0 0
        %2548 = vmatprep.subr.bf16.mxu0 0
        %2549 = vmatpush1.bf16.msra.mxu0 0
        %2550 = vmatprep.subr.bf16.mxu0 0
        %2551 = vmatpush1.bf16.msra.mxu0 0
        %2552 = vmatprep.subr.bf16.mxu0 0
        %2553 = vmatpush1.bf16.msra.mxu0 0
        %2554 = vmatprep.subr.bf16.mxu0 0
        %2555 = vmatpush1.bf16.msra.mxu0 0
        %2556 = vmatprep.subr.bf16.mxu0 0
        %2557 = vmatpush1.bf16.msra.mxu0 0
        %2558 = vmatprep.subr.bf16.mxu0 0
        %2559 = vmatpush1.bf16.msra.mxu0 0
        %2560 = vmatprep.subr.bf16.mxu0 0
        %2561 = vmatpush1.bf16.msra.mxu0 0
        %2562 = vmatprep.subr.bf16.mxu0 0
        %2563 = vmatpush1.bf16.msra.mxu0 0
        %2564 = vmatprep.subr.bf16.mxu0 0
        %2565 = vmatpush1.bf16.msra.mxu0 0
        %2566 = vmatprep.subr.bf16.mxu0 0
        %2567 = vmatpush1.bf16.msra.mxu0 0
        %2568 = vmatprep.subr.bf16.mxu0 0
        %2569 = vmatpush1.bf16.msra.mxu0 0
        %2570 = vmatprep.mubr.bf16.mxu0 0
        %2571 = vmatmul.mubr.bf16.gmra.mrb[0].mxu0 %v2533
        %v2572 = vpop.f32.mrb[0].mxu0
        %v2573 = vadd.f32 0.0, %v2572
        %v2574 = vpop.f32.mrb[0].mxu0
        %v2575 = vpop.f32.mrb[0].mxu0
        %v2576 = vpop.f32.mrb[0].mxu0
        %2577 = vdwg.mxu0
        %2578 = vrot.lane.b32.xlu0 %v859, 104
        %v2579 = vpop.permute.xlu0 %2578
        %v2581 = vsel %vm860, %v2433, 0
        %v2584 = vsel %vm1100, %v2579, 0
        %2586 = vmatprep.subr.bf16.mxu0 0
        %2587 = vmatpush1.bf16.msra.mxu0 %v2584
        %2588 = vmatprep.subr.bf16.mxu0 0
        %2589 = vmatpush1.bf16.msra.mxu0 0
        %2590 = vmatprep.subr.bf16.mxu0 0
        %2591 = vmatpush1.bf16.msra.mxu0 0
        %2592 = vmatprep.subr.bf16.mxu0 0
        %2593 = vmatpush1.bf16.msra.mxu0 0
        %2594 = vmatprep.subr.bf16.mxu0 0
        %2595 = vmatpush1.bf16.msra.mxu0 0
        %2596 = vmatprep.subr.bf16.mxu0 0
        %2597 = vmatpush1.bf16.msra.mxu0 0
        %2598 = vmatprep.subr.bf16.mxu0 0
        %2599 = vmatpush1.bf16.msra.mxu0 0
        %2600 = vmatprep.subr.bf16.mxu0 0
        %2601 = vmatpush1.bf16.msra.mxu0 0
        %2602 = vmatprep.subr.bf16.mxu0 0
        %2603 = vmatpush1.bf16.msra.mxu0 0
        %2604 = vmatprep.subr.bf16.mxu0 0
        %2605 = vmatpush1.bf16.msra.mxu0 0
        %2606 = vmatprep.subr.bf16.mxu0 0
        %2607 = vmatpush1.bf16.msra.mxu0 0
        %2608 = vmatprep.subr.bf16.mxu0 0
        %2609 = vmatpush1.bf16.msra.mxu0 0
        %2610 = vmatprep.subr.bf16.mxu0 0
        %2611 = vmatpush1.bf16.msra.mxu0 0
        %2612 = vmatprep.subr.bf16.mxu0 0
        %2613 = vmatpush1.bf16.msra.mxu0 0
        %2614 = vmatprep.subr.bf16.mxu0 0
        %2615 = vmatpush1.bf16.msra.mxu0 0
        %2616 = vmatprep.subr.bf16.mxu0 0
        %2617 = vmatpush1.bf16.msra.mxu0 0
        %2618 = vmatprep.mubr.bf16.mxu0 0
        %2619 = vmatmul.mubr.bf16.gmra.mrb[0].mxu0 %v2581
        %v2620 = vpop.f32.mrb[0].mxu0
        %v2621 = vadd.f32 0.0, %v2620
        %v2622 = vpop.f32.mrb[0].mxu0
        %v2623 = vpop.f32.mrb[0].mxu0
        %v2624 = vpop.f32.mrb[0].mxu0
        %2625 = vdwg.mxu0
        %2630 = vrot.lane.b32.xlu0 %v1586, 8
        %v2631 = vpop.permute.xlu0 %2630
        %2632 = vrot.lane.b32.xlu0 %v1635, 8
        %v2633 = vpop.permute.xlu0 %2632
        %2634 = vrot.lane.b32.xlu0 %v1684, 8
        %v2635 = vpop.permute.xlu0 %2634
        %2636 = vrot.lane.b32.xlu0 %v1733, 8
        %v2637 = vpop.permute.xlu0 %2636
        %2646 = vrot.lane.b32.xlu0 %v2033, 16
        %v2647 = vpop.permute.xlu0 %2646
        %2648 = vrot.lane.b32.xlu0 %v2081, 16
        %v2649 = vpop.permute.xlu0 %2648
        %2650 = vrot.lane.b32.xlu0 %v2129, 16
        %v2651 = vpop.permute.xlu0 %2650
        %2652 = vrot.lane.b32.xlu0 %v2177, 16
        %v2653 = vpop.permute.xlu0 %2652
        %2662 = vrot.lane.b32.xlu0 %v2477, 24
        %v2663 = vpop.permute.xlu0 %2662
        %2664 = vrot.lane.b32.xlu0 %v2525, 24
        %v2665 = vpop.permute.xlu0 %2664
        %2666 = vrot.lane.b32.xlu0 %v2573, 24
        %v2667 = vpop.permute.xlu0 %2666
        %2668 = vrot.lane.b32.xlu0 %v2621, 24
        %v2669 = vpop.permute.xlu0 %2668
        %v2674 = vsel %vm860, %v1139, %v2631
        %v2675 = vsel %vm860, %v1185, %v2633
        %v2676 = vsel %vm860, %v1231, %v2635
        %v2677 = vsel %vm860, %v1277, %v2637
        %vm2678 = vcmask 130048
        %v2679 = vsel %vm2678, %v2674, %v2647
        %v2680 = vsel %vm2678, %v2675, %v2649
        %v2681 = vsel %vm2678, %v2676, %v2651
        %v2682 = vsel %vm2678, %v2677, %v2653
        %vm2683 = vcmask 195584
        %v2684 = vsel %vm2683, %v2679, %v2663
        %v2685 = vsel %vm2683, %v2680, %v2665
        %v2686 = vsel %vm2683, %v2681, %v2667
        %v2687 = vsel %vm2683, %v2682, %v2669
        %v2688 = vpack.c.bf16 %v2685, %v2684
        %v2689 = vpack.c.bf16 %v2687, %v2686
        %v2690 = vld [vmem:[#allocation17] sm:$0xf]
        %v2691 = vld [vmem:[#allocation17 + $0x4] sm:$0xf]
        %v2692 = vld [vmem:[#allocation17 + $0x8] sm:$0xf]
        %v2693 = vld [vmem:[#allocation17 + $0xc] sm:$0xf]
        %v2694 = vld [vmem:[#allocation19] sm:$0x1]
        %v2696 = vlaneseq
        %v2697 = vshrl.u32 %v2696, 7
        %v2698 = vsub.s32 0, %v2697
        %v2699 = vrot.slane %v2694, %v2698
        %v2705 = vunpack.c.l.b16 %v2690
        %v2706 = vunpack.c.l.b16 %v2691
        %v2707 = vunpack.c.l.b16 %v2692
        %v2708 = vunpack.c.l.b16 %v2693
        %v2709 = vpack.c.b16 %v2706, %v2705
        %v2710 = vpack.c.b16 %v2708, %v2707
        %v2714 = vsel %vm636, %v2688, 0
        %v2717 = vsel %vm636, %v2689, 0
        %2719 = vmatprep.subr.bf16.mxu0 0
        %2720 = vmatpush1.bf16.msra.mxu0 %v2709
        %2721 = vmatprep.subr.bf16.mxu0 0
        %2722 = vmatpush1.bf16.msra.mxu0 %v2710
        %2723 = vmatprep.subr.bf16.mxu0 0
        %2724 = vmatpush1.bf16.msra.mxu0 0
        %2725 = vmatprep.subr.bf16.mxu0 0
        %2726 = vmatpush1.bf16.msra.mxu0 0
        %2727 = vmatprep.subr.bf16.mxu0 0
        %2728 = vmatpush1.bf16.msra.mxu0 0
        %2729 = vmatprep.subr.bf16.mxu0 0
        %2730 = vmatpush1.bf16.msra.mxu0 0
        %2731 = vmatprep.subr.bf16.mxu0 0
        %2732 = vmatpush1.bf16.msra.mxu0 0
        %2733 = vmatprep.subr.bf16.mxu0 0
        %2734 = vmatpush1.bf16.msra.mxu0 0
        %2735 = vmatprep.subr.bf16.mxu0 0
        %2736 = vmatpush1.bf16.msra.mxu0 0
        %2737 = vmatprep.subr.bf16.mxu0 0
        %2738 = vmatpush1.bf16.msra.mxu0 0
        %2739 = vmatprep.subr.bf16.mxu0 0
        %2740 = vmatpush1.bf16.msra.mxu0 0
        %2741 = vmatprep.subr.bf16.mxu0 0
        %2742 = vmatpush1.bf16.msra.mxu0 0
        %2743 = vmatprep.subr.bf16.mxu0 0
        %2744 = vmatpush1.bf16.msra.mxu0 0
        %2745 = vmatprep.subr.bf16.mxu0 0
        %2746 = vmatpush1.bf16.msra.mxu0 0
        %2747 = vmatprep.subr.bf16.mxu0 0
        %2748 = vmatpush1.bf16.msra.mxu0 0
        %2749 = vmatprep.subr.bf16.mxu0 0
        %2750 = vmatpush1.bf16.msra.mxu0 0
        %2751 = vmatprep.mubr.bf16.mxu0 0
        %2752 = vmatmul.mubr.bf16.gmra.mrb[0].mxu0 %v2714
        %v2753 = vpop.f32.mrb[0].mxu0
        %v2754 = vadd.f32 %v2699, %v2753
        %v2755 = vpop.f32.mrb[0].mxu0
        %v2756 = vpop.f32.mrb[0].mxu0
        %v2757 = vadd.f32 %v2699, %v2756
        %v2758 = vpop.f32.mrb[0].mxu0
        %2759 = vmatprep.mubr.bf16.mxu0 0
        %2760 = vmatmul.mubr.bf16.gmra.mrb[0].mxu0 %v2717
        %v2761 = vpop.f32.mrb[0].mxu0
        %v2762 = vadd.f32 %v2699, %v2761
        %v2763 = vpop.f32.mrb[0].mxu0
        %v2764 = vpop.f32.mrb[0].mxu0
        %v2765 = vadd.f32 %v2699, %v2764
        %v2766 = vpop.f32.mrb[0].mxu0
        %2767 = vdwg.mxu0
        %2768 = vst.msk [vmem:[%s589] sm:$0xff] %vm636, %v2754
        %2769 = vst.msk [vmem:[%s589 + $0x8] sm:$0xff] %vm636, %v2757
        %2770 = vst.msk [vmem:[%s589 + $0x10] sm:$0xff] %vm636, %v2762
        %2771 = vst.msk [vmem:[%s589 + $0x18] sm:$0xff] %vm636, %v2765
        %s2772 = sand.u32 %s289, 1
        %s2773 = scalar_lea.sflag [#allocation4], %s2772
        %s2774 = sand.u32 %s289, 1
        %s2775 = smul.addr %s2774, 32
        %s2776 = scalar_lea.vmem [#allocation20], %s2775
        // Predicated region
        $region109: #{tpu_custom_call.1} parent=63 // pred_check
          %p2777 = pneg %p299
        $region110: #{tpu_custom_call.1} parent=63 // pred_check_branch
          %2779 = sbr.rel (%p2777) target = $region112
        $region111: #{tpu_custom_call.1} parent=63 // pred_region
          %s2780 = smul.u32 4, %s35
          %s2782 = ssub.s32 512, 512
          %2783 = vsyncadd %s2773, %s2782
          %s2784 = smul.addr %s2780, 128
          %s2785 = scalar_lea.hbm %s11, %s2784
          %s2786 = sshll.u32 %s2776, 4
          %s2787 = int_to_ptr.vmem [resolvable:$true] %s2786
          %2792 = dma.vmem_to_hbm [thread:$0]  %s2787, 512, %s2785, %s2773, 128, 128, 8
        $region112: #{tpu_custom_call.1} parent=63 // pred_fallthru
          _
      $region64: #{tpu_custom_call.1} parent=5 // pred_fallthru
        _
      %p2793 = scmp.le.s32.totalorder 2, %s30
      // Predicated region
      $region113: #{tpu_custom_call.1} parent=5 // pred_check
        %p2794 = pneg %p2793
      $region114: #{tpu_custom_call.1} parent=5 // pred_check_branch
        %2796 = sbr.rel (%p2794) target = $region116
      $region115: #{tpu_custom_call.1} parent=5 // pred_region
        %s2797 = ssub.s32 %s30, 2
        // Predicated region
        $region117: #{tpu_custom_call.1} parent=115 // pred_check
          %p2798 = pneg %p305
        $region118: #{tpu_custom_call.1} parent=115 // pred_check_branch
          %2800 = sbr.rel (%p2798) target = $region120
        $region119: #{tpu_custom_call.1} parent=115 // pred_region
          %s2801 = sand.u32 %s290, 1
          %s2802 = scalar_lea.sflag [#allocation4], %s2801
          %s2803 = sand.u32 %s290, 1
          %s2804 = smul.addr %s2803, 32
          %s2805 = scalar_lea.vmem [#allocation20], %s2804
          %2806 = dma.done %s2802, 512
        $region120: #{tpu_custom_call.1} parent=115 // pred_fallthru
          _
      $region116: #{tpu_custom_call.1} parent=5 // pred_fallthru
        _
    $region6: #{tpu_custom_call.1} parent=1 // loop_footer
      %s34 = sadd.s32 1, %s30
    $region7: #{tpu_custom_call.1} parent=1 // loop_footer_branch
      %29 = sbr.rel target = $region3
    $region8: #{tpu_custom_call.1} parent=1 // loop_exit
      _
    %2807 = vsyncpa [#allocation3], 1
    %s2808 = scalar_lea.sflag [#allocation3], 1
    %2809 = vsyncpa %s2808, 1
    %2810 = vsyncpa [#allocation6], 1
    %s2811 = scalar_lea.sflag [#allocation6], 1
    %2812 = vsyncpa %s2811, 1
    %2813 = vsyncpa [#allocation9], 1
    %2814 = vsyncpa [#allocation12], 1
    %2815 = vsyncpa [#allocation15], 1
    %2816 = vsyncpa [#allocation18], 1
    %2817 = vsyncpa [#allocation4], 1
    %s2818 = scalar_lea.sflag [#allocation4], 1
    %2819 = vsyncpa %s2818, 1

</llo_original>
